<compile_context>
chip_gen: v7x
topology: tpu7x:2x2x1
jax: 0.10.0
libtpu: 0.0.40
codegen_flags: <defaults>
</compile_context>

<pallas_src>
import functools

import jax
import jax.numpy as jnp
from jax.experimental import pallas as pl
from jax.experimental.pallas import tpu as pltpu

LANE = 128       # TPU lane width (last-dim tile)
SUBLANE = 8      # TPU sublane width (second-to-last-dim tile)
HIDDEN = 256     # hidden width of the synthetic encoder/decoder MLPs

# Canonical flat ordering of parameters as passed to the fused kernel.
PARAM_ORDER = (
    # encoder_z
    "ez_w1", "ez_b1", "ez_w2", "ez_b2", "ez_wm", "ez_bm", "ez_wv", "ez_bv",
    # encoder_w (first layer split into x-part and p-part: no concat needed)
    "ew_w1x", "ew_w1p", "ew_b1", "ew_w2", "ew_b2",
    "ew_wm", "ew_bm", "ew_wv", "ew_bv", "ew_wp", "ew_bp",
    # decoder (first layer split into z-part and w-part: no concat needed)
    "d_w1z", "d_w1w", "d_b1", "d_w2", "d_b2", "d_wo", "d_bo",
)


# ----------------------------------------------------------------------------
# Fused Pallas kernel
# ----------------------------------------------------------------------------

def _dot(a, b):
    # bf16 operands, f32 accumulation on the MXU.
    return jnp.dot(a, b, preferred_element_type=jnp.float32)


def _stable_sigmoid(x):
    # Numerically stable sigmoid: exp goes to the EUP, approx reciprocal also
    # routes to the EUP, keeping VALU slots free.
    e = jnp.exp(-jnp.abs(x))
    r = pl.reciprocal(1.0 + e, approx=True)
    return jnp.where(x >= 0, r, e * r)


def control_vae_fused_kernel(
    # data
    x_ref, p_ref, eps_z_ref, eps_w_ref,
    # encoder_z params
    ez_w1_ref, ez_b1_ref, ez_w2_ref, ez_b2_ref,
    ez_wm_ref, ez_bm_ref, ez_wv_ref, ez_bv_ref,
    # encoder_w params
    ew_w1x_ref, ew_w1p_ref, ew_b1_ref, ew_w2_ref, ew_b2_ref,
    ew_wm_ref, ew_bm_ref, ew_wv_ref, ew_bv_ref, ew_wp_ref, ew_bp_ref,
    # decoder params
    d_w1z_ref, d_w1w_ref, d_b1_ref, d_w2_ref, d_b2_ref, d_wo_ref, d_bo_ref,
    # outputs
    recon_ref, z_mean_ref, z_logvar_ref, w_mean_ref, w_logvar_ref,
    z_sample_ref, w_sample_ref, p_pred_ref,
):
    bf16 = jnp.bfloat16
    x_bf = x_ref[...].astype(bf16)
    p_bf = p_ref[...].astype(bf16)

    # ---- encoder_z(x) -> (mean, logvar), heads padded to 128 lanes ------
    h1 = jnp.maximum(_dot(x_bf, ez_w1_ref[...]) + ez_b1_ref[...], 0.0)
    h2 = jnp.maximum(_dot(h1.astype(bf16), ez_w2_ref[...]) + ez_b2_ref[...], 0.0)
    h2b = h2.astype(bf16)
    z_mean = _dot(h2b, ez_wm_ref[...]) + ez_bm_ref[...]
    z_logvar = _dot(h2b, ez_wv_ref[...]) + ez_bv_ref[...]
    z_mean_ref[...] = z_mean
    z_logvar_ref[...] = z_logvar

    # ---- encoder_w(x, p) -> (mean, logvar, p_pred) ----------------------
    # concat([x, p]) @ W1 expressed as x @ W1x + p @ W1p (lane-aligned).
    g1 = jnp.maximum(
        _dot(x_bf, ew_w1x_ref[...]) + _dot(p_bf, ew_w1p_ref[...])
        + ew_b1_ref[...], 0.0)
    g2 = jnp.maximum(_dot(g1.astype(bf16), ew_w2_ref[...]) + ew_b2_ref[...], 0.0)
    g2b = g2.astype(bf16)
    w_mean = _dot(g2b, ew_wm_ref[...]) + ew_bm_ref[...]
    w_logvar = _dot(g2b, ew_wv_ref[...]) + ew_bv_ref[...]
    w_mean_ref[...] = w_mean
    w_logvar_ref[...] = w_logvar
    p_pred_ref[...] = _stable_sigmoid(_dot(g2b, ew_wp_ref[...]) + ew_bp_ref[...])

    # ---- reparameterize (training mode): mean + exp(0.5*logvar) * eps ---
    # TODO(synk): could generate eps on-chip with pltpu.prng_seed /
    # stateful_normal; kept as host inputs for deterministic comparison.
    z_sample = z_mean + jnp.exp(0.5 * z_logvar) * eps_z_ref[...]
    w_sample = w_mean + jnp.exp(0.5 * w_logvar) * eps_w_ref[...]
    z_sample_ref[...] = z_sample
    w_sample_ref[...] = w_sample

    # ---- decoder(z, w) -> sigmoid image ---------------------------------
    # concat([z, w]) @ W1 expressed as z @ W1z + w @ W1w.
    d1 = jnp.maximum(
        _dot(z_sample.astype(bf16), d_w1z_ref[...])
        + _dot(w_sample.astype(bf16), d_w1w_ref[...]) + d_b1_ref[...], 0.0)
    d2 = jnp.maximum(_dot(d1.astype(bf16), d_w2_ref[...]) + d_b2_ref[...], 0.0)
    recon_ref[...] = _stable_sigmoid(_dot(d2.astype(bf16), d_wo_ref[...])
                                     + d_bo_ref[...])


# ----------------------------------------------------------------------------
# pallas_call wrapper
# ----------------------------------------------------------------------------

def _full_spec(shape):
    """BlockSpec covering the whole (already padded/aligned) array, grid=(1,)."""
    ndim = len(shape)
    return pl.BlockSpec(shape, lambda i: (0,) * ndim)


def _fused_forward_pallas(inputs, b_pad, n_pix):
    out_shapes = ((b_pad, n_pix),) + ((b_pad, LANE),) * 7
    return pl.pallas_call(
        control_vae_fused_kernel,
        grid=(1,),
        in_specs=[_full_spec(a.shape) for a in inputs],
        out_specs=tuple(_full_spec(s) for s in out_shapes),
        out_shape=tuple(jax.ShapeDtypeStruct(s, jnp.float32) for s in out_shapes),
        compiler_params=pltpu.CompilerParams(
            dimension_semantics=("arbitrary",)),
        # TODO(synk): for img_size=(C,64,64) and/or large batch, tile n_pix /
        # batch with extra grid axes (mark batch "parallel" for v7x's 2 TCs)
        # and cap VMEM via vmem_limit_bytes; at (1,32,32) with bf16 weights the
        # full resident set is ~5 MB and fits every generation's defaults.
    )(*inputs)


def _fused_forward_ref(inputs):
    """Pure-JAX reference mirroring the fused kernel math (for validation)."""
    (x, p, eps_z, eps_w,
     ez_w1, ez_b1, ez_w2, ez_b2, ez_wm, ez_bm, ez_wv, ez_bv,
     ew_w1x, ew_w1p, ew_b1, ew_w2, ew_b2,
     ew_wm, ew_bm, ew_wv, ew_bv, ew_wp, ew_bp,
     d_w1z, d_w1w, d_b1, d_w2, d_b2, d_wo, d_bo) = inputs
    bf16 = jnp.bfloat16
    xb = x.astype(bf16)
    pb = p.astype(bf16)
    h1 = jnp.maximum(_dot(xb, ez_w1) + ez_b1, 0.0)
    h2 = jnp.maximum(_dot(h1.astype(bf16), ez_w2) + ez_b2, 0.0)
    h2b = h2.astype(bf16)
    z_mean = _dot(h2b, ez_wm) + ez_bm
    z_logvar = _dot(h2b, ez_wv) + ez_bv
    g1 = jnp.maximum(_dot(xb, ew_w1x) + _dot(pb, ew_w1p) + ew_b1, 0.0)
    g2 = jnp.maximum(_dot(g1.astype(bf16), ew_w2) + ew_b2, 0.0)
    g2b = g2.astype(bf16)
    w_mean = _dot(g2b, ew_wm) + ew_bm
    w_logvar = _dot(g2b, ew_wv) + ew_bv
    p_pred = jax.nn.sigmoid(_dot(g2b, ew_wp) + ew_bp)
    z_sample = z_mean + jnp.exp(0.5 * z_logvar) * eps_z
    w_sample = w_mean + jnp.exp(0.5 * w_logvar) * eps_w
    d1 = jnp.maximum(_dot(z_sample.astype(bf16), d_w1z)
                     + _dot(w_sample.astype(bf16), d_w1w) + d_b1, 0.0)
    d2 = jnp.maximum(_dot(d1.astype(bf16), d_w2) + d_b2, 0.0)
    recon = jax.nn.sigmoid(_dot(d2.astype(bf16), d_wo) + d_bo)
    return (recon, z_mean, z_logvar, w_mean, w_logvar,
            z_sample, w_sample, p_pred)


# ----------------------------------------------------------------------------
# Parameter construction (deterministic, bf16 weights / f32 biases, pre-padded)
# ----------------------------------------------------------------------------

def make_params(key, img_size, latent_dim, num_prop, hidden=HIDDEN):
    c, h, w = img_size
    n_pix = c * h * w
    keys = iter(jax.random.split(key, 26))

    def weight(fan_in, fan_out, pad_in=None, pad_out=None):
        m = jax.random.normal(next(keys), (fan_in, fan_out), jnp.float32)
        m = m / jnp.sqrt(jnp.float32(fan_in))
        if pad_in is not None and pad_in > fan_in:
            m = jnp.pad(m, ((0, pad_in - fan_in), (0, 0)))
        if pad_out is not None and pad_out > fan_out:
            m = jnp.pad(m, ((0, 0), (0, pad_out - fan_out)))
        return m.astype(jnp.bfloat16)      # bf16 weights: halve weight DMA

    def bias(fan_out, pad_out=None):
        v = jax.random.normal(next(keys), (fan_out,), jnp.float32) * 0.01
        if pad_out is not None and pad_out > fan_out:
            v = jnp.pad(v, (0, pad_out - fan_out))
        return v.reshape(1, -1)            # f32 biases, added post-accumulation

    p = {}
    # encoder_z: x -> relu -> relu -> (mean, logvar), heads padded to 128 lanes
    p["ez_w1"] = weight(n_pix, hidden);  p["ez_b1"] = bias(hidden)
    p["ez_w2"] = weight(hidden, hidden); p["ez_b2"] = bias(hidden)
    p["ez_wm"] = weight(hidden, latent_dim, pad_out=LANE)
    p["ez_bm"] = bias(latent_dim, pad_out=LANE)
    p["ez_wv"] = weight(hidden, latent_dim, pad_out=LANE)
    p["ez_bv"] = bias(latent_dim, pad_out=LANE)
    # encoder_w: conditions on x and p; first layer split into x / p blocks
    p["ew_w1x"] = weight(n_pix, hidden)
    p["ew_w1p"] = weight(num_prop, hidden, pad_in=LANE)
    p["ew_b1"] = bias(hidden)
    p["ew_w2"] = weight(hidden, hidden); p["ew_b2"] = bias(hidden)
    p["ew_wm"] = weight(hidden, latent_dim, pad_out=LANE)
    p["ew_bm"] = bias(latent_dim, pad_out=LANE)
    p["ew_wv"] = weight(hidden, latent_dim, pad_out=LANE)
    p["ew_bv"] = bias(latent_dim, pad_out=LANE)
    p["ew_wp"] = weight(hidden, num_prop, pad_out=LANE)
    p["ew_bp"] = bias(num_prop, pad_out=LANE)
    # decoder: takes (z, w); first layer split into z / w blocks
    p["d_w1z"] = weight(latent_dim, hidden, pad_in=LANE)
    p["d_w1w"] = weight(latent_dim, hidden, pad_in=LANE)
    p["d_b1"] = bias(hidden)
    p["d_w2"] = weight(hidden, hidden); p["d_b2"] = bias(hidden)
    p["d_wo"] = weight(hidden, n_pix);  p["d_bo"] = bias(n_pix)
    return p


# ----------------------------------------------------------------------------
# ControlVAE forward (training-mode semantics)
# ----------------------------------------------------------------------------

def control_vae_forward(params, x, p, eps_z, eps_w, img_size, latent_dim,
                        use_pallas=True):
    b = x.shape[0]
    c, h, w = img_size
    n_pix = c * h * w
    num_prop = p.shape[-1]
    b_pad = ((b + SUBLANE - 1) // SUBLANE) * SUBLANE

    # glue: flatten NCHW image, pad batch to a sublane multiple, pad the small
    # conditioning / noise vectors to a full 128-lane block (zeros contribute
    # nothing because the matching weight rows/cols are zero-padded too).
    x_flat = jnp.pad(x.reshape(b, n_pix).astype(jnp.float32),
                     ((0, b_pad - b), (0, 0)))
    p_in = jnp.pad(p.astype(jnp.float32),
                   ((0, b_pad - b), (0, LANE - num_prop)))
    ez_in = jnp.pad(eps_z.astype(jnp.float32),
                    ((0, b_pad - b), (0, LANE - latent_dim)))
    ew_in = jnp.pad(eps_w.astype(jnp.float32),
                    ((0, b_pad - b), (0, LANE - latent_dim)))

    inputs = [x_flat, p_in, ez_in, ew_in] + [params[k] for k in PARAM_ORDER]

    if use_pallas:
        outs = _fused_forward_pallas(inputs, b_pad, n_pix)
    else:
        outs = _fused_forward_ref(inputs)

    (recon, z_mean, z_logvar, w_mean, w_logvar,
     z_sample, w_sample, p_pred) = outs

    # glue: slice padded rows/lanes back out and reshape image.
    reconstruct = recon[:b].reshape(b, c, h, w)
    latent_dist_z = (z_mean[:b, :latent_dim], z_logvar[:b, :latent_dim])
    latent_dist_w = (w_mean[:b, :latent_dim], w_logvar[:b, :latent_dim])
    return (reconstruct, latent_dist_z, latent_dist_w,
            z_sample[:b, :latent_dim], w_sample[:b, :latent_dim],
            p_pred[:b, :num_prop])


# ----------------------------------------------------------------------------
# Main
# ----------------------------------------------------------------------------

if __name__ == "__main__":
    img_size = (1, 32, 32)     # ControlVAE supports (C, 32, 32) or (C, 64, 64)
    latent_dim = 8
    num_prop = 3
    batch = 2

    key = jax.random.PRNGKey(0)
    k_params, k_x, k_p, k_ez, k_ew = jax.random.split(key, 5)

    params = make_params(k_params, img_size, latent_dim, num_prop)
    x = jax.random.uniform(k_x, (batch,) + img_size, jnp.float32)
    p = jax.random.uniform(k_p, (batch, num_prop), jnp.float32)
    eps_z = jax.random.normal(k_ez, (batch, latent_dim), jnp.float32)
    eps_w = jax.random.normal(k_ew, (batch, latent_dim), jnp.float32)

    fwd = jax.jit(functools.partial(control_vae_forward,
                                    img_size=img_size, latent_dim=latent_dim,
                                    use_pallas=True))
    out = fwd(params, x, p, eps_z, eps_w)
    (reconstruct, latent_dist_z, latent_dist_w,
     z_sample, w_sample, p_pred) = out
    jax.block_until_ready(reconstruct)
    jax.block_until_ready(p_pred)

    # Shape checks (torch-module-equivalent outputs).
    assert reconstruct.shape == (batch,) + img_size
    assert latent_dist_z[0].shape == (batch, latent_dim)
    assert latent_dist_z[1].shape == (batch, latent_dim)
    assert latent_dist_w[0].shape == (batch, latent_dim)
    assert latent_dist_w[1].shape == (batch, latent_dim)
    assert z_sample.shape == (batch, latent_dim)
    assert w_sample.shape == (batch, latent_dim)
    assert p_pred.shape == (batch, num_prop)

    # Correctness check against the pure-JAX reference (same bf16 params).
    ref = control_vae_forward(params, x, p, eps_z, eps_w,
                              img_size=img_size, latent_dim=latent_dim,
                              use_pallas=False)
    for got, want in zip(jax.tree_util.tree_leaves(out),
                         jax.tree_util.tree_leaves(ref)):
        assert jnp.allclose(got, want, atol=3e-2, rtol=3e-2), (
            float(jnp.max(jnp.abs(got - want))))

    print("KERNEL_OK")
</pallas_src>

<mosaic_0001>
module attributes {stable_mosaic.version = 11 : i64} {
  func.func @control_vae_fused_kernel(%arg0: i32, %arg1: memref<8x1024xf32, #tpu.memory_space<vmem>>, %arg2: memref<8x128xf32, #tpu.memory_space<vmem>>, %arg3: memref<8x128xf32, #tpu.memory_space<vmem>>, %arg4: memref<8x128xf32, #tpu.memory_space<vmem>>, %arg5: memref<1024x256xbf16, #tpu.memory_space<vmem>>, %arg6: memref<1x256xf32, #tpu.memory_space<vmem>>, %arg7: memref<256x256xbf16, #tpu.memory_space<vmem>>, %arg8: memref<1x256xf32, #tpu.memory_space<vmem>>, %arg9: memref<256x128xbf16, #tpu.memory_space<vmem>>, %arg10: memref<1x128xf32, #tpu.memory_space<vmem>>, %arg11: memref<256x128xbf16, #tpu.memory_space<vmem>>, %arg12: memref<1x128xf32, #tpu.memory_space<vmem>>, %arg13: memref<1024x256xbf16, #tpu.memory_space<vmem>>, %arg14: memref<128x256xbf16, #tpu.memory_space<vmem>>, %arg15: memref<1x256xf32, #tpu.memory_space<vmem>>, %arg16: memref<256x256xbf16, #tpu.memory_space<vmem>>, %arg17: memref<1x256xf32, #tpu.memory_space<vmem>>, %arg18: memref<256x128xbf16, #tpu.memory_space<vmem>>, %arg19: memref<1x128xf32, #tpu.memory_space<vmem>>, %arg20: memref<256x128xbf16, #tpu.memory_space<vmem>>, %arg21: memref<1x128xf32, #tpu.memory_space<vmem>>, %arg22: memref<256x128xbf16, #tpu.memory_space<vmem>>, %arg23: memref<1x128xf32, #tpu.memory_space<vmem>>, %arg24: memref<128x256xbf16, #tpu.memory_space<vmem>>, %arg25: memref<128x256xbf16, #tpu.memory_space<vmem>>, %arg26: memref<1x256xf32, #tpu.memory_space<vmem>>, %arg27: memref<256x256xbf16, #tpu.memory_space<vmem>>, %arg28: memref<1x256xf32, #tpu.memory_space<vmem>>, %arg29: memref<256x1024xbf16, #tpu.memory_space<vmem>>, %arg30: memref<1x1024xf32, #tpu.memory_space<vmem>>, %arg31: memref<8x1024xf32, #tpu.memory_space<vmem>>, %arg32: memref<8x128xf32, #tpu.memory_space<vmem>>, %arg33: memref<8x128xf32, #tpu.memory_space<vmem>>, %arg34: memref<8x128xf32, #tpu.memory_space<vmem>>, %arg35: memref<8x128xf32, #tpu.memory_space<vmem>>, %arg36: memref<8x128xf32, #tpu.memory_space<vmem>>, %arg37: memref<8x128xf32, #tpu.memory_space<vmem>>, %arg38: memref<8x128xf32, #tpu.memory_space<vmem>>) attributes {dimension_semantics = [#tpu.dimension_semantics<arbitrary>], iteration_bounds = array<i64: 1>, scalar_prefetch = 0 : i64, scratch_operands = 0 : i64, tpu.core_type = #tpu.core_type<tc>, window_params = [{pipeline_mode = #tpu.pipeline_mode<synchronous>, transform_indices = @transform_0, window_bounds = array<i64: 8, 1024>}, {pipeline_mode = #tpu.pipeline_mode<synchronous>, transform_indices = @transform_1, window_bounds = array<i64: 8, 128>}, {pipeline_mode = #tpu.pipeline_mode<synchronous>, transform_indices = @transform_2, window_bounds = array<i64: 8, 128>}, {pipeline_mode = #tpu.pipeline_mode<synchronous>, transform_indices = @transform_3, window_bounds = array<i64: 8, 128>}, {pipeline_mode = #tpu.pipeline_mode<synchronous>, transform_indices = @transform_4, window_bounds = array<i64: 1024, 256>}, {pipeline_mode = #tpu.pipeline_mode<synchronous>, transform_indices = @transform_5, window_bounds = array<i64: 1, 256>}, {pipeline_mode = #tpu.pipeline_mode<synchronous>, transform_indices = @transform_6, window_bounds = array<i64: 256, 256>}, {pipeline_mode = #tpu.pipeline_mode<synchronous>, transform_indices = @transform_7, window_bounds = array<i64: 1, 256>}, {pipeline_mode = #tpu.pipeline_mode<synchronous>, transform_indices = @transform_8, window_bounds = array<i64: 256, 128>}, {pipeline_mode = #tpu.pipeline_mode<synchronous>, transform_indices = @transform_9, window_bounds = array<i64: 1, 128>}, {pipeline_mode = #tpu.pipeline_mode<synchronous>, transform_indices = @transform_10, window_bounds = array<i64: 256, 128>}, {pipeline_mode = #tpu.pipeline_mode<synchronous>, transform_indices = @transform_11, window_bounds = array<i64: 1, 128>}, {pipeline_mode = #tpu.pipeline_mode<synchronous>, transform_indices = @transform_12, window_bounds = array<i64: 1024, 256>}, {pipeline_mode = #tpu.pipeline_mode<synchronous>, transform_indices = @transform_13, window_bounds = array<i64: 128, 256>}, {pipeline_mode = #tpu.pipeline_mode<synchronous>, transform_indices = @transform_14, window_bounds = array<i64: 1, 256>}, {pipeline_mode = #tpu.pipeline_mode<synchronous>, transform_indices = @transform_15, window_bounds = array<i64: 256, 256>}, {pipeline_mode = #tpu.pipeline_mode<synchronous>, transform_indices = @transform_16, window_bounds = array<i64: 1, 256>}, {pipeline_mode = #tpu.pipeline_mode<synchronous>, transform_indices = @transform_17, window_bounds = array<i64: 256, 128>}, {pipeline_mode = #tpu.pipeline_mode<synchronous>, transform_indices = @transform_18, window_bounds = array<i64: 1, 128>}, {pipeline_mode = #tpu.pipeline_mode<synchronous>, transform_indices = @transform_19, window_bounds = array<i64: 256, 128>}, {pipeline_mode = #tpu.pipeline_mode<synchronous>, transform_indices = @transform_20, window_bounds = array<i64: 1, 128>}, {pipeline_mode = #tpu.pipeline_mode<synchronous>, transform_indices = @transform_21, window_bounds = array<i64: 256, 128>}, {pipeline_mode = #tpu.pipeline_mode<synchronous>, transform_indices = @transform_22, window_bounds = array<i64: 1, 128>}, {pipeline_mode = #tpu.pipeline_mode<synchronous>, transform_indices = @transform_23, window_bounds = array<i64: 128, 256>}, {pipeline_mode = #tpu.pipeline_mode<synchronous>, transform_indices = @transform_24, window_bounds = array<i64: 128, 256>}, {pipeline_mode = #tpu.pipeline_mode<synchronous>, transform_indices = @transform_25, window_bounds = array<i64: 1, 256>}, {pipeline_mode = #tpu.pipeline_mode<synchronous>, transform_indices = @transform_26, window_bounds = array<i64: 256, 256>}, {pipeline_mode = #tpu.pipeline_mode<synchronous>, transform_indices = @transform_27, window_bounds = array<i64: 1, 256>}, {pipeline_mode = #tpu.pipeline_mode<synchronous>, transform_indices = @transform_28, window_bounds = array<i64: 256, 1024>}, {pipeline_mode = #tpu.pipeline_mode<synchronous>, transform_indices = @transform_29, window_bounds = array<i64: 1, 1024>}, {pipeline_mode = #tpu.pipeline_mode<synchronous>, transform_indices = @transform_30, window_bounds = array<i64: 8, 1024>}, {pipeline_mode = #tpu.pipeline_mode<synchronous>, transform_indices = @transform_31, window_bounds = array<i64: 8, 128>}, {pipeline_mode = #tpu.pipeline_mode<synchronous>, transform_indices = @transform_32, window_bounds = array<i64: 8, 128>}, {pipeline_mode = #tpu.pipeline_mode<synchronous>, transform_indices = @transform_33, window_bounds = array<i64: 8, 128>}, {pipeline_mode = #tpu.pipeline_mode<synchronous>, transform_indices = @transform_34, window_bounds = array<i64: 8, 128>}, {pipeline_mode = #tpu.pipeline_mode<synchronous>, transform_indices = @transform_35, window_bounds = array<i64: 8, 128>}, {pipeline_mode = #tpu.pipeline_mode<synchronous>, transform_indices = @transform_36, window_bounds = array<i64: 8, 128>}, {pipeline_mode = #tpu.pipeline_mode<synchronous>, transform_indices = @transform_37, window_bounds = array<i64: 8, 128>}]} {
    %c0 = arith.constant 0 : index
    %c0_0 = arith.constant 0 : index
    %0 = vector.load %arg1[%c0, %c0_0] : memref<8x1024xf32, #tpu.memory_space<vmem>>, vector<8x1024xf32>
    %1 = arith.truncf %0 : vector<8x1024xf32> to vector<8x1024xbf16>
    %c0_1 = arith.constant 0 : index
    %c0_2 = arith.constant 0 : index
    %2 = vector.load %arg2[%c0_1, %c0_2] : memref<8x128xf32, #tpu.memory_space<vmem>>, vector<8x128xf32>
    %3 = arith.truncf %2 : vector<8x128xf32> to vector<8x128xbf16>
    %c0_3 = arith.constant 0 : index
    %c0_4 = arith.constant 0 : index
    %4 = vector.load %arg5[%c0_3, %c0_4] : memref<1024x256xbf16, #tpu.memory_space<vmem>>, vector<1024x256xbf16>
    %cst = arith.constant dense<0.000000e+00> : vector<8x256xf32>
    %5 = tpu.matmul %1, %4, %cst {dimension_numbers = #tpu.dot_dimension_numbers<[1], [0], [0], [1], [0, 0, 1, 1], [], []>} : vector<8x1024xbf16>, vector<1024x256xbf16>, vector<8x256xf32> -> vector<8x256xf32>
    %c0_5 = arith.constant 0 : index
    %c0_6 = arith.constant 0 : index
    %6 = vector.load %arg6[%c0_5, %c0_6] : memref<1x256xf32, #tpu.memory_space<vmem>>, vector<1x256xf32>
    %7 = vector.broadcast %6 : vector<1x256xf32> to vector<8x256xf32>
    %8 = arith.addf %5, %7 : vector<8x256xf32>
    %cst_7 = arith.constant 0.000000e+00 : f32
    %9 = vector.broadcast %cst_7 : f32 to vector<8x256xf32>
    %10 = arith.maximumf %8, %9 : vector<8x256xf32>
    %11 = arith.truncf %10 : vector<8x256xf32> to vector<8x256xbf16>
    %c0_8 = arith.constant 0 : index
    %c0_9 = arith.constant 0 : index
    %12 = vector.load %arg7[%c0_8, %c0_9] : memref<256x256xbf16, #tpu.memory_space<vmem>>, vector<256x256xbf16>
    %cst_10 = arith.constant dense<0.000000e+00> : vector<8x256xf32>
    %13 = tpu.matmul %11, %12, %cst_10 {dimension_numbers = #tpu.dot_dimension_numbers<[1], [0], [0], [1], [0, 0, 1, 1], [], []>} : vector<8x256xbf16>, vector<256x256xbf16>, vector<8x256xf32> -> vector<8x256xf32>
    %c0_11 = arith.constant 0 : index
    %c0_12 = arith.constant 0 : index
    %14 = vector.load %arg8[%c0_11, %c0_12] : memref<1x256xf32, #tpu.memory_space<vmem>>, vector<1x256xf32>
    %15 = vector.broadcast %14 : vector<1x256xf32> to vector<8x256xf32>
    %16 = arith.addf %13, %15 : vector<8x256xf32>
    %cst_13 = arith.constant 0.000000e+00 : f32
    %17 = vector.broadcast %cst_13 : f32 to vector<8x256xf32>
    %18 = arith.maximumf %16, %17 : vector<8x256xf32>
    %19 = arith.truncf %18 : vector<8x256xf32> to vector<8x256xbf16>
    %c0_14 = arith.constant 0 : index
    %c0_15 = arith.constant 0 : index
    %20 = vector.load %arg9[%c0_14, %c0_15] : memref<256x128xbf16, #tpu.memory_space<vmem>>, vector<256x128xbf16>
    %cst_16 = arith.constant dense<0.000000e+00> : vector<8x128xf32>
    %21 = tpu.matmul %19, %20, %cst_16 {dimension_numbers = #tpu.dot_dimension_numbers<[1], [0], [0], [1], [0, 0, 1, 1], [], []>} : vector<8x256xbf16>, vector<256x128xbf16>, vector<8x128xf32> -> vector<8x128xf32>
    %c0_17 = arith.constant 0 : index
    %c0_18 = arith.constant 0 : index
    %22 = vector.load %arg10[%c0_17, %c0_18] : memref<1x128xf32, #tpu.memory_space<vmem>>, vector<1x128xf32>
    %23 = vector.broadcast %22 : vector<1x128xf32> to vector<8x128xf32>
    %24 = arith.addf %21, %23 : vector<8x128xf32>
    %c0_19 = arith.constant 0 : index
    %c0_20 = arith.constant 0 : index
    %25 = vector.load %arg11[%c0_19, %c0_20] : memref<256x128xbf16, #tpu.memory_space<vmem>>, vector<256x128xbf16>
    %cst_21 = arith.constant dense<0.000000e+00> : vector<8x128xf32>
    %26 = tpu.matmul %19, %25, %cst_21 {dimension_numbers = #tpu.dot_dimension_numbers<[1], [0], [0], [1], [0, 0, 1, 1], [], []>} : vector<8x256xbf16>, vector<256x128xbf16>, vector<8x128xf32> -> vector<8x128xf32>
    %c0_22 = arith.constant 0 : index
    %c0_23 = arith.constant 0 : index
    %27 = vector.load %arg12[%c0_22, %c0_23] : memref<1x128xf32, #tpu.memory_space<vmem>>, vector<1x128xf32>
    %28 = vector.broadcast %27 : vector<1x128xf32> to vector<8x128xf32>
    %29 = arith.addf %26, %28 : vector<8x128xf32>
    %c0_24 = arith.constant 0 : index
    %c0_25 = arith.constant 0 : index
    %30 = vector.load %arg32[%c0_24, %c0_25] : memref<8x128xf32, #tpu.memory_space<vmem>>, vector<8x128xf32>
    tpu.vector_store %arg32[%c0_24, %c0_25], %24 {strides = array<i32>} : memref<8x128xf32, #tpu.memory_space<vmem>>, vector<8x128xf32>,
    %c0_26 = arith.constant 0 : index
    %c0_27 = arith.constant 0 : index
    %31 = vector.load %arg33[%c0_26, %c0_27] : memref<8x128xf32, #tpu.memory_space<vmem>>, vector<8x128xf32>
    tpu.vector_store %arg33[%c0_26, %c0_27], %29 {strides = array<i32>} : memref<8x128xf32, #tpu.memory_space<vmem>>, vector<8x128xf32>,
    %c0_28 = arith.constant 0 : index
    %c0_29 = arith.constant 0 : index
    %32 = vector.load %arg13[%c0_28, %c0_29] : memref<1024x256xbf16, #tpu.memory_space<vmem>>, vector<1024x256xbf16>
    %cst_30 = arith.constant dense<0.000000e+00> : vector<8x256xf32>
    %33 = tpu.matmul %1, %32, %cst_30 {dimension_numbers = #tpu.dot_dimension_numbers<[1], [0], [0], [1], [0, 0, 1, 1], [], []>} : vector<8x1024xbf16>, vector<1024x256xbf16>, vector<8x256xf32> -> vector<8x256xf32>
    %c0_31 = arith.constant 0 : index
    %c0_32 = arith.constant 0 : index
    %34 = vector.load %arg14[%c0_31, %c0_32] : memref<128x256xbf16, #tpu.memory_space<vmem>>, vector<128x256xbf16>
    %cst_33 = arith.constant dense<0.000000e+00> : vector<8x256xf32>
    %35 = tpu.matmul %3, %34, %cst_33 {dimension_numbers = #tpu.dot_dimension_numbers<[1], [0], [0], [1], [0, 0, 1, 1], [], []>} : vector<8x128xbf16>, vector<128x256xbf16>, vector<8x256xf32> -> vector<8x256xf32>
    %36 = arith.addf %33, %35 : vector<8x256xf32>
    %c0_34 = arith.constant 0 : index
    %c0_35 = arith.constant 0 : index
    %37 = vector.load %arg15[%c0_34, %c0_35] : memref<1x256xf32, #tpu.memory_space<vmem>>, vector<1x256xf32>
    %38 = vector.broadcast %37 : vector<1x256xf32> to vector<8x256xf32>
    %39 = arith.addf %36, %38 : vector<8x256xf32>
    %cst_36 = arith.constant 0.000000e+00 : f32
    %40 = vector.broadcast %cst_36 : f32 to vector<8x256xf32>
    %41 = arith.maximumf %39, %40 : vector<8x256xf32>
    %42 = arith.truncf %41 : vector<8x256xf32> to vector<8x256xbf16>
    %c0_37 = arith.constant 0 : index
    %c0_38 = arith.constant 0 : index
    %43 = vector.load %arg16[%c0_37, %c0_38] : memref<256x256xbf16, #tpu.memory_space<vmem>>, vector<256x256xbf16>
    %cst_39 = arith.constant dense<0.000000e+00> : vector<8x256xf32>
    %44 = tpu.matmul %42, %43, %cst_39 {dimension_numbers = #tpu.dot_dimension_numbers<[1], [0], [0], [1], [0, 0, 1, 1], [], []>} : vector<8x256xbf16>, vector<256x256xbf16>, vector<8x256xf32> -> vector<8x256xf32>
    %c0_40 = arith.constant 0 : index
    %c0_41 = arith.constant 0 : index
    %45 = vector.load %arg17[%c0_40, %c0_41] : memref<1x256xf32, #tpu.memory_space<vmem>>, vector<1x256xf32>
    %46 = vector.broadcast %45 : vector<1x256xf32> to vector<8x256xf32>
    %47 = arith.addf %44, %46 : vector<8x256xf32>
    %cst_42 = arith.constant 0.000000e+00 : f32
    %48 = vector.broadcast %cst_42 : f32 to vector<8x256xf32>
    %49 = arith.maximumf %47, %48 : vector<8x256xf32>
    %50 = arith.truncf %49 : vector<8x256xf32> to vector<8x256xbf16>
    %c0_43 = arith.constant 0 : index
    %c0_44 = arith.constant 0 : index
    %51 = vector.load %arg18[%c0_43, %c0_44] : memref<256x128xbf16, #tpu.memory_space<vmem>>, vector<256x128xbf16>
    %cst_45 = arith.constant dense<0.000000e+00> : vector<8x128xf32>
    %52 = tpu.matmul %50, %51, %cst_45 {dimension_numbers = #tpu.dot_dimension_numbers<[1], [0], [0], [1], [0, 0, 1, 1], [], []>} : vector<8x256xbf16>, vector<256x128xbf16>, vector<8x128xf32> -> vector<8x128xf32>
    %c0_46 = arith.constant 0 : index
    %c0_47 = arith.constant 0 : index
    %53 = vector.load %arg19[%c0_46, %c0_47] : memref<1x128xf32, #tpu.memory_space<vmem>>, vector<1x128xf32>
    %54 = vector.broadcast %53 : vector<1x128xf32> to vector<8x128xf32>
    %55 = arith.addf %52, %54 : vector<8x128xf32>
    %c0_48 = arith.constant 0 : index
    %c0_49 = arith.constant 0 : index
    %56 = vector.load %arg20[%c0_48, %c0_49] : memref<256x128xbf16, #tpu.memory_space<vmem>>, vector<256x128xbf16>
    %cst_50 = arith.constant dense<0.000000e+00> : vector<8x128xf32>
    %57 = tpu.matmul %50, %56, %cst_50 {dimension_numbers = #tpu.dot_dimension_numbers<[1], [0], [0], [1], [0, 0, 1, 1], [], []>} : vector<8x256xbf16>, vector<256x128xbf16>, vector<8x128xf32> -> vector<8x128xf32>
    %c0_51 = arith.constant 0 : index
    %c0_52 = arith.constant 0 : index
    %58 = vector.load %arg21[%c0_51, %c0_52] : memref<1x128xf32, #tpu.memory_space<vmem>>, vector<1x128xf32>
    %59 = vector.broadcast %58 : vector<1x128xf32> to vector<8x128xf32>
    %60 = arith.addf %57, %59 : vector<8x128xf32>
    %c0_53 = arith.constant 0 : index
    %c0_54 = arith.constant 0 : index
    %61 = vector.load %arg34[%c0_53, %c0_54] : memref<8x128xf32, #tpu.memory_space<vmem>>, vector<8x128xf32>
    tpu.vector_store %arg34[%c0_53, %c0_54], %55 {strides = array<i32>} : memref<8x128xf32, #tpu.memory_space<vmem>>, vector<8x128xf32>,
    %c0_55 = arith.constant 0 : index
    %c0_56 = arith.constant 0 : index
    %62 = vector.load %arg35[%c0_55, %c0_56] : memref<8x128xf32, #tpu.memory_space<vmem>>, vector<8x128xf32>
    tpu.vector_store %arg35[%c0_55, %c0_56], %60 {strides = array<i32>} : memref<8x128xf32, #tpu.memory_space<vmem>>, vector<8x128xf32>,
    %c0_57 = arith.constant 0 : index
    %c0_58 = arith.constant 0 : index
    %63 = vector.load %arg22[%c0_57, %c0_58] : memref<256x128xbf16, #tpu.memory_space<vmem>>, vector<256x128xbf16>
    %cst_59 = arith.constant dense<0.000000e+00> : vector<8x128xf32>
    %64 = tpu.matmul %50, %63, %cst_59 {dimension_numbers = #tpu.dot_dimension_numbers<[1], [0], [0], [1], [0, 0, 1, 1], [], []>} : vector<8x256xbf16>, vector<256x128xbf16>, vector<8x128xf32> -> vector<8x128xf32>
    %c0_60 = arith.constant 0 : index
    %c0_61 = arith.constant 0 : index
    %65 = vector.load %arg23[%c0_60, %c0_61] : memref<1x128xf32, #tpu.memory_space<vmem>>, vector<1x128xf32>
    %66 = vector.broadcast %65 : vector<1x128xf32> to vector<8x128xf32>
    %67 = arith.addf %64, %66 : vector<8x128xf32>
    %68 = math.absf %67 : vector<8x128xf32>
    %cst_62 = arith.constant 0.000000e+00 : f32
    %69 = vector.broadcast %cst_62 : f32 to vector<8x128xf32>
    %70 = arith.subf %69, %68 : vector<8x128xf32>
    %71 = math.exp %70 : vector<8x128xf32>
    %cst_63 = arith.constant 1.000000e+00 : f32
    %72 = vector.broadcast %cst_63 : f32 to vector<8x128xf32>
    %73 = arith.addf %72, %71 : vector<8x128xf32>
    %74 = tpu.reciprocal %73 {approx = true} : vector<8x128xf32> -> vector<8x128xf32>
    %cst_64 = arith.constant 0.000000e+00 : f32
    %75 = vector.broadcast %cst_64 : f32 to vector<8x128xf32>
    %76 = arith.cmpf oge, %67, %75 : vector<8x128xf32>
    %77 = arith.mulf %71, %74 : vector<8x128xf32>
    %78 = arith.select %76, %74, %77 : vector<8x128xi1>, vector<8x128xf32>
    %c0_65 = arith.constant 0 : index
    %c0_66 = arith.constant 0 : index
    %79 = vector.load %arg38[%c0_65, %c0_66] : memref<8x128xf32, #tpu.memory_space<vmem>>, vector<8x128xf32>
    tpu.vector_store %arg38[%c0_65, %c0_66], %78 {strides = array<i32>} : memref<8x128xf32, #tpu.memory_space<vmem>>, vector<8x128xf32>,
    %cst_67 = arith.constant 5.000000e-01 : f32
    %80 = vector.broadcast %cst_67 : f32 to vector<8x128xf32>
    %81 = arith.mulf %80, %29 : vector<8x128xf32>
    %82 = math.exp %81 : vector<8x128xf32>
    %c0_68 = arith.constant 0 : index
    %c0_69 = arith.constant 0 : index
    %83 = vector.load %arg3[%c0_68, %c0_69] : memref<8x128xf32, #tpu.memory_space<vmem>>, vector<8x128xf32>
    %84 = arith.mulf %82, %83 : vector<8x128xf32>
    %85 = arith.addf %24, %84 : vector<8x128xf32>
    %cst_70 = arith.constant 5.000000e-01 : f32
    %86 = vector.broadcast %cst_70 : f32 to vector<8x128xf32>
    %87 = arith.mulf %86, %60 : vector<8x128xf32>
    %88 = math.exp %87 : vector<8x128xf32>
    %c0_71 = arith.constant 0 : index
    %c0_72 = arith.constant 0 : index
    %89 = vector.load %arg4[%c0_71, %c0_72] : memref<8x128xf32, #tpu.memory_space<vmem>>, vector<8x128xf32>
    %90 = arith.mulf %88, %89 : vector<8x128xf32>
    %91 = arith.addf %55, %90 : vector<8x128xf32>
    %c0_73 = arith.constant 0 : index
    %c0_74 = arith.constant 0 : index
    %92 = vector.load %arg36[%c0_73, %c0_74] : memref<8x128xf32, #tpu.memory_space<vmem>>, vector<8x128xf32>
    tpu.vector_store %arg36[%c0_73, %c0_74], %85 {strides = array<i32>} : memref<8x128xf32, #tpu.memory_space<vmem>>, vector<8x128xf32>,
    %c0_75 = arith.constant 0 : index
    %c0_76 = arith.constant 0 : index
    %93 = vector.load %arg37[%c0_75, %c0_76] : memref<8x128xf32, #tpu.memory_space<vmem>>, vector<8x128xf32>
    tpu.vector_store %arg37[%c0_75, %c0_76], %91 {strides = array<i32>} : memref<8x128xf32, #tpu.memory_space<vmem>>, vector<8x128xf32>,
    %94 = arith.truncf %85 : vector<8x128xf32> to vector<8x128xbf16>
    %c0_77 = arith.constant 0 : index
    %c0_78 = arith.constant 0 : index
    %95 = vector.load %arg24[%c0_77, %c0_78] : memref<128x256xbf16, #tpu.memory_space<vmem>>, vector<128x256xbf16>
    %cst_79 = arith.constant dense<0.000000e+00> : vector<8x256xf32>
    %96 = tpu.matmul %94, %95, %cst_79 {dimension_numbers = #tpu.dot_dimension_numbers<[1], [0], [0], [1], [0, 0, 1, 1], [], []>} : vector<8x128xbf16>, vector<128x256xbf16>, vector<8x256xf32> -> vector<8x256xf32>
    %97 = arith.truncf %91 : vector<8x128xf32> to vector<8x128xbf16>
    %c0_80 = arith.constant 0 : index
    %c0_81 = arith.constant 0 : index
    %98 = vector.load %arg25[%c0_80, %c0_81] : memref<128x256xbf16, #tpu.memory_space<vmem>>, vector<128x256xbf16>
    %cst_82 = arith.constant dense<0.000000e+00> : vector<8x256xf32>
    %99 = tpu.matmul %97, %98, %cst_82 {dimension_numbers = #tpu.dot_dimension_numbers<[1], [0], [0], [1], [0, 0, 1, 1], [], []>} : vector<8x128xbf16>, vector<128x256xbf16>, vector<8x256xf32> -> vector<8x256xf32>
    %100 = arith.addf %96, %99 : vector<8x256xf32>
    %c0_83 = arith.constant 0 : index
    %c0_84 = arith.constant 0 : index
    %101 = vector.load %arg26[%c0_83, %c0_84] : memref<1x256xf32, #tpu.memory_space<vmem>>, vector<1x256xf32>
    %102 = vector.broadcast %101 : vector<1x256xf32> to vector<8x256xf32>
    %103 = arith.addf %100, %102 : vector<8x256xf32>
    %cst_85 = arith.constant 0.000000e+00 : f32
    %104 = vector.broadcast %cst_85 : f32 to vector<8x256xf32>
    %105 = arith.maximumf %103, %104 : vector<8x256xf32>
    %106 = arith.truncf %105 : vector<8x256xf32> to vector<8x256xbf16>
    %c0_86 = arith.constant 0 : index
    %c0_87 = arith.constant 0 : index
    %107 = vector.load %arg27[%c0_86, %c0_87] : memref<256x256xbf16, #tpu.memory_space<vmem>>, vector<256x256xbf16>
    %cst_88 = arith.constant dense<0.000000e+00> : vector<8x256xf32>
    %108 = tpu.matmul %106, %107, %cst_88 {dimension_numbers = #tpu.dot_dimension_numbers<[1], [0], [0], [1], [0, 0, 1, 1], [], []>} : vector<8x256xbf16>, vector<256x256xbf16>, vector<8x256xf32> -> vector<8x256xf32>
    %c0_89 = arith.constant 0 : index
    %c0_90 = arith.constant 0 : index
    %109 = vector.load %arg28[%c0_89, %c0_90] : memref<1x256xf32, #tpu.memory_space<vmem>>, vector<1x256xf32>
    %110 = vector.broadcast %109 : vector<1x256xf32> to vector<8x256xf32>
    %111 = arith.addf %108, %110 : vector<8x256xf32>
    %cst_91 = arith.constant 0.000000e+00 : f32
    %112 = vector.broadcast %cst_91 : f32 to vector<8x256xf32>
    %113 = arith.maximumf %111, %112 : vector<8x256xf32>
    %114 = arith.truncf %113 : vector<8x256xf32> to vector<8x256xbf16>
    %c0_92 = arith.constant 0 : index
    %c0_93 = arith.constant 0 : index
    %115 = vector.load %arg29[%c0_92, %c0_93] : memref<256x1024xbf16, #tpu.memory_space<vmem>>, vector<256x1024xbf16>
    %cst_94 = arith.constant dense<0.000000e+00> : vector<8x1024xf32>
    %116 = tpu.matmul %114, %115, %cst_94 {dimension_numbers = #tpu.dot_dimension_numbers<[1], [0], [0], [1], [0, 0, 1, 1], [], []>} : vector<8x256xbf16>, vector<256x1024xbf16>, vector<8x1024xf32> -> vector<8x1024xf32>
    %c0_95 = arith.constant 0 : index
    %c0_96 = arith.constant 0 : index
    %117 = vector.load %arg30[%c0_95, %c0_96] : memref<1x1024xf32, #tpu.memory_space<vmem>>, vector<1x1024xf32>
    %118 = vector.broadcast %117 : vector<1x1024xf32> to vector<8x1024xf32>
    %119 = arith.addf %116, %118 : vector<8x1024xf32>
    %120 = math.absf %119 : vector<8x1024xf32>
    %cst_97 = arith.constant 0.000000e+00 : f32
    %121 = vector.broadcast %cst_97 : f32 to vector<8x1024xf32>
    %122 = arith.subf %121, %120 : vector<8x1024xf32>
    %123 = math.exp %122 : vector<8x1024xf32>
    %cst_98 = arith.constant 1.000000e+00 : f32
    %124 = vector.broadcast %cst_98 : f32 to vector<8x1024xf32>
    %125 = arith.addf %124, %123 : vector<8x1024xf32>
    %126 = tpu.reciprocal %125 {approx = true} : vector<8x1024xf32> -> vector<8x1024xf32>
    %cst_99 = arith.constant 0.000000e+00 : f32
    %127 = vector.broadcast %cst_99 : f32 to vector<8x1024xf32>
    %128 = arith.cmpf oge, %119, %127 : vector<8x1024xf32>
    %129 = arith.mulf %123, %126 : vector<8x1024xf32>
    %130 = arith.select %128, %126, %129 : vector<8x1024xi1>, vector<8x1024xf32>
    %c0_100 = arith.constant 0 : index
    %c0_101 = arith.constant 0 : index
    %131 = vector.load %arg31[%c0_100, %c0_101] : memref<8x1024xf32, #tpu.memory_space<vmem>>, vector<8x1024xf32>
    tpu.vector_store %arg31[%c0_100, %c0_101], %130 {strides = array<i32>} : memref<8x1024xf32, #tpu.memory_space<vmem>>, vector<8x1024xf32>,
    return
  }
  func.func @transform_0(%arg0: i32) -> (i32, i32) {
    %c0_i32 = arith.constant 0 : i32
    %c0_i32_0 = arith.constant 0 : i32
    %c0_i32_1 = arith.constant 0 : i32
    return %c0_i32, %c0_i32_0 : i32, i32
  }
  func.func @transform_1(%arg0: i32) -> (i32, i32) {
    %c0_i32 = arith.constant 0 : i32
    %c0_i32_0 = arith.constant 0 : i32
    %c0_i32_1 = arith.constant 0 : i32
    return %c0_i32, %c0_i32_0 : i32, i32
  }
  func.func @transform_2(%arg0: i32) -> (i32, i32) {
    %c0_i32 = arith.constant 0 : i32
    %c0_i32_0 = arith.constant 0 : i32
    %c0_i32_1 = arith.constant 0 : i32
    return %c0_i32, %c0_i32_0 : i32, i32
  }
  func.func @transform_3(%arg0: i32) -> (i32, i32) {
    %c0_i32 = arith.constant 0 : i32
    %c0_i32_0 = arith.constant 0 : i32
    %c0_i32_1 = arith.constant 0 : i32
    return %c0_i32, %c0_i32_0 : i32, i32
  }
  func.func @transform_4(%arg0: i32) -> (i32, i32) {
    %c0_i32 = arith.constant 0 : i32
    %c0_i32_0 = arith.constant 0 : i32
    %c0_i32_1 = arith.constant 0 : i32
    return %c0_i32, %c0_i32_0 : i32, i32
  }
  func.func @transform_5(%arg0: i32) -> (i32, i32) {
    %c0_i32 = arith.constant 0 : i32
    %c0_i32_0 = arith.constant 0 : i32
    %c0_i32_1 = arith.constant 0 : i32
    return %c0_i32, %c0_i32_0 : i32, i32
  }
  func.func @transform_6(%arg0: i32) -> (i32, i32) {
    %c0_i32 = arith.constant 0 : i32
    %c0_i32_0 = arith.constant 0 : i32
    %c0_i32_1 = arith.constant 0 : i32
    return %c0_i32, %c0_i32_0 : i32, i32
  }
  func.func @transform_7(%arg0: i32) -> (i32, i32) {
    %c0_i32 = arith.constant 0 : i32
    %c0_i32_0 = arith.constant 0 : i32
    %c0_i32_1 = arith.constant 0 : i32
    return %c0_i32, %c0_i32_0 : i32, i32
  }
  func.func @transform_8(%arg0: i32) -> (i32, i32) {
    %c0_i32 = arith.constant 0 : i32
    %c0_i32_0 = arith.constant 0 : i32
    %c0_i32_1 = arith.constant 0 : i32
    return %c0_i32, %c0_i32_0 : i32, i32
  }
  func.func @transform_9(%arg0: i32) -> (i32, i32) {
    %c0_i32 = arith.constant 0 : i32
    %c0_i32_0 = arith.constant 0 : i32
    %c0_i32_1 = arith.constant 0 : i32
    return %c0_i32, %c0_i32_0 : i32, i32
  }
  func.func @transform_10(%arg0: i32) -> (i32, i32) {
    %c0_i32 = arith.constant 0 : i32
    %c0_i32_0 = arith.constant 0 : i32
    %c0_i32_1 = arith.constant 0 : i32
    return %c0_i32, %c0_i32_0 : i32, i32
  }
  func.func @transform_11(%arg0: i32) -> (i32, i32) {
    %c0_i32 = arith.constant 0 : i32
    %c0_i32_0 = arith.constant 0 : i32
    %c0_i32_1 = arith.constant 0 : i32
    return %c0_i32, %c0_i32_0 : i32, i32
  }
  func.func @transform_12(%arg0: i32) -> (i32, i32) {
    %c0_i32 = arith.constant 0 : i32
    %c0_i32_0 = arith.constant 0 : i32
    %c0_i32_1 = arith.constant 0 : i32
    return %c0_i32, %c0_i32_0 : i32, i32
  }
  func.func @transform_13(%arg0: i32) -> (i32, i32) {
    %c0_i32 = arith.constant 0 : i32
    %c0_i32_0 = arith.constant 0 : i32
    %c0_i32_1 = arith.constant 0 : i32
    return %c0_i32, %c0_i32_0 : i32, i32
  }
  func.func @transform_14(%arg0: i32) -> (i32, i32) {
    %c0_i32 = arith.constant 0 : i32
    %c0_i32_0 = arith.constant 0 : i32
    %c0_i32_1 = arith.constant 0 : i32
    return %c0_i32, %c0_i32_0 : i32, i32
  }
  func.func @transform_15(%arg0: i32) -> (i32, i32) {
    %c0_i32 = arith.constant 0 : i32
    %c0_i32_0 = arith.constant 0 : i32
    %c0_i32_1 = arith.constant 0 : i32
    return %c0_i32, %c0_i32_0 : i32, i32
  }
  func.func @transform_16(%arg0: i32) -> (i32, i32) {
    %c0_i32 = arith.constant 0 : i32
    %c0_i32_0 = arith.constant 0 : i32
    %c0_i32_1 = arith.constant 0 : i32
    return %c0_i32, %c0_i32_0 : i32, i32
  }
  func.func @transform_17(%arg0: i32) -> (i32, i32) {
    %c0_i32 = arith.constant 0 : i32
    %c0_i32_0 = arith.constant 0 : i32
    %c0_i32_1 = arith.constant 0 : i32
    return %c0_i32, %c0_i32_0 : i32, i32
  }
  func.func @transform_18(%arg0: i32) -> (i32, i32) {
    %c0_i32 = arith.constant 0 : i32
    %c0_i32_0 = arith.constant 0 : i32
    %c0_i32_1 = arith.constant 0 : i32
    return %c0_i32, %c0_i32_0 : i32, i32
  }
  func.func @transform_19(%arg0: i32) -> (i32, i32) {
    %c0_i32 = arith.constant 0 : i32
    %c0_i32_0 = arith.constant 0 : i32
    %c0_i32_1 = arith.constant 0 : i32
    return %c0_i32, %c0_i32_0 : i32, i32
  }
  func.func @transform_20(%arg0: i32) -> (i32, i32) {
    %c0_i32 = arith.constant 0 : i32
    %c0_i32_0 = arith.constant 0 : i32
    %c0_i32_1 = arith.constant 0 : i32
    return %c0_i32, %c0_i32_0 : i32, i32
  }
  func.func @transform_21(%arg0: i32) -> (i32, i32) {
    %c0_i32 = arith.constant 0 : i32
    %c0_i32_0 = arith.constant 0 : i32
    %c0_i32_1 = arith.constant 0 : i32
    return %c0_i32, %c0_i32_0 : i32, i32
  }
  func.func @transform_22(%arg0: i32) -> (i32, i32) {
    %c0_i32 = arith.constant 0 : i32
    %c0_i32_0 = arith.constant 0 : i32
    %c0_i32_1 = arith.constant 0 : i32
    return %c0_i32, %c0_i32_0 : i32, i32
  }
  func.func @transform_23(%arg0: i32) -> (i32, i32) {
    %c0_i32 = arith.constant 0 : i32
    %c0_i32_0 = arith.constant 0 : i32
    %c0_i32_1 = arith.constant 0 : i32
    return %c0_i32, %c0_i32_0 : i32, i32
  }
  func.func @transform_24(%arg0: i32) -> (i32, i32) {
    %c0_i32 = arith.constant 0 : i32
    %c0_i32_0 = arith.constant 0 : i32
    %c0_i32_1 = arith.constant 0 : i32
    return %c0_i32, %c0_i32_0 : i32, i32
  }
  func.func @transform_25(%arg0: i32) -> (i32, i32) {
    %c0_i32 = arith.constant 0 : i32
    %c0_i32_0 = arith.constant 0 : i32
    %c0_i32_1 = arith.constant 0 : i32
    return %c0_i32, %c0_i32_0 : i32, i32
  }
  func.func @transform_26(%arg0: i32) -> (i32, i32) {
    %c0_i32 = arith.constant 0 : i32
    %c0_i32_0 = arith.constant 0 : i32
    %c0_i32_1 = arith.constant 0 : i32
    return %c0_i32, %c0_i32_0 : i32, i32
  }
  func.func @transform_27(%arg0: i32) -> (i32, i32) {
    %c0_i32 = arith.constant 0 : i32
    %c0_i32_0 = arith.constant 0 : i32
    %c0_i32_1 = arith.constant 0 : i32
    return %c0_i32, %c0_i32_0 : i32, i32
  }
  func.func @transform_28(%arg0: i32) -> (i32, i32) {
    %c0_i32 = arith.constant 0 : i32
    %c0_i32_0 = arith.constant 0 : i32
    %c0_i32_1 = arith.constant 0 : i32
    return %c0_i32, %c0_i32_0 : i32, i32
  }
  func.func @transform_29(%arg0: i32) -> (i32, i32) {
    %c0_i32 = arith.constant 0 : i32
    %c0_i32_0 = arith.constant 0 : i32
    %c0_i32_1 = arith.constant 0 : i32
    return %c0_i32, %c0_i32_0 : i32, i32
  }
  func.func @transform_30(%arg0: i32) -> (i32, i32) {
    %c0_i32 = arith.constant 0 : i32
    %c0_i32_0 = arith.constant 0 : i32
    %c0_i32_1 = arith.constant 0 : i32
    return %c0_i32, %c0_i32_0 : i32, i32
  }
  func.func @transform_31(%arg0: i32) -> (i32, i32) {
    %c0_i32 = arith.constant 0 : i32
    %c0_i32_0 = arith.constant 0 : i32
    %c0_i32_1 = arith.constant 0 : i32
    return %c0_i32, %c0_i32_0 : i32, i32
  }
  func.func @transform_32(%arg0: i32) -> (i32, i32) {
    %c0_i32 = arith.constant 0 : i32
    %c0_i32_0 = arith.constant 0 : i32
    %c0_i32_1 = arith.constant 0 : i32
    return %c0_i32, %c0_i32_0 : i32, i32
  }
  func.func @transform_33(%arg0: i32) -> (i32, i32) {
    %c0_i32 = arith.constant 0 : i32
    %c0_i32_0 = arith.constant 0 : i32
    %c0_i32_1 = arith.constant 0 : i32
    return %c0_i32, %c0_i32_0 : i32, i32
  }
  func.func @transform_34(%arg0: i32) -> (i32, i32) {
    %c0_i32 = arith.constant 0 : i32
    %c0_i32_0 = arith.constant 0 : i32
    %c0_i32_1 = arith.constant 0 : i32
    return %c0_i32, %c0_i32_0 : i32, i32
  }
  func.func @transform_35(%arg0: i32) -> (i32, i32) {
    %c0_i32 = arith.constant 0 : i32
    %c0_i32_0 = arith.constant 0 : i32
    %c0_i32_1 = arith.constant 0 : i32
    return %c0_i32, %c0_i32_0 : i32, i32
  }
  func.func @transform_36(%arg0: i32) -> (i32, i32) {
    %c0_i32 = arith.constant 0 : i32
    %c0_i32_0 = arith.constant 0 : i32
    %c0_i32_1 = arith.constant 0 : i32
    return %c0_i32, %c0_i32_0 : i32, i32
  }
  func.func @transform_37(%arg0: i32) -> (i32, i32) {
    %c0_i32 = arith.constant 0 : i32
    %c0_i32_0 = arith.constant 0 : i32
    %c0_i32_1 = arith.constant 0 : i32
    return %c0_i32, %c0_i32_0 : i32, i32
  }
}

</mosaic_0001>

<llo_original>
// kernel: control_vae_forward.1
$region0: #{control_vae_forward.1}
  #allocation0 [shape = 'u32[]', space=smem, size = 0x4, offset = 0x4, fixed_abs, tag = 'smem constant byte address 0x4 - core index']
  #allocation1 [shape = 'u32[144,128]{1,0:T(1,128)}', space=vmem, size = 0x12000, scoped, tag = 'internal scratch']
  %s0 = inlined_call_operand.smem [shape: u32[38], index: -1, kind: input, shape index: {}]
  %s1 = sld [smem:[%s0]]
  %s2 = scalar_lea.smem %s0, 1
  %s3 = sld [smem:[%s2]]
  %s4 = scalar_lea.smem %s0, 2
  %s5 = sld [smem:[%s4]]
  %s6 = scalar_lea.smem %s0, 3
  %s7 = sld [smem:[%s6]]
  %s8 = scalar_lea.smem %s0, 4
  %s9 = sld [smem:[%s8]]
  %s10 = scalar_lea.smem %s0, 5
  %s11 = sld [smem:[%s10]]
  %s12 = scalar_lea.smem %s0, 6
  %s13 = sld [smem:[%s12]]
  %s14 = scalar_lea.smem %s0, 7
  %s15 = sld [smem:[%s14]]
  %s16 = scalar_lea.smem %s0, 8
  %s17 = sld [smem:[%s16]]
  %s18 = scalar_lea.smem %s0, 9
  %s19 = sld [smem:[%s18]]
  %s20 = scalar_lea.smem %s0, 10
  %s21 = sld [smem:[%s20]]
  %s22 = scalar_lea.smem %s0, 11
  %s23 = sld [smem:[%s22]]
  %s24 = scalar_lea.smem %s0, 12
  %s25 = sld [smem:[%s24]]
  %s26 = scalar_lea.smem %s0, 13
  %s27 = sld [smem:[%s26]]
  %s28 = scalar_lea.smem %s0, 14
  %s29 = sld [smem:[%s28]]
  %s30 = scalar_lea.smem %s0, 15
  %s31 = sld [smem:[%s30]]
  %s32 = scalar_lea.smem %s0, 16
  %s33 = sld [smem:[%s32]]
  %s34 = scalar_lea.smem %s0, 17
  %s35 = sld [smem:[%s34]]
  %s36 = scalar_lea.smem %s0, 18
  %s37 = sld [smem:[%s36]]
  %s38 = scalar_lea.smem %s0, 19
  %s39 = sld [smem:[%s38]]
  %s40 = scalar_lea.smem %s0, 20
  %s41 = sld [smem:[%s40]]
  %s42 = scalar_lea.smem %s0, 21
  %s43 = sld [smem:[%s42]]
  %s44 = scalar_lea.smem %s0, 22
  %s45 = sld [smem:[%s44]]
  %s46 = scalar_lea.smem %s0, 23
  %s47 = sld [smem:[%s46]]
  %s48 = scalar_lea.smem %s0, 24
  %s49 = sld [smem:[%s48]]
  %s50 = scalar_lea.smem %s0, 25
  %s51 = sld [smem:[%s50]]
  %s52 = scalar_lea.smem %s0, 26
  %s53 = sld [smem:[%s52]]
  %s54 = scalar_lea.smem %s0, 27
  %s55 = sld [smem:[%s54]]
  %s56 = scalar_lea.smem %s0, 28
  %s57 = sld [smem:[%s56]]
  %s58 = scalar_lea.smem %s0, 29
  %s59 = sld [smem:[%s58]]
  %s60 = scalar_lea.smem %s0, 30
  %s61 = sld [smem:[%s60]]
  %s62 = scalar_lea.smem %s0, 31
  %s63 = sld [smem:[%s62]]
  %s64 = scalar_lea.smem %s0, 32
  %s65 = sld [smem:[%s64]]
  %s66 = scalar_lea.smem %s0, 33
  %s67 = sld [smem:[%s66]]
  %s68 = scalar_lea.smem %s0, 34
  %s69 = sld [smem:[%s68]]
  %s70 = scalar_lea.smem %s0, 35
  %s71 = sld [smem:[%s70]]
  %s72 = scalar_lea.smem %s0, 36
  %s73 = sld [smem:[%s72]]
  %s74 = scalar_lea.smem %s0, 37
  %s75 = sld [smem:[%s74]]
  %76 = xla_tuple %s61, %s63, %s65, %s67, %s69, %s71, %s73, %s75
  %s77 = sld [smem:[#allocation0]]
  $region250: #{control_vae_forward.1} parent=0
    _
  %s79 = ssub.s32 1, %s77
  %s80 = scalar_select 0, %s79, %s77
  $region1: #{control_vae_forward.1} parent=0
    #allocation2 [shape = 'u8[524288]{0}', space=vmem, size = 0x80000, scoped, tag = 'input window, operand 4, single buffered']
    #allocation3 [shape = 's32[1]{0}', space=sflag, size = 0x4, scoped, tag = 'scoped memory for control_vae_forward.1']
    #allocation4 [shape = 'u8[65536]{0}', space=vmem, size = 0x10000, scoped, tag = 'input window, operand 8, single buffered']
    #allocation5 [shape = 's32[1]{0}', space=sflag, size = 0x4, scoped, tag = 'scoped memory for control_vae_forward.1']
    #allocation6 [shape = 'u8[65536]{0}', space=vmem, size = 0x10000, scoped, tag = 'input window, operand 10, single buffered']
    #allocation7 [shape = 'u8[524288]{0}', space=vmem, size = 0x80000, scoped, tag = 'input window, operand 12, single buffered']
    #allocation8 [shape = 's32[1]{0}', space=sflag, size = 0x4, scoped, tag = 'scoped memory for control_vae_forward.1']
    #allocation9 [shape = 'u8[65536]{0}', space=vmem, size = 0x10000, scoped, tag = 'input window, operand 13, single buffered']
    #allocation10 [shape = 'u8[131072]{0}', space=vmem, size = 0x20000, scoped, tag = 'input window, operand 15, single buffered']
    #allocation11 [shape = 's32[1]{0}', space=sflag, size = 0x4, scoped, tag = 'scoped memory for control_vae_forward.1']
    #allocation12 [shape = 'u8[65536]{0}', space=vmem, size = 0x10000, scoped, tag = 'input window, operand 17, single buffered']
    #allocation13 [shape = 'u8[512]{0}', space=vmem, size = 0x400, scoped, tag = 'input window, operand 18, single buffered']
    #allocation14 [shape = 's32[1]{0}', space=sflag, size = 0x4, scoped, tag = 'scoped memory for control_vae_forward.1']
    #allocation15 [shape = 'u8[65536]{0}', space=vmem, size = 0x10000, scoped, tag = 'input window, operand 19, single buffered']
    #allocation16 [shape = 'u8[512]{0}', space=vmem, size = 0x400, scoped, tag = 'input window, operand 20, single buffered']
    #allocation17 [shape = 's32[1]{0}', space=sflag, size = 0x4, scoped, tag = 'scoped memory for control_vae_forward.1']
    #allocation18 [shape = 'u8[65536]{0}', space=vmem, size = 0x10000, scoped, tag = 'input window, operand 21, single buffered']
    #allocation19 [shape = 'u8[512]{0}', space=vmem, size = 0x400, scoped, tag = 'input window, operand 22, single buffered']
    #allocation20 [shape = 's32[1]{0}', space=sflag, size = 0x4, scoped, tag = 'scoped memory for control_vae_forward.1']
    #allocation21 [shape = 'u8[65536]{0}', space=vmem, size = 0x10000, scoped, tag = 'input window, operand 23, single buffered']
    #allocation22 [shape = 'u8[65536]{0}', space=vmem, size = 0x10000, scoped, tag = 'input window, operand 24, single buffered']
    #allocation23 [shape = 's32[1]{0}', space=sflag, size = 0x4, scoped, tag = 'scoped memory for control_vae_forward.1']
    #allocation24 [shape = 'u8[131072]{0}', space=vmem, size = 0x20000, scoped, tag = 'input window, operand 26, single buffered']
    #allocation25 [shape = 'u8[524288]{0}', space=vmem, size = 0x80000, scoped, tag = 'input window, operand 28, single buffered']
    #allocation26 [shape = 's32[1]{0}', space=sflag, size = 0x4, scoped, tag = 'scoped memory for control_vae_forward.1']
    %81 = vsyncpa [#allocation3], 0
    %82 = vsyncpa [#allocation5], 0
    %83 = vsyncpa [#allocation8], 0
    %84 = vsyncpa [#allocation11], 0
    %85 = vsyncpa [#allocation14], 0
    %86 = vsyncpa [#allocation17], 0
    %87 = vsyncpa [#allocation20], 0
    %88 = vsyncpa [#allocation23], 0
    %89 = vsyncpa [#allocation26], 0
    // Predicated region
    $region2: #{control_vae_forward.1} parent=1 // pred_check
      _
    $region3: #{control_vae_forward.1} parent=1 // pred_check_branch
      %91 = sbr.rel (0) target = $region5
    $region4: #{control_vae_forward.1} parent=1 // pred_region
      _
    $region5: #{control_vae_forward.1} parent=1 // pred_fallthru
      _
    // Predicated region
    $region6: #{control_vae_forward.1} parent=1 // pred_check
      _
    $region7: #{control_vae_forward.1} parent=1 // pred_check_branch
      %93 = sbr.rel (0) target = $region9
    $region8: #{control_vae_forward.1} parent=1 // pred_region
      _
    $region9: #{control_vae_forward.1} parent=1 // pred_fallthru
      _
    // Predicated region
    $region10: #{control_vae_forward.1} parent=1 // pred_check
      _
    $region11: #{control_vae_forward.1} parent=1 // pred_check_branch
      %95 = sbr.rel (0) target = $region13
    $region12: #{control_vae_forward.1} parent=1 // pred_region
      _
    $region13: #{control_vae_forward.1} parent=1 // pred_fallthru
      _
    // Predicated region
    $region14: #{control_vae_forward.1} parent=1 // pred_check
      _
    $region15: #{control_vae_forward.1} parent=1 // pred_check_branch
      %97 = sbr.rel (0) target = $region17
    $region16: #{control_vae_forward.1} parent=1 // pred_region
      _
    $region17: #{control_vae_forward.1} parent=1 // pred_fallthru
      _
    // Predicated region
    $region18: #{control_vae_forward.1} parent=1 // pred_check
      _
    $region19: #{control_vae_forward.1} parent=1 // pred_check_branch
      %99 = sbr.rel (0) target = $region21
    $region20: #{control_vae_forward.1} parent=1 // pred_region
      %s101 = ssub.s32 16384, 16384
      %102 = vsyncadd [#allocation3], %s101
      %s103 = sshll.u32 [#allocation2], 4
      %s104 = int_to_ptr.vmem [resolvable:$true] %s103
      %109 = dma.hbm_to_vmem [thread:$0]  %s9, 16384, %s104, [#allocation3], 128, 128, 8
    $region21: #{control_vae_forward.1} parent=1 // pred_fallthru
      _
    // Predicated region
    $region22: #{control_vae_forward.1} parent=1 // pred_check
      _
    $region23: #{control_vae_forward.1} parent=1 // pred_check_branch
      %111 = sbr.rel (0) target = $region25
    $region24: #{control_vae_forward.1} parent=1 // pred_region
      _
    $region25: #{control_vae_forward.1} parent=1 // pred_fallthru
      _
    // Predicated region
    $region26: #{control_vae_forward.1} parent=1 // pred_check
      _
    $region27: #{control_vae_forward.1} parent=1 // pred_check_branch
      %113 = sbr.rel (0) target = $region29
    $region28: #{control_vae_forward.1} parent=1 // pred_region
      _
    $region29: #{control_vae_forward.1} parent=1 // pred_fallthru
      _
    // Predicated region
    $region30: #{control_vae_forward.1} parent=1 // pred_check
      _
    $region31: #{control_vae_forward.1} parent=1 // pred_check_branch
      %115 = sbr.rel (0) target = $region33
    $region32: #{control_vae_forward.1} parent=1 // pred_region
      _
    $region33: #{control_vae_forward.1} parent=1 // pred_fallthru
      _
    // Predicated region
    $region34: #{control_vae_forward.1} parent=1 // pred_check
      _
    $region35: #{control_vae_forward.1} parent=1 // pred_check_branch
      %117 = sbr.rel (0) target = $region37
    $region36: #{control_vae_forward.1} parent=1 // pred_region
      %s119 = ssub.s32 2048, 2048
      %120 = vsyncadd [#allocation5], %s119
      %s121 = sshll.u32 [#allocation4], 4
      %s122 = int_to_ptr.vmem [resolvable:$true] %s121
      %127 = dma.hbm_to_vmem [thread:$0]  %s17, 2048, %s122, [#allocation5], 64, 64, 4
    $region37: #{control_vae_forward.1} parent=1 // pred_fallthru
      _
    // Predicated region
    $region38: #{control_vae_forward.1} parent=1 // pred_check
      _
    $region39: #{control_vae_forward.1} parent=1 // pred_check_branch
      %129 = sbr.rel (0) target = $region41
    $region40: #{control_vae_forward.1} parent=1 // pred_region
      _
    $region41: #{control_vae_forward.1} parent=1 // pred_fallthru
      _
    // Predicated region
    $region42: #{control_vae_forward.1} parent=1 // pred_check
      _
    $region43: #{control_vae_forward.1} parent=1 // pred_check_branch
      %131 = sbr.rel (0) target = $region45
    $region44: #{control_vae_forward.1} parent=1 // pred_region
      %s133 = ssub.s32 2048, 2048
      %134 = vsyncadd [#allocation5], %s133
      %s135 = sshll.u32 [#allocation6], 4
      %s136 = int_to_ptr.vmem [resolvable:$true] %s135
      %141 = dma.hbm_to_vmem [thread:$0]  %s21, 2048, %s136, [#allocation5], 64, 64, 4
    $region45: #{control_vae_forward.1} parent=1 // pred_fallthru
      _
    // Predicated region
    $region46: #{control_vae_forward.1} parent=1 // pred_check
      _
    $region47: #{control_vae_forward.1} parent=1 // pred_check_branch
      %143 = sbr.rel (0) target = $region49
    $region48: #{control_vae_forward.1} parent=1 // pred_region
      _
    $region49: #{control_vae_forward.1} parent=1 // pred_fallthru
      _
    // Predicated region
    $region50: #{control_vae_forward.1} parent=1 // pred_check
      _
    $region51: #{control_vae_forward.1} parent=1 // pred_check_branch
      %145 = sbr.rel (0) target = $region53
    $region52: #{control_vae_forward.1} parent=1 // pred_region
      %s147 = ssub.s32 16384, 16384
      %148 = vsyncadd [#allocation8], %s147
      %s149 = sshll.u32 [#allocation7], 4
      %s150 = int_to_ptr.vmem [resolvable:$true] %s149
      %155 = dma.hbm_to_vmem [thread:$0]  %s25, 16384, %s150, [#allocation8], 128, 128, 8
    $region53: #{control_vae_forward.1} parent=1 // pred_fallthru
      _
    // Predicated region
    $region54: #{control_vae_forward.1} parent=1 // pred_check
      _
    $region55: #{control_vae_forward.1} parent=1 // pred_check_branch
      %157 = sbr.rel (0) target = $region57
    $region56: #{control_vae_forward.1} parent=1 // pred_region
      %s159 = ssub.s32 2048, 2048
      %160 = vsyncadd [#allocation8], %s159
      %s161 = sshll.u32 [#allocation9], 4
      %s162 = int_to_ptr.vmem [resolvable:$true] %s161
      %167 = dma.hbm_to_vmem [thread:$0]  %s27, 2048, %s162, [#allocation8], 128, 128, 8
    $region57: #{control_vae_forward.1} parent=1 // pred_fallthru
      _
    // Predicated region
    $region58: #{control_vae_forward.1} parent=1 // pred_check
      _
    $region59: #{control_vae_forward.1} parent=1 // pred_check_branch
      %169 = sbr.rel (0) target = $region61
    $region60: #{control_vae_forward.1} parent=1 // pred_region
      _
    $region61: #{control_vae_forward.1} parent=1 // pred_fallthru
      _
    // Predicated region
    $region62: #{control_vae_forward.1} parent=1 // pred_check
      _
    $region63: #{control_vae_forward.1} parent=1 // pred_check_branch
      %171 = sbr.rel (0) target = $region65
    $region64: #{control_vae_forward.1} parent=1 // pred_region
      %s173 = ssub.s32 4096, 4096
      %174 = vsyncadd [#allocation11], %s173
      %s175 = sshll.u32 [#allocation10], 4
      %s176 = int_to_ptr.vmem [resolvable:$true] %s175
      %181 = dma.hbm_to_vmem [thread:$0]  %s31, 4096, %s176, [#allocation11], 128, 128, 8
    $region65: #{control_vae_forward.1} parent=1 // pred_fallthru
      _
    // Predicated region
    $region66: #{control_vae_forward.1} parent=1 // pred_check
      _
    $region67: #{control_vae_forward.1} parent=1 // pred_check_branch
      %183 = sbr.rel (0) target = $region69
    $region68: #{control_vae_forward.1} parent=1 // pred_region
      _
    $region69: #{control_vae_forward.1} parent=1 // pred_fallthru
      _
    // Predicated region
    $region70: #{control_vae_forward.1} parent=1 // pred_check
      _
    $region71: #{control_vae_forward.1} parent=1 // pred_check_branch
      %185 = sbr.rel (0) target = $region73
    $region72: #{control_vae_forward.1} parent=1 // pred_region
      %s187 = ssub.s32 2048, 2048
      %188 = vsyncadd [#allocation11], %s187
      %s189 = sshll.u32 [#allocation12], 4
      %s190 = int_to_ptr.vmem [resolvable:$true] %s189
      %195 = dma.hbm_to_vmem [thread:$0]  %s35, 2048, %s190, [#allocation11], 64, 64, 4
    $region73: #{control_vae_forward.1} parent=1 // pred_fallthru
      _
    // Predicated region
    $region74: #{control_vae_forward.1} parent=1 // pred_check
      _
    $region75: #{control_vae_forward.1} parent=1 // pred_check_branch
      %197 = sbr.rel (0) target = $region77
    $region76: #{control_vae_forward.1} parent=1 // pred_region
      %s199 = ssub.s32 16, 16
      %200 = vsyncadd [#allocation14], %s199
      %s202 = sshll.u32 [#allocation13], 4
      %s203 = int_to_ptr.vmem [resolvable:$true] %s202
      %205 = dma.hbm_to_vmem [thread:$0]  %s37, 16, %s203, [#allocation14]
    $region77: #{control_vae_forward.1} parent=1 // pred_fallthru
      _
    // Predicated region
    $region78: #{control_vae_forward.1} parent=1 // pred_check
      _
    $region79: #{control_vae_forward.1} parent=1 // pred_check_branch
      %207 = sbr.rel (0) target = $region81
    $region80: #{control_vae_forward.1} parent=1 // pred_region
      %s209 = ssub.s32 2048, 2048
      %210 = vsyncadd [#allocation14], %s209
      %s211 = sshll.u32 [#allocation15], 4
      %s212 = int_to_ptr.vmem [resolvable:$true] %s211
      %217 = dma.hbm_to_vmem [thread:$0]  %s39, 2048, %s212, [#allocation14], 64, 64, 4
    $region81: #{control_vae_forward.1} parent=1 // pred_fallthru
      _
    // Predicated region
    $region82: #{control_vae_forward.1} parent=1 // pred_check
      _
    $region83: #{control_vae_forward.1} parent=1 // pred_check_branch
      %219 = sbr.rel (0) target = $region85
    $region84: #{control_vae_forward.1} parent=1 // pred_region
      %s221 = ssub.s32 16, 16
      %222 = vsyncadd [#allocation17], %s221
      %s224 = sshll.u32 [#allocation16], 4
      %s225 = int_to_ptr.vmem [resolvable:$true] %s224
      %227 = dma.hbm_to_vmem [thread:$0]  %s41, 16, %s225, [#allocation17]
    $region85: #{control_vae_forward.1} parent=1 // pred_fallthru
      _
    // Predicated region
    $region86: #{control_vae_forward.1} parent=1 // pred_check
      _
    $region87: #{control_vae_forward.1} parent=1 // pred_check_branch
      %229 = sbr.rel (0) target = $region89
    $region88: #{control_vae_forward.1} parent=1 // pred_region
      %s231 = ssub.s32 2048, 2048
      %232 = vsyncadd [#allocation17], %s231
      %s233 = sshll.u32 [#allocation18], 4
      %s234 = int_to_ptr.vmem [resolvable:$true] %s233
      %239 = dma.hbm_to_vmem [thread:$0]  %s43, 2048, %s234, [#allocation17], 64, 64, 4
    $region89: #{control_vae_forward.1} parent=1 // pred_fallthru
      _
    // Predicated region
    $region90: #{control_vae_forward.1} parent=1 // pred_check
      _
    $region91: #{control_vae_forward.1} parent=1 // pred_check_branch
      %241 = sbr.rel (0) target = $region93
    $region92: #{control_vae_forward.1} parent=1 // pred_region
      %s243 = ssub.s32 16, 16
      %244 = vsyncadd [#allocation20], %s243
      %s246 = sshll.u32 [#allocation19], 4
      %s247 = int_to_ptr.vmem [resolvable:$true] %s246
      %249 = dma.hbm_to_vmem [thread:$0]  %s45, 16, %s247, [#allocation20]
    $region93: #{control_vae_forward.1} parent=1 // pred_fallthru
      _
    // Predicated region
    $region94: #{control_vae_forward.1} parent=1 // pred_check
      _
    $region95: #{control_vae_forward.1} parent=1 // pred_check_branch
      %251 = sbr.rel (0) target = $region97
    $region96: #{control_vae_forward.1} parent=1 // pred_region
      %s253 = ssub.s32 2048, 2048
      %254 = vsyncadd [#allocation20], %s253
      %s255 = sshll.u32 [#allocation21], 4
      %s256 = int_to_ptr.vmem [resolvable:$true] %s255
      %261 = dma.hbm_to_vmem [thread:$0]  %s47, 2048, %s256, [#allocation20], 128, 128, 8
    $region97: #{control_vae_forward.1} parent=1 // pred_fallthru
      _
    // Predicated region
    $region98: #{control_vae_forward.1} parent=1 // pred_check
      _
    $region99: #{control_vae_forward.1} parent=1 // pred_check_branch
      %263 = sbr.rel (0) target = $region101
    $region100: #{control_vae_forward.1} parent=1 // pred_region
      %s265 = ssub.s32 2048, 2048
      %266 = vsyncadd [#allocation23], %s265
      %s267 = sshll.u32 [#allocation22], 4
      %s268 = int_to_ptr.vmem [resolvable:$true] %s267
      %273 = dma.hbm_to_vmem [thread:$0]  %s49, 2048, %s268, [#allocation23], 128, 128, 8
    $region101: #{control_vae_forward.1} parent=1 // pred_fallthru
      _
    // Predicated region
    $region102: #{control_vae_forward.1} parent=1 // pred_check
      _
    $region103: #{control_vae_forward.1} parent=1 // pred_check_branch
      %275 = sbr.rel (0) target = $region105
    $region104: #{control_vae_forward.1} parent=1 // pred_region
      _
    $region105: #{control_vae_forward.1} parent=1 // pred_fallthru
      _
    // Predicated region
    $region106: #{control_vae_forward.1} parent=1 // pred_check
      _
    $region107: #{control_vae_forward.1} parent=1 // pred_check_branch
      %277 = sbr.rel (0) target = $region109
    $region108: #{control_vae_forward.1} parent=1 // pred_region
      %s279 = ssub.s32 4096, 4096
      %280 = vsyncadd [#allocation23], %s279
      %s281 = sshll.u32 [#allocation24], 4
      %s282 = int_to_ptr.vmem [resolvable:$true] %s281
      %287 = dma.hbm_to_vmem [thread:$0]  %s53, 4096, %s282, [#allocation23], 128, 128, 8
    $region109: #{control_vae_forward.1} parent=1 // pred_fallthru
      _
    // Predicated region
    $region110: #{control_vae_forward.1} parent=1 // pred_check
      _
    $region111: #{control_vae_forward.1} parent=1 // pred_check_branch
      %289 = sbr.rel (0) target = $region113
    $region112: #{control_vae_forward.1} parent=1 // pred_region
      _
    $region113: #{control_vae_forward.1} parent=1 // pred_fallthru
      _
    // Predicated region
    $region114: #{control_vae_forward.1} parent=1 // pred_check
      _
    $region115: #{control_vae_forward.1} parent=1 // pred_check_branch
      %291 = sbr.rel (0) target = $region117
    $region116: #{control_vae_forward.1} parent=1 // pred_region
      %s293 = ssub.s32 16384, 16384
      %294 = vsyncadd [#allocation26], %s293
      %s295 = sshll.u32 [#allocation25], 4
      %s296 = int_to_ptr.vmem [resolvable:$true] %s295
      %301 = dma.hbm_to_vmem [thread:$0]  %s57, 16384, %s296, [#allocation26], 512, 512, 32
    $region117: #{control_vae_forward.1} parent=1 // pred_fallthru
      _
    // Predicated region
    $region118: #{control_vae_forward.1} parent=1 // pred_check
      _
    $region119: #{control_vae_forward.1} parent=1 // pred_check_branch
      %303 = sbr.rel (0) target = $region121
    $region120: #{control_vae_forward.1} parent=1 // pred_region
      _
    $region121: #{control_vae_forward.1} parent=1 // pred_fallthru
      _
    // Predicated region
    $region122: #{control_vae_forward.1} parent=1 // pred_check
      _
    $region123: #{control_vae_forward.1} parent=1 // pred_check_branch
      %305 = sbr.rel (0) target = $region125
    $region124: #{control_vae_forward.1} parent=1 // pred_region
      %306 = dma.done [#allocation3], 16384
    $region125: #{control_vae_forward.1} parent=1 // pred_fallthru
      _
    // Predicated region
    $region126: #{control_vae_forward.1} parent=1 // pred_check
      _
    $region127: #{control_vae_forward.1} parent=1 // pred_check_branch
      %308 = sbr.rel (0) target = $region129
    $region128: #{control_vae_forward.1} parent=1 // pred_region
      %309 = dma.done [#allocation5], 2048
    $region129: #{control_vae_forward.1} parent=1 // pred_fallthru
      _
    // Predicated region
    $region130: #{control_vae_forward.1} parent=1 // pred_check
      _
    $region131: #{control_vae_forward.1} parent=1 // pred_check_branch
      %311 = sbr.rel (0) target = $region133
    $region132: #{control_vae_forward.1} parent=1 // pred_region
      %312 = dma.done [#allocation5], 2048
    $region133: #{control_vae_forward.1} parent=1 // pred_fallthru
      _
    // Predicated region
    $region134: #{control_vae_forward.1} parent=1 // pred_check
      _
    $region135: #{control_vae_forward.1} parent=1 // pred_check_branch
      %314 = sbr.rel (0) target = $region137
    $region136: #{control_vae_forward.1} parent=1 // pred_region
      %315 = dma.done [#allocation8], 16384
    $region137: #{control_vae_forward.1} parent=1 // pred_fallthru
      _
    // Predicated region
    $region138: #{control_vae_forward.1} parent=1 // pred_check
      _
    $region139: #{control_vae_forward.1} parent=1 // pred_check_branch
      %317 = sbr.rel (0) target = $region141
    $region140: #{control_vae_forward.1} parent=1 // pred_region
      %318 = dma.done [#allocation8], 2048
    $region141: #{control_vae_forward.1} parent=1 // pred_fallthru
      _
    // Predicated region
    $region142: #{control_vae_forward.1} parent=1 // pred_check
      _
    $region143: #{control_vae_forward.1} parent=1 // pred_check_branch
      %320 = sbr.rel (0) target = $region145
    $region144: #{control_vae_forward.1} parent=1 // pred_region
      %321 = dma.done [#allocation11], 4096
    $region145: #{control_vae_forward.1} parent=1 // pred_fallthru
      _
    // Predicated region
    $region146: #{control_vae_forward.1} parent=1 // pred_check
      _
    $region147: #{control_vae_forward.1} parent=1 // pred_check_branch
      %323 = sbr.rel (0) target = $region149
    $region148: #{control_vae_forward.1} parent=1 // pred_region
      %324 = dma.done [#allocation11], 2048
    $region149: #{control_vae_forward.1} parent=1 // pred_fallthru
      _
    // Predicated region
    $region150: #{control_vae_forward.1} parent=1 // pred_check
      _
    $region151: #{control_vae_forward.1} parent=1 // pred_check_branch
      %326 = sbr.rel (0) target = $region153
    $region152: #{control_vae_forward.1} parent=1 // pred_region
      %327 = dma.done [#allocation14], 16
    $region153: #{control_vae_forward.1} parent=1 // pred_fallthru
      _
    // Predicated region
    $region154: #{control_vae_forward.1} parent=1 // pred_check
      _
    $region155: #{control_vae_forward.1} parent=1 // pred_check_branch
      %329 = sbr.rel (0) target = $region157
    $region156: #{control_vae_forward.1} parent=1 // pred_region
      %330 = dma.done [#allocation14], 2048
    $region157: #{control_vae_forward.1} parent=1 // pred_fallthru
      _
    // Predicated region
    $region158: #{control_vae_forward.1} parent=1 // pred_check
      _
    $region159: #{control_vae_forward.1} parent=1 // pred_check_branch
      %332 = sbr.rel (0) target = $region161
    $region160: #{control_vae_forward.1} parent=1 // pred_region
      %333 = dma.done [#allocation17], 16
    $region161: #{control_vae_forward.1} parent=1 // pred_fallthru
      _
    // Predicated region
    $region162: #{control_vae_forward.1} parent=1 // pred_check
      _
    $region163: #{control_vae_forward.1} parent=1 // pred_check_branch
      %335 = sbr.rel (0) target = $region165
    $region164: #{control_vae_forward.1} parent=1 // pred_region
      %336 = dma.done [#allocation17], 2048
    $region165: #{control_vae_forward.1} parent=1 // pred_fallthru
      _
    // Predicated region
    $region166: #{control_vae_forward.1} parent=1 // pred_check
      _
    $region167: #{control_vae_forward.1} parent=1 // pred_check_branch
      %338 = sbr.rel (0) target = $region169
    $region168: #{control_vae_forward.1} parent=1 // pred_region
      %339 = dma.done [#allocation20], 16
    $region169: #{control_vae_forward.1} parent=1 // pred_fallthru
      _
    // Predicated region
    $region170: #{control_vae_forward.1} parent=1 // pred_check
      _
    $region171: #{control_vae_forward.1} parent=1 // pred_check_branch
      %341 = sbr.rel (0) target = $region173
    $region172: #{control_vae_forward.1} parent=1 // pred_region
      %342 = dma.done [#allocation20], 2048
    $region173: #{control_vae_forward.1} parent=1 // pred_fallthru
      _
    // Predicated region
    $region174: #{control_vae_forward.1} parent=1 // pred_check
      _
    $region175: #{control_vae_forward.1} parent=1 // pred_check_branch
      %344 = sbr.rel (0) target = $region177
    $region176: #{control_vae_forward.1} parent=1 // pred_region
      %345 = dma.done [#allocation23], 2048
    $region177: #{control_vae_forward.1} parent=1 // pred_fallthru
      _
    // Predicated region
    $region178: #{control_vae_forward.1} parent=1 // pred_check
      _
    $region179: #{control_vae_forward.1} parent=1 // pred_check_branch
      %347 = sbr.rel (0) target = $region181
    $region180: #{control_vae_forward.1} parent=1 // pred_region
      %348 = dma.done [#allocation23], 4096
    $region181: #{control_vae_forward.1} parent=1 // pred_fallthru
      _
    // Predicated region
    $region182: #{control_vae_forward.1} parent=1 // pred_check
      _
    $region183: #{control_vae_forward.1} parent=1 // pred_check_branch
      %350 = sbr.rel (0) target = $region185
    $region184: #{control_vae_forward.1} parent=1 // pred_region
      %351 = dma.done [#allocation26], 16384
    $region185: #{control_vae_forward.1} parent=1 // pred_fallthru
      _
    %v353 = vld [vmem:[%s1] sm:$0xff]
    %v354 = vld [vmem:[%s1 + $0x8] sm:$0xff]
    %v355 = vld [vmem:[%s1 + $0x10] sm:$0xff]
    %v356 = vld [vmem:[%s1 + $0x18] sm:$0xff]
    %v357 = vld [vmem:[%s1 + $0x20] sm:$0xff]
    %v358 = vld [vmem:[%s1 + $0x28] sm:$0xff]
    %v359 = vld [vmem:[%s1 + $0x30] sm:$0xff]
    %v360 = vld [vmem:[%s1 + $0x38] sm:$0xff]
    %v361 = vpack.c.bf16 %v353, %v353
    %v362 = vpack.c.bf16 %v354, %v354
    %v363 = vpack.c.bf16 %v355, %v355
    %v364 = vpack.c.bf16 %v356, %v356
    %v365 = vpack.c.bf16 %v357, %v357
    %v366 = vpack.c.bf16 %v358, %v358
    %v367 = vpack.c.bf16 %v359, %v359
    %v368 = vpack.c.bf16 %v360, %v360
    %v369 = vld [vmem:[%s3] sm:$0xff]
    %v370 = vpack.c.bf16 %v369, %v369
    %v371 = vld [vmem:[#allocation2] sm:$0xff]
    %v372 = vld [vmem:[#allocation2 + $0x8] sm:$0xff]
    %v373 = vld [vmem:[#allocation2 + $0x10] sm:$0xff]
    %v374 = vld [vmem:[#allocation2 + $0x18] sm:$0xff]
    %v375 = vld [vmem:[#allocation2 + $0x20] sm:$0xff]
    %v376 = vld [vmem:[#allocation2 + $0x28] sm:$0xff]
    %v377 = vld [vmem:[#allocation2 + $0x30] sm:$0xff]
    %v378 = vld [vmem:[#allocation2 + $0x38] sm:$0xff]
    %v379 = vld [vmem:[#allocation2 + $0x40] sm:$0xff]
    %v380 = vld [vmem:[#allocation2 + $0x48] sm:$0xff]
    %v381 = vld [vmem:[#allocation2 + $0x50] sm:$0xff]
    %v382 = vld [vmem:[#allocation2 + $0x58] sm:$0xff]
    %v383 = vld [vmem:[#allocation2 + $0x60] sm:$0xff]
    %v384 = vld [vmem:[#allocation2 + $0x68] sm:$0xff]
    %v385 = vld [vmem:[#allocation2 + $0x70] sm:$0xff]
    %v386 = vld [vmem:[#allocation2 + $0x78] sm:$0xff]
    %v387 = vld [vmem:[#allocation2 + $0x80] sm:$0xff]
    %v388 = vld [vmem:[#allocation2 + $0x88] sm:$0xff]
    %v389 = vld [vmem:[#allocation2 + $0x90] sm:$0xff]
    %v390 = vld [vmem:[#allocation2 + $0x98] sm:$0xff]
    %v391 = vld [vmem:[#allocation2 + $0xa0] sm:$0xff]
    %v392 = vld [vmem:[#allocation2 + $0xa8] sm:$0xff]
    %v393 = vld [vmem:[#allocation2 + $0xb0] sm:$0xff]
    %v394 = vld [vmem:[#allocation2 + $0xb8] sm:$0xff]
    %v395 = vld [vmem:[#allocation2 + $0xc0] sm:$0xff]
    %v396 = vld [vmem:[#allocation2 + $0xc8] sm:$0xff]
    %v397 = vld [vmem:[#allocation2 + $0xd0] sm:$0xff]
    %v398 = vld [vmem:[#allocation2 + $0xd8] sm:$0xff]
    %v399 = vld [vmem:[#allocation2 + $0xe0] sm:$0xff]
    %v400 = vld [vmem:[#allocation2 + $0xe8] sm:$0xff]
    %v401 = vld [vmem:[#allocation2 + $0xf0] sm:$0xff]
    %v402 = vld [vmem:[#allocation2 + $0xf8] sm:$0xff]
    %v403 = vld [vmem:[#allocation2 + $0x100] sm:$0xff]
    %v404 = vld [vmem:[#allocation2 + $0x108] sm:$0xff]
    %v405 = vld [vmem:[#allocation2 + $0x110] sm:$0xff]
    %v406 = vld [vmem:[#allocation2 + $0x118] sm:$0xff]
    %v407 = vld [vmem:[#allocation2 + $0x120] sm:$0xff]
    %v408 = vld [vmem:[#allocation2 + $0x128] sm:$0xff]
    %v409 = vld [vmem:[#allocation2 + $0x130] sm:$0xff]
    %v410 = vld [vmem:[#allocation2 + $0x138] sm:$0xff]
    %v411 = vld [vmem:[#allocation2 + $0x140] sm:$0xff]
    %v412 = vld [vmem:[#allocation2 + $0x148] sm:$0xff]
    %v413 = vld [vmem:[#allocation2 + $0x150] sm:$0xff]
    %v414 = vld [vmem:[#allocation2 + $0x158] sm:$0xff]
    %v415 = vld [vmem:[#allocation2 + $0x160] sm:$0xff]
    %v416 = vld [vmem:[#allocation2 + $0x168] sm:$0xff]
    %v417 = vld [vmem:[#allocation2 + $0x170] sm:$0xff]
    %v418 = vld [vmem:[#allocation2 + $0x178] sm:$0xff]
    %v419 = vld [vmem:[#allocation2 + $0x180] sm:$0xff]
    %v420 = vld [vmem:[#allocation2 + $0x188] sm:$0xff]
    %v421 = vld [vmem:[#allocation2 + $0x190] sm:$0xff]
    %v422 = vld [vmem:[#allocation2 + $0x198] sm:$0xff]
    %v423 = vld [vmem:[#allocation2 + $0x1a0] sm:$0xff]
    %v424 = vld [vmem:[#allocation2 + $0x1a8] sm:$0xff]
    %v425 = vld [vmem:[#allocation2 + $0x1b0] sm:$0xff]
    %v426 = vld [vmem:[#allocation2 + $0x1b8] sm:$0xff]
    %v427 = vld [vmem:[#allocation2 + $0x1c0] sm:$0xff]
    %v428 = vld [vmem:[#allocation2 + $0x1c8] sm:$0xff]
    %v429 = vld [vmem:[#allocation2 + $0x1d0] sm:$0xff]
    %v430 = vld [vmem:[#allocation2 + $0x1d8] sm:$0xff]
    %v431 = vld [vmem:[#allocation2 + $0x1e0] sm:$0xff]
    %v432 = vld [vmem:[#allocation2 + $0x1e8] sm:$0xff]
    %v433 = vld [vmem:[#allocation2 + $0x1f0] sm:$0xff]
    %v434 = vld [vmem:[#allocation2 + $0x1f8] sm:$0xff]
    %v435 = vld [vmem:[#allocation2 + $0x200] sm:$0xff]
    %v436 = vld [vmem:[#allocation2 + $0x208] sm:$0xff]
    %v437 = vld [vmem:[#allocation2 + $0x210] sm:$0xff]
    %v438 = vld [vmem:[#allocation2 + $0x218] sm:$0xff]
    %v439 = vld [vmem:[#allocation2 + $0x220] sm:$0xff]
    %v440 = vld [vmem:[#allocation2 + $0x228] sm:$0xff]
    %v441 = vld [vmem:[#allocation2 + $0x230] sm:$0xff]
    %v442 = vld [vmem:[#allocation2 + $0x238] sm:$0xff]
    %v443 = vld [vmem:[#allocation2 + $0x240] sm:$0xff]
    %v444 = vld [vmem:[#allocation2 + $0x248] sm:$0xff]
    %v445 = vld [vmem:[#allocation2 + $0x250] sm:$0xff]
    %v446 = vld [vmem:[#allocation2 + $0x258] sm:$0xff]
    %v447 = vld [vmem:[#allocation2 + $0x260] sm:$0xff]
    %v448 = vld [vmem:[#allocation2 + $0x268] sm:$0xff]
    %v449 = vld [vmem:[#allocation2 + $0x270] sm:$0xff]
    %v450 = vld [vmem:[#allocation2 + $0x278] sm:$0xff]
    %v451 = vld [vmem:[#allocation2 + $0x280] sm:$0xff]
    %v452 = vld [vmem:[#allocation2 + $0x288] sm:$0xff]
    %v453 = vld [vmem:[#allocation2 + $0x290] sm:$0xff]
    %v454 = vld [vmem:[#allocation2 + $0x298] sm:$0xff]
    %v455 = vld [vmem:[#allocation2 + $0x2a0] sm:$0xff]
    %v456 = vld [vmem:[#allocation2 + $0x2a8] sm:$0xff]
    %v457 = vld [vmem:[#allocation2 + $0x2b0] sm:$0xff]
    %v458 = vld [vmem:[#allocation2 + $0x2b8] sm:$0xff]
    %v459 = vld [vmem:[#allocation2 + $0x2c0] sm:$0xff]
    %v460 = vld [vmem:[#allocation2 + $0x2c8] sm:$0xff]
    %v461 = vld [vmem:[#allocation2 + $0x2d0] sm:$0xff]
    %v462 = vld [vmem:[#allocation2 + $0x2d8] sm:$0xff]
    %v463 = vld [vmem:[#allocation2 + $0x2e0] sm:$0xff]
    %v464 = vld [vmem:[#allocation2 + $0x2e8] sm:$0xff]
    %v465 = vld [vmem:[#allocation2 + $0x2f0] sm:$0xff]
    %v466 = vld [vmem:[#allocation2 + $0x2f8] sm:$0xff]
    %v467 = vld [vmem:[#allocation2 + $0x300] sm:$0xff]
    %v468 = vld [vmem:[#allocation2 + $0x308] sm:$0xff]
    %v469 = vld [vmem:[#allocation2 + $0x310] sm:$0xff]
    %v470 = vld [vmem:[#allocation2 + $0x318] sm:$0xff]
    %v471 = vld [vmem:[#allocation2 + $0x320] sm:$0xff]
    %v472 = vld [vmem:[#allocation2 + $0x328] sm:$0xff]
    %v473 = vld [vmem:[#allocation2 + $0x330] sm:$0xff]
    %v474 = vld [vmem:[#allocation2 + $0x338] sm:$0xff]
    %v475 = vld [vmem:[#allocation2 + $0x340] sm:$0xff]
    %v476 = vld [vmem:[#allocation2 + $0x348] sm:$0xff]
    %v477 = vld [vmem:[#allocation2 + $0x350] sm:$0xff]
    %v478 = vld [vmem:[#allocation2 + $0x358] sm:$0xff]
    %v479 = vld [vmem:[#allocation2 + $0x360] sm:$0xff]
    %v480 = vld [vmem:[#allocation2 + $0x368] sm:$0xff]
    %v481 = vld [vmem:[#allocation2 + $0x370] sm:$0xff]
    %v482 = vld [vmem:[#allocation2 + $0x378] sm:$0xff]
    %v483 = vld [vmem:[#allocation2 + $0x380] sm:$0xff]
    %v484 = vld [vmem:[#allocation2 + $0x388] sm:$0xff]
    %v485 = vld [vmem:[#allocation2 + $0x390] sm:$0xff]
    %v486 = vld [vmem:[#allocation2 + $0x398] sm:$0xff]
    %v487 = vld [vmem:[#allocation2 + $0x3a0] sm:$0xff]
    %v488 = vld [vmem:[#allocation2 + $0x3a8] sm:$0xff]
    %v489 = vld [vmem:[#allocation2 + $0x3b0] sm:$0xff]
    %v490 = vld [vmem:[#allocation2 + $0x3b8] sm:$0xff]
    %v491 = vld [vmem:[#allocation2 + $0x3c0] sm:$0xff]
    %v492 = vld [vmem:[#allocation2 + $0x3c8] sm:$0xff]
    %v493 = vld [vmem:[#allocation2 + $0x3d0] sm:$0xff]
    %v494 = vld [vmem:[#allocation2 + $0x3d8] sm:$0xff]
    %v495 = vld [vmem:[#allocation2 + $0x3e0] sm:$0xff]
    %v496 = vld [vmem:[#allocation2 + $0x3e8] sm:$0xff]
    %v497 = vld [vmem:[#allocation2 + $0x3f0] sm:$0xff]
    %v498 = vld [vmem:[#allocation2 + $0x3f8] sm:$0xff]
    %v499 = vld [vmem:[%s11] sm:$0x3]
    %v501 = vlaneseq
    %v502 = vshrl.u32 %v501, 7
    %v503 = vsub.s32 0, %v502
    %v504 = vrot.slane %v499, %v503
    %v505 = vlaneseq
    %v506 = vshrl.u32 %v505, 7
    %v507 = vsub.s32 1, %v506
    %v508 = vrot.slane %v499, %v507
    %v639 = vunpack.c.l.b16 %v371
    %v640 = vunpack.c.h.b16 %v371
    %v641 = vunpack.c.l.b16 %v372
    %v642 = vunpack.c.h.b16 %v372
    %v643 = vunpack.c.l.b16 %v373
    %v644 = vunpack.c.h.b16 %v373
    %v645 = vunpack.c.l.b16 %v374
    %v646 = vunpack.c.h.b16 %v374
    %v647 = vunpack.c.l.b16 %v375
    %v648 = vunpack.c.h.b16 %v375
    %v649 = vunpack.c.l.b16 %v376
    %v650 = vunpack.c.h.b16 %v376
    %v651 = vunpack.c.l.b16 %v377
    %v652 = vunpack.c.h.b16 %v377
    %v653 = vunpack.c.l.b16 %v378
    %v654 = vunpack.c.h.b16 %v378
    %v655 = vunpack.c.l.b16 %v379
    %v656 = vunpack.c.h.b16 %v379
    %v657 = vunpack.c.l.b16 %v380
    %v658 = vunpack.c.h.b16 %v380
    %v659 = vunpack.c.l.b16 %v381
    %v660 = vunpack.c.h.b16 %v381
    %v661 = vunpack.c.l.b16 %v382
    %v662 = vunpack.c.h.b16 %v382
    %v663 = vunpack.c.l.b16 %v383
    %v664 = vunpack.c.h.b16 %v383
    %v665 = vunpack.c.l.b16 %v384
    %v666 = vunpack.c.h.b16 %v384
    %v667 = vunpack.c.l.b16 %v385
    %v668 = vunpack.c.h.b16 %v385
    %v669 = vunpack.c.l.b16 %v386
    %v670 = vunpack.c.h.b16 %v386
    %v671 = vunpack.c.l.b16 %v387
    %v672 = vunpack.c.h.b16 %v387
    %v673 = vunpack.c.l.b16 %v388
    %v674 = vunpack.c.h.b16 %v388
    %v675 = vunpack.c.l.b16 %v389
    %v676 = vunpack.c.h.b16 %v389
    %v677 = vunpack.c.l.b16 %v390
    %v678 = vunpack.c.h.b16 %v390
    %v679 = vunpack.c.l.b16 %v391
    %v680 = vunpack.c.h.b16 %v391
    %v681 = vunpack.c.l.b16 %v392
    %v682 = vunpack.c.h.b16 %v392
    %v683 = vunpack.c.l.b16 %v393
    %v684 = vunpack.c.h.b16 %v393
    %v685 = vunpack.c.l.b16 %v394
    %v686 = vunpack.c.h.b16 %v394
    %v687 = vunpack.c.l.b16 %v395
    %v688 = vunpack.c.h.b16 %v395
    %v689 = vunpack.c.l.b16 %v396
    %v690 = vunpack.c.h.b16 %v396
    %v691 = vunpack.c.l.b16 %v397
    %v692 = vunpack.c.h.b16 %v397
    %v693 = vunpack.c.l.b16 %v398
    %v694 = vunpack.c.h.b16 %v398
    %v695 = vunpack.c.l.b16 %v399
    %v696 = vunpack.c.h.b16 %v399
    %v697 = vunpack.c.l.b16 %v400
    %v698 = vunpack.c.h.b16 %v400
    %v699 = vunpack.c.l.b16 %v401
    %v700 = vunpack.c.h.b16 %v401
    %v701 = vunpack.c.l.b16 %v402
    %v702 = vunpack.c.h.b16 %v402
    %v703 = vunpack.c.l.b16 %v403
    %v704 = vunpack.c.h.b16 %v403
    %v705 = vunpack.c.l.b16 %v404
    %v706 = vunpack.c.h.b16 %v404
    %v707 = vunpack.c.l.b16 %v405
    %v708 = vunpack.c.h.b16 %v405
    %v709 = vunpack.c.l.b16 %v406
    %v710 = vunpack.c.h.b16 %v406
    %v711 = vunpack.c.l.b16 %v407
    %v712 = vunpack.c.h.b16 %v407
    %v713 = vunpack.c.l.b16 %v408
    %v714 = vunpack.c.h.b16 %v408
    %v715 = vunpack.c.l.b16 %v409
    %v716 = vunpack.c.h.b16 %v409
    %v717 = vunpack.c.l.b16 %v410
    %v718 = vunpack.c.h.b16 %v410
    %v719 = vunpack.c.l.b16 %v411
    %v720 = vunpack.c.h.b16 %v411
    %v721 = vunpack.c.l.b16 %v412
    %v722 = vunpack.c.h.b16 %v412
    %v723 = vunpack.c.l.b16 %v413
    %v724 = vunpack.c.h.b16 %v413
    %v725 = vunpack.c.l.b16 %v414
    %v726 = vunpack.c.h.b16 %v414
    %v727 = vunpack.c.l.b16 %v415
    %v728 = vunpack.c.h.b16 %v415
    %v729 = vunpack.c.l.b16 %v416
    %v730 = vunpack.c.h.b16 %v416
    %v731 = vunpack.c.l.b16 %v417
    %v732 = vunpack.c.h.b16 %v417
    %v733 = vunpack.c.l.b16 %v418
    %v734 = vunpack.c.h.b16 %v418
    %v735 = vunpack.c.l.b16 %v419
    %v736 = vunpack.c.h.b16 %v419
    %v737 = vunpack.c.l.b16 %v420
    %v738 = vunpack.c.h.b16 %v420
    %v739 = vunpack.c.l.b16 %v421
    %v740 = vunpack.c.h.b16 %v421
    %v741 = vunpack.c.l.b16 %v422
    %v742 = vunpack.c.h.b16 %v422
    %v743 = vunpack.c.l.b16 %v423
    %v744 = vunpack.c.h.b16 %v423
    %v745 = vunpack.c.l.b16 %v424
    %v746 = vunpack.c.h.b16 %v424
    %v747 = vunpack.c.l.b16 %v425
    %v748 = vunpack.c.h.b16 %v425
    %v749 = vunpack.c.l.b16 %v426
    %v750 = vunpack.c.h.b16 %v426
    %v751 = vunpack.c.l.b16 %v427
    %v752 = vunpack.c.h.b16 %v427
    %v753 = vunpack.c.l.b16 %v428
    %v754 = vunpack.c.h.b16 %v428
    %v755 = vunpack.c.l.b16 %v429
    %v756 = vunpack.c.h.b16 %v429
    %v757 = vunpack.c.l.b16 %v430
    %v758 = vunpack.c.h.b16 %v430
    %v759 = vunpack.c.l.b16 %v431
    %v760 = vunpack.c.h.b16 %v431
    %v761 = vunpack.c.l.b16 %v432
    %v762 = vunpack.c.h.b16 %v432
    %v763 = vunpack.c.l.b16 %v433
    %v764 = vunpack.c.h.b16 %v433
    %v765 = vunpack.c.l.b16 %v434
    %v766 = vunpack.c.h.b16 %v434
    %v767 = vunpack.c.l.b16 %v435
    %v768 = vunpack.c.h.b16 %v435
    %v769 = vunpack.c.l.b16 %v436
    %v770 = vunpack.c.h.b16 %v436
    %v771 = vunpack.c.l.b16 %v437
    %v772 = vunpack.c.h.b16 %v437
    %v773 = vunpack.c.l.b16 %v438
    %v774 = vunpack.c.h.b16 %v438
    %v775 = vunpack.c.l.b16 %v439
    %v776 = vunpack.c.h.b16 %v439
    %v777 = vunpack.c.l.b16 %v440
    %v778 = vunpack.c.h.b16 %v440
    %v779 = vunpack.c.l.b16 %v441
    %v780 = vunpack.c.h.b16 %v441
    %v781 = vunpack.c.l.b16 %v442
    %v782 = vunpack.c.h.b16 %v442
    %v783 = vunpack.c.l.b16 %v443
    %v784 = vunpack.c.h.b16 %v443
    %v785 = vunpack.c.l.b16 %v444
    %v786 = vunpack.c.h.b16 %v444
    %v787 = vunpack.c.l.b16 %v445
    %v788 = vunpack.c.h.b16 %v445
    %v789 = vunpack.c.l.b16 %v446
    %v790 = vunpack.c.h.b16 %v446
    %v791 = vunpack.c.l.b16 %v447
    %v792 = vunpack.c.h.b16 %v447
    %v793 = vunpack.c.l.b16 %v448
    %v794 = vunpack.c.h.b16 %v448
    %v795 = vunpack.c.l.b16 %v449
    %v796 = vunpack.c.h.b16 %v449
    %v797 = vunpack.c.l.b16 %v450
    %v798 = vunpack.c.h.b16 %v450
    %v799 = vunpack.c.l.b16 %v451
    %v800 = vunpack.c.h.b16 %v451
    %v801 = vunpack.c.l.b16 %v452
    %v802 = vunpack.c.h.b16 %v452
    %v803 = vunpack.c.l.b16 %v453
    %v804 = vunpack.c.h.b16 %v453
    %v805 = vunpack.c.l.b16 %v454
    %v806 = vunpack.c.h.b16 %v454
    %v807 = vunpack.c.l.b16 %v455
    %v808 = vunpack.c.h.b16 %v455
    %v809 = vunpack.c.l.b16 %v456
    %v810 = vunpack.c.h.b16 %v456
    %v811 = vunpack.c.l.b16 %v457
    %v812 = vunpack.c.h.b16 %v457
    %v813 = vunpack.c.l.b16 %v458
    %v814 = vunpack.c.h.b16 %v458
    %v815 = vunpack.c.l.b16 %v459
    %v816 = vunpack.c.h.b16 %v459
    %v817 = vunpack.c.l.b16 %v460
    %v818 = vunpack.c.h.b16 %v460
    %v819 = vunpack.c.l.b16 %v461
    %v820 = vunpack.c.h.b16 %v461
    %v821 = vunpack.c.l.b16 %v462
    %v822 = vunpack.c.h.b16 %v462
    %v823 = vunpack.c.l.b16 %v463
    %v824 = vunpack.c.h.b16 %v463
    %v825 = vunpack.c.l.b16 %v464
    %v826 = vunpack.c.h.b16 %v464
    %v827 = vunpack.c.l.b16 %v465
    %v828 = vunpack.c.h.b16 %v465
    %v829 = vunpack.c.l.b16 %v466
    %v830 = vunpack.c.h.b16 %v466
    %v831 = vunpack.c.l.b16 %v467
    %v832 = vunpack.c.h.b16 %v467
    %v833 = vunpack.c.l.b16 %v468
    %v834 = vunpack.c.h.b16 %v468
    %v835 = vunpack.c.l.b16 %v469
    %v836 = vunpack.c.h.b16 %v469
    %v837 = vunpack.c.l.b16 %v470
    %v838 = vunpack.c.h.b16 %v470
    %v839 = vunpack.c.l.b16 %v471
    %v840 = vunpack.c.h.b16 %v471
    %v841 = vunpack.c.l.b16 %v472
    %v842 = vunpack.c.h.b16 %v472
    %v843 = vunpack.c.l.b16 %v473
    %v844 = vunpack.c.h.b16 %v473
    %v845 = vunpack.c.l.b16 %v474
    %v846 = vunpack.c.h.b16 %v474
    %v847 = vunpack.c.l.b16 %v475
    %v848 = vunpack.c.h.b16 %v475
    %v849 = vunpack.c.l.b16 %v476
    %v850 = vunpack.c.h.b16 %v476
    %v851 = vunpack.c.l.b16 %v477
    %v852 = vunpack.c.h.b16 %v477
    %v853 = vunpack.c.l.b16 %v478
    %v854 = vunpack.c.h.b16 %v478
    %v855 = vunpack.c.l.b16 %v479
    %v856 = vunpack.c.h.b16 %v479
    %v857 = vunpack.c.l.b16 %v480
    %v858 = vunpack.c.h.b16 %v480
    %v859 = vunpack.c.l.b16 %v481
    %v860 = vunpack.c.h.b16 %v481
    %v861 = vunpack.c.l.b16 %v482
    %v862 = vunpack.c.h.b16 %v482
    %v863 = vunpack.c.l.b16 %v483
    %v864 = vunpack.c.h.b16 %v483
    %v865 = vunpack.c.l.b16 %v484
    %v866 = vunpack.c.h.b16 %v484
    %v867 = vunpack.c.l.b16 %v485
    %v868 = vunpack.c.h.b16 %v485
    %v869 = vunpack.c.l.b16 %v486
    %v870 = vunpack.c.h.b16 %v486
    %v871 = vunpack.c.l.b16 %v487
    %v872 = vunpack.c.h.b16 %v487
    %v873 = vunpack.c.l.b16 %v488
    %v874 = vunpack.c.h.b16 %v488
    %v875 = vunpack.c.l.b16 %v489
    %v876 = vunpack.c.h.b16 %v489
    %v877 = vunpack.c.l.b16 %v490
    %v878 = vunpack.c.h.b16 %v490
    %v879 = vunpack.c.l.b16 %v491
    %v880 = vunpack.c.h.b16 %v491
    %v881 = vunpack.c.l.b16 %v492
    %v882 = vunpack.c.h.b16 %v492
    %v883 = vunpack.c.l.b16 %v493
    %v884 = vunpack.c.h.b16 %v493
    %v885 = vunpack.c.l.b16 %v494
    %v886 = vunpack.c.h.b16 %v494
    %v887 = vunpack.c.l.b16 %v495
    %v888 = vunpack.c.h.b16 %v495
    %v889 = vunpack.c.l.b16 %v496
    %v890 = vunpack.c.h.b16 %v496
    %v891 = vunpack.c.l.b16 %v497
    %v892 = vunpack.c.h.b16 %v497
    %v893 = vunpack.c.l.b16 %v498
    %v894 = vunpack.c.h.b16 %v498
    %v895 = vpack.c.b16 %v641, %v639
    %v896 = vpack.c.b16 %v642, %v640
    %v897 = vpack.c.b16 %v645, %v643
    %v898 = vpack.c.b16 %v646, %v644
    %v899 = vpack.c.b16 %v649, %v647
    %v900 = vpack.c.b16 %v650, %v648
    %v901 = vpack.c.b16 %v653, %v651
    %v902 = vpack.c.b16 %v654, %v652
    %v903 = vpack.c.b16 %v657, %v655
    %v904 = vpack.c.b16 %v658, %v656
    %v905 = vpack.c.b16 %v661, %v659
    %v906 = vpack.c.b16 %v662, %v660
    %v907 = vpack.c.b16 %v665, %v663
    %v908 = vpack.c.b16 %v666, %v664
    %v909 = vpack.c.b16 %v669, %v667
    %v910 = vpack.c.b16 %v670, %v668
    %v911 = vpack.c.b16 %v673, %v671
    %v912 = vpack.c.b16 %v674, %v672
    %v913 = vpack.c.b16 %v677, %v675
    %v914 = vpack.c.b16 %v678, %v676
    %v915 = vpack.c.b16 %v681, %v679
    %v916 = vpack.c.b16 %v682, %v680
    %v917 = vpack.c.b16 %v685, %v683
    %v918 = vpack.c.b16 %v686, %v684
    %v919 = vpack.c.b16 %v689, %v687
    %v920 = vpack.c.b16 %v690, %v688
    %v921 = vpack.c.b16 %v693, %v691
    %v922 = vpack.c.b16 %v694, %v692
    %v923 = vpack.c.b16 %v697, %v695
    %v924 = vpack.c.b16 %v698, %v696
    %v925 = vpack.c.b16 %v701, %v699
    %v926 = vpack.c.b16 %v702, %v700
    %v927 = vpack.c.b16 %v705, %v703
    %v928 = vpack.c.b16 %v706, %v704
    %v929 = vpack.c.b16 %v709, %v707
    %v930 = vpack.c.b16 %v710, %v708
    %v931 = vpack.c.b16 %v713, %v711
    %v932 = vpack.c.b16 %v714, %v712
    %v933 = vpack.c.b16 %v717, %v715
    %v934 = vpack.c.b16 %v718, %v716
    %v935 = vpack.c.b16 %v721, %v719
    %v936 = vpack.c.b16 %v722, %v720
    %v937 = vpack.c.b16 %v725, %v723
    %v938 = vpack.c.b16 %v726, %v724
    %v939 = vpack.c.b16 %v729, %v727
    %v940 = vpack.c.b16 %v730, %v728
    %v941 = vpack.c.b16 %v733, %v731
    %v942 = vpack.c.b16 %v734, %v732
    %v943 = vpack.c.b16 %v737, %v735
    %v944 = vpack.c.b16 %v738, %v736
    %v945 = vpack.c.b16 %v741, %v739
    %v946 = vpack.c.b16 %v742, %v740
    %v947 = vpack.c.b16 %v745, %v743
    %v948 = vpack.c.b16 %v746, %v744
    %v949 = vpack.c.b16 %v749, %v747
    %v950 = vpack.c.b16 %v750, %v748
    %v951 = vpack.c.b16 %v753, %v751
    %v952 = vpack.c.b16 %v754, %v752
    %v953 = vpack.c.b16 %v757, %v755
    %v954 = vpack.c.b16 %v758, %v756
    %v955 = vpack.c.b16 %v761, %v759
    %v956 = vpack.c.b16 %v762, %v760
    %v957 = vpack.c.b16 %v765, %v763
    %v958 = vpack.c.b16 %v766, %v764
    %v959 = vpack.c.b16 %v769, %v767
    %v960 = vpack.c.b16 %v770, %v768
    %v961 = vpack.c.b16 %v773, %v771
    %v962 = vpack.c.b16 %v774, %v772
    %v963 = vpack.c.b16 %v777, %v775
    %v964 = vpack.c.b16 %v778, %v776
    %v965 = vpack.c.b16 %v781, %v779
    %v966 = vpack.c.b16 %v782, %v780
    %v967 = vpack.c.b16 %v785, %v783
    %v968 = vpack.c.b16 %v786, %v784
    %v969 = vpack.c.b16 %v789, %v787
    %v970 = vpack.c.b16 %v790, %v788
    %v971 = vpack.c.b16 %v793, %v791
    %v972 = vpack.c.b16 %v794, %v792
    %v973 = vpack.c.b16 %v797, %v795
    %v974 = vpack.c.b16 %v798, %v796
    %v975 = vpack.c.b16 %v801, %v799
    %v976 = vpack.c.b16 %v802, %v800
    %v977 = vpack.c.b16 %v805, %v803
    %v978 = vpack.c.b16 %v806, %v804
    %v979 = vpack.c.b16 %v809, %v807
    %v980 = vpack.c.b16 %v810, %v808
    %v981 = vpack.c.b16 %v813, %v811
    %v982 = vpack.c.b16 %v814, %v812
    %v983 = vpack.c.b16 %v817, %v815
    %v984 = vpack.c.b16 %v818, %v816
    %v985 = vpack.c.b16 %v821, %v819
    %v986 = vpack.c.b16 %v822, %v820
    %v987 = vpack.c.b16 %v825, %v823
    %v988 = vpack.c.b16 %v826, %v824
    %v989 = vpack.c.b16 %v829, %v827
    %v990 = vpack.c.b16 %v830, %v828
    %v991 = vpack.c.b16 %v833, %v831
    %v992 = vpack.c.b16 %v834, %v832
    %v993 = vpack.c.b16 %v837, %v835
    %v994 = vpack.c.b16 %v838, %v836
    %v995 = vpack.c.b16 %v841, %v839
    %v996 = vpack.c.b16 %v842, %v840
    %v997 = vpack.c.b16 %v845, %v843
    %v998 = vpack.c.b16 %v846, %v844
    %v999 = vpack.c.b16 %v849, %v847
    %v1000 = vpack.c.b16 %v850, %v848
    %v1001 = vpack.c.b16 %v853, %v851
    %v1002 = vpack.c.b16 %v854, %v852
    %v1003 = vpack.c.b16 %v857, %v855
    %v1004 = vpack.c.b16 %v858, %v856
    %v1005 = vpack.c.b16 %v861, %v859
    %v1006 = vpack.c.b16 %v862, %v860
    %v1007 = vpack.c.b16 %v865, %v863
    %v1008 = vpack.c.b16 %v866, %v864
    %v1009 = vpack.c.b16 %v869, %v867
    %v1010 = vpack.c.b16 %v870, %v868
    %v1011 = vpack.c.b16 %v873, %v871
    %v1012 = vpack.c.b16 %v874, %v872
    %v1013 = vpack.c.b16 %v877, %v875
    %v1014 = vpack.c.b16 %v878, %v876
    %v1015 = vpack.c.b16 %v881, %v879
    %v1016 = vpack.c.b16 %v882, %v880
    %v1017 = vpack.c.b16 %v885, %v883
    %v1018 = vpack.c.b16 %v886, %v884
    %v1019 = vpack.c.b16 %v889, %v887
    %v1020 = vpack.c.b16 %v890, %v888
    %v1021 = vpack.c.b16 %v893, %v891
    %v1022 = vpack.c.b16 %v894, %v892
    %1151 = vmatprep.subr.bf16.mxu0 %v896
    %1152 = vmatpush1.bf16.msra.mxu0 %v895
    %1153 = vmatprep.subr.bf16.mxu0 %v898
    %1154 = vmatpush1.bf16.msra.mxu0 %v897
    %1155 = vmatprep.subr.bf16.mxu0 %v900
    %1156 = vmatpush1.bf16.msra.mxu0 %v899
    %1157 = vmatprep.subr.bf16.mxu0 %v902
    %1158 = vmatpush1.bf16.msra.mxu0 %v901
    %1159 = vmatprep.subr.bf16.mxu0 %v904
    %1160 = vmatpush1.bf16.msra.mxu0 %v903
    %1161 = vmatprep.subr.bf16.mxu0 %v906
    %1162 = vmatpush1.bf16.msra.mxu0 %v905
    %1163 = vmatprep.subr.bf16.mxu0 %v908
    %1164 = vmatpush1.bf16.msra.mxu0 %v907
    %1165 = vmatprep.subr.bf16.mxu0 %v910
    %1166 = vmatpush1.bf16.msra.mxu0 %v909
    %1167 = vmatprep.subr.bf16.mxu0 %v912
    %1168 = vmatpush1.bf16.msra.mxu0 %v911
    %1169 = vmatprep.subr.bf16.mxu0 %v914
    %1170 = vmatpush1.bf16.msra.mxu0 %v913
    %1171 = vmatprep.subr.bf16.mxu0 %v916
    %1172 = vmatpush1.bf16.msra.mxu0 %v915
    %1173 = vmatprep.subr.bf16.mxu0 %v918
    %1174 = vmatpush1.bf16.msra.mxu0 %v917
    %1175 = vmatprep.subr.bf16.mxu0 %v920
    %1176 = vmatpush1.bf16.msra.mxu0 %v919
    %1177 = vmatprep.subr.bf16.mxu0 %v922
    %1178 = vmatpush1.bf16.msra.mxu0 %v921
    %1179 = vmatprep.subr.bf16.mxu0 %v924
    %1180 = vmatpush1.bf16.msra.mxu0 %v923
    %1181 = vmatprep.subr.bf16.mxu0 %v926
    %1182 = vmatpush1.bf16.msra.mxu0 %v925
    %1183 = vmatprep.mubr.bf16.mxu0 %v362
    %1184 = vmatmul.mubr.bf16.gmra.mrb[0].mxu0 %v361
    %v1185 = vpop.f32.mrb[0].mxu0
    %v1186 = vadd.f32 %v504, %v1185
    %v1187 = vpop.f32.mrb[0].mxu0
    %v1188 = vadd.f32 %v508, %v1187
    %v1189 = vpop.f32.mrb[0].mxu0
    %v1190 = vpop.f32.mrb[0].mxu0
    %1191 = vdwg.mxu0
    %1192 = vmatprep.subr.bf16.mxu0 %v928
    %1193 = vmatpush1.bf16.msra.mxu0 %v927
    %1194 = vmatprep.subr.bf16.mxu0 %v930
    %1195 = vmatpush1.bf16.msra.mxu0 %v929
    %1196 = vmatprep.subr.bf16.mxu0 %v932
    %1197 = vmatpush1.bf16.msra.mxu0 %v931
    %1198 = vmatprep.subr.bf16.mxu0 %v934
    %1199 = vmatpush1.bf16.msra.mxu0 %v933
    %1200 = vmatprep.subr.bf16.mxu0 %v936
    %1201 = vmatpush1.bf16.msra.mxu0 %v935
    %1202 = vmatprep.subr.bf16.mxu0 %v938
    %1203 = vmatpush1.bf16.msra.mxu0 %v937
    %1204 = vmatprep.subr.bf16.mxu0 %v940
    %1205 = vmatpush1.bf16.msra.mxu0 %v939
    %1206 = vmatprep.subr.bf16.mxu0 %v942
    %1207 = vmatpush1.bf16.msra.mxu0 %v941
    %1208 = vmatprep.subr.bf16.mxu0 %v944
    %1209 = vmatpush1.bf16.msra.mxu0 %v943
    %1210 = vmatprep.subr.bf16.mxu0 %v946
    %1211 = vmatpush1.bf16.msra.mxu0 %v945
    %1212 = vmatprep.subr.bf16.mxu0 %v948
    %1213 = vmatpush1.bf16.msra.mxu0 %v947
    %1214 = vmatprep.subr.bf16.mxu0 %v950
    %1215 = vmatpush1.bf16.msra.mxu0 %v949
    %1216 = vmatprep.subr.bf16.mxu0 %v952
    %1217 = vmatpush1.bf16.msra.mxu0 %v951
    %1218 = vmatprep.subr.bf16.mxu0 %v954
    %1219 = vmatpush1.bf16.msra.mxu0 %v953
    %1220 = vmatprep.subr.bf16.mxu0 %v956
    %1221 = vmatpush1.bf16.msra.mxu0 %v955
    %1222 = vmatprep.subr.bf16.mxu0 %v958
    %1223 = vmatpush1.bf16.msra.mxu0 %v957
    %1224 = vmatprep.mubr.bf16.mxu0 %v364
    %1225 = vmatmul.mubr.bf16.gmra.mrb[0].mxu0 %v363
    %v1226 = vpop.f32.mrb[0].mxu0
    %v1227 = vadd.f32 %v1186, %v1226
    %v1228 = vpop.f32.mrb[0].mxu0
    %v1229 = vadd.f32 %v1188, %v1228
    %v1230 = vpop.f32.mrb[0].mxu0
    %v1231 = vpop.f32.mrb[0].mxu0
    %1232 = vdwg.mxu0
    %1233 = vmatprep.subr.bf16.mxu0 %v960
    %1234 = vmatpush1.bf16.msra.mxu0 %v959
    %1235 = vmatprep.subr.bf16.mxu0 %v962
    %1236 = vmatpush1.bf16.msra.mxu0 %v961
    %1237 = vmatprep.subr.bf16.mxu0 %v964
    %1238 = vmatpush1.bf16.msra.mxu0 %v963
    %1239 = vmatprep.subr.bf16.mxu0 %v966
    %1240 = vmatpush1.bf16.msra.mxu0 %v965
    %1241 = vmatprep.subr.bf16.mxu0 %v968
    %1242 = vmatpush1.bf16.msra.mxu0 %v967
    %1243 = vmatprep.subr.bf16.mxu0 %v970
    %1244 = vmatpush1.bf16.msra.mxu0 %v969
    %1245 = vmatprep.subr.bf16.mxu0 %v972
    %1246 = vmatpush1.bf16.msra.mxu0 %v971
    %1247 = vmatprep.subr.bf16.mxu0 %v974
    %1248 = vmatpush1.bf16.msra.mxu0 %v973
    %1249 = vmatprep.subr.bf16.mxu0 %v976
    %1250 = vmatpush1.bf16.msra.mxu0 %v975
    %1251 = vmatprep.subr.bf16.mxu0 %v978
    %1252 = vmatpush1.bf16.msra.mxu0 %v977
    %1253 = vmatprep.subr.bf16.mxu0 %v980
    %1254 = vmatpush1.bf16.msra.mxu0 %v979
    %1255 = vmatprep.subr.bf16.mxu0 %v982
    %1256 = vmatpush1.bf16.msra.mxu0 %v981
    %1257 = vmatprep.subr.bf16.mxu0 %v984
    %1258 = vmatpush1.bf16.msra.mxu0 %v983
    %1259 = vmatprep.subr.bf16.mxu0 %v986
    %1260 = vmatpush1.bf16.msra.mxu0 %v985
    %1261 = vmatprep.subr.bf16.mxu0 %v988
    %1262 = vmatpush1.bf16.msra.mxu0 %v987
    %1263 = vmatprep.subr.bf16.mxu0 %v990
    %1264 = vmatpush1.bf16.msra.mxu0 %v989
    %1265 = vmatprep.mubr.bf16.mxu0 %v366
    %1266 = vmatmul.mubr.bf16.gmra.mrb[0].mxu0 %v365
    %v1267 = vpop.f32.mrb[0].mxu0
    %v1268 = vadd.f32 %v1227, %v1267
    %v1269 = vpop.f32.mrb[0].mxu0
    %v1270 = vadd.f32 %v1229, %v1269
    %v1271 = vpop.f32.mrb[0].mxu0
    %v1272 = vpop.f32.mrb[0].mxu0
    %1273 = vdwg.mxu0
    %1274 = vmatprep.subr.bf16.mxu0 %v992
    %1275 = vmatpush1.bf16.msra.mxu0 %v991
    %1276 = vmatprep.subr.bf16.mxu0 %v994
    %1277 = vmatpush1.bf16.msra.mxu0 %v993
    %1278 = vmatprep.subr.bf16.mxu0 %v996
    %1279 = vmatpush1.bf16.msra.mxu0 %v995
    %1280 = vmatprep.subr.bf16.mxu0 %v998
    %1281 = vmatpush1.bf16.msra.mxu0 %v997
    %1282 = vmatprep.subr.bf16.mxu0 %v1000
    %1283 = vmatpush1.bf16.msra.mxu0 %v999
    %1284 = vmatprep.subr.bf16.mxu0 %v1002
    %1285 = vmatpush1.bf16.msra.mxu0 %v1001
    %1286 = vmatprep.subr.bf16.mxu0 %v1004
    %1287 = vmatpush1.bf16.msra.mxu0 %v1003
    %1288 = vmatprep.subr.bf16.mxu0 %v1006
    %1289 = vmatpush1.bf16.msra.mxu0 %v1005
    %1290 = vmatprep.subr.bf16.mxu0 %v1008
    %1291 = vmatpush1.bf16.msra.mxu0 %v1007
    %1292 = vmatprep.subr.bf16.mxu0 %v1010
    %1293 = vmatpush1.bf16.msra.mxu0 %v1009
    %1294 = vmatprep.subr.bf16.mxu0 %v1012
    %1295 = vmatpush1.bf16.msra.mxu0 %v1011
    %1296 = vmatprep.subr.bf16.mxu0 %v1014
    %1297 = vmatpush1.bf16.msra.mxu0 %v1013
    %1298 = vmatprep.subr.bf16.mxu0 %v1016
    %1299 = vmatpush1.bf16.msra.mxu0 %v1015
    %1300 = vmatprep.subr.bf16.mxu0 %v1018
    %1301 = vmatpush1.bf16.msra.mxu0 %v1017
    %1302 = vmatprep.subr.bf16.mxu0 %v1020
    %1303 = vmatpush1.bf16.msra.mxu0 %v1019
    %1304 = vmatprep.subr.bf16.mxu0 %v1022
    %1305 = vmatpush1.bf16.msra.mxu0 %v1021
    %1306 = vmatprep.mubr.bf16.mxu0 %v368
    %1307 = vmatmul.mubr.bf16.gmra.mrb[0].mxu0 %v367
    %v1308 = vpop.f32.mrb[0].mxu0
    %v1309 = vadd.f32 %v1268, %v1308
    %v1310 = vpop.f32.mrb[0].mxu0
    %v1311 = vadd.f32 %v1270, %v1310
    %v1312 = vpop.f32.mrb[0].mxu0
    %v1313 = vpop.f32.mrb[0].mxu0
    %1314 = vdwg.mxu0
    %v1315 = vmax.f32 %v1309, 0.0
    %v1316 = vmax.f32 %v1311, 0.0
    %v1317 = vpack.c.bf16 %v1315, %v1315
    %v1318 = vpack.c.bf16 %v1316, %v1316
    %v1319 = vld [vmem:[%s13] sm:$0xff]
    %v1320 = vld [vmem:[%s13 + $0x8] sm:$0xff]
    %v1321 = vld [vmem:[%s13 + $0x10] sm:$0xff]
    %v1322 = vld [vmem:[%s13 + $0x18] sm:$0xff]
    %v1323 = vld [vmem:[%s13 + $0x20] sm:$0xff]
    %v1324 = vld [vmem:[%s13 + $0x28] sm:$0xff]
    %v1325 = vld [vmem:[%s13 + $0x30] sm:$0xff]
    %v1326 = vld [vmem:[%s13 + $0x38] sm:$0xff]
    %v1327 = vld [vmem:[%s13 + $0x40] sm:$0xff]
    %v1328 = vld [vmem:[%s13 + $0x48] sm:$0xff]
    %v1329 = vld [vmem:[%s13 + $0x50] sm:$0xff]
    %v1330 = vld [vmem:[%s13 + $0x58] sm:$0xff]
    %v1331 = vld [vmem:[%s13 + $0x60] sm:$0xff]
    %v1332 = vld [vmem:[%s13 + $0x68] sm:$0xff]
    %v1333 = vld [vmem:[%s13 + $0x70] sm:$0xff]
    %v1334 = vld [vmem:[%s13 + $0x78] sm:$0xff]
    %v1335 = vld [vmem:[%s13 + $0x80] sm:$0xff]
    %v1336 = vld [vmem:[%s13 + $0x88] sm:$0xff]
    %v1337 = vld [vmem:[%s13 + $0x90] sm:$0xff]
    %v1338 = vld [vmem:[%s13 + $0x98] sm:$0xff]
    %v1339 = vld [vmem:[%s13 + $0xa0] sm:$0xff]
    %v1340 = vld [vmem:[%s13 + $0xa8] sm:$0xff]
    %v1341 = vld [vmem:[%s13 + $0xb0] sm:$0xff]
    %v1342 = vld [vmem:[%s13 + $0xb8] sm:$0xff]
    %v1343 = vld [vmem:[%s13 + $0xc0] sm:$0xff]
    %v1344 = vld [vmem:[%s13 + $0xc8] sm:$0xff]
    %v1345 = vld [vmem:[%s13 + $0xd0] sm:$0xff]
    %v1346 = vld [vmem:[%s13 + $0xd8] sm:$0xff]
    %v1347 = vld [vmem:[%s13 + $0xe0] sm:$0xff]
    %v1348 = vld [vmem:[%s13 + $0xe8] sm:$0xff]
    %v1349 = vld [vmem:[%s13 + $0xf0] sm:$0xff]
    %v1350 = vld [vmem:[%s13 + $0xf8] sm:$0xff]
    %v1351 = vld [vmem:[%s15] sm:$0x3]
    %v1353 = vlaneseq
    %v1354 = vshrl.u32 %v1353, 7
    %v1355 = vsub.s32 0, %v1354
    %v1356 = vrot.slane %v1351, %v1355
    %v1357 = vlaneseq
    %v1358 = vshrl.u32 %v1357, 7
    %v1359 = vsub.s32 1, %v1358
    %v1360 = vrot.slane %v1351, %v1359
    %v1395 = vunpack.c.l.b16 %v1319
    %v1396 = vunpack.c.h.b16 %v1319
    %v1397 = vunpack.c.l.b16 %v1320
    %v1398 = vunpack.c.h.b16 %v1320
    %v1399 = vunpack.c.l.b16 %v1321
    %v1400 = vunpack.c.h.b16 %v1321
    %v1401 = vunpack.c.l.b16 %v1322
    %v1402 = vunpack.c.h.b16 %v1322
    %v1403 = vunpack.c.l.b16 %v1323
    %v1404 = vunpack.c.h.b16 %v1323
    %v1405 = vunpack.c.l.b16 %v1324
    %v1406 = vunpack.c.h.b16 %v1324
    %v1407 = vunpack.c.l.b16 %v1325
    %v1408 = vunpack.c.h.b16 %v1325
    %v1409 = vunpack.c.l.b16 %v1326
    %v1410 = vunpack.c.h.b16 %v1326
    %v1411 = vunpack.c.l.b16 %v1327
    %v1412 = vunpack.c.h.b16 %v1327
    %v1413 = vunpack.c.l.b16 %v1328
    %v1414 = vunpack.c.h.b16 %v1328
    %v1415 = vunpack.c.l.b16 %v1329
    %v1416 = vunpack.c.h.b16 %v1329
    %v1417 = vunpack.c.l.b16 %v1330
    %v1418 = vunpack.c.h.b16 %v1330
    %v1419 = vunpack.c.l.b16 %v1331
    %v1420 = vunpack.c.h.b16 %v1331
    %v1421 = vunpack.c.l.b16 %v1332
    %v1422 = vunpack.c.h.b16 %v1332
    %v1423 = vunpack.c.l.b16 %v1333
    %v1424 = vunpack.c.h.b16 %v1333
    %v1425 = vunpack.c.l.b16 %v1334
    %v1426 = vunpack.c.h.b16 %v1334
    %v1427 = vunpack.c.l.b16 %v1335
    %v1428 = vunpack.c.h.b16 %v1335
    %v1429 = vunpack.c.l.b16 %v1336
    %v1430 = vunpack.c.h.b16 %v1336
    %v1431 = vunpack.c.l.b16 %v1337
    %v1432 = vunpack.c.h.b16 %v1337
    %v1433 = vunpack.c.l.b16 %v1338
    %v1434 = vunpack.c.h.b16 %v1338
    %v1435 = vunpack.c.l.b16 %v1339
    %v1436 = vunpack.c.h.b16 %v1339
    %v1437 = vunpack.c.l.b16 %v1340
    %v1438 = vunpack.c.h.b16 %v1340
    %v1439 = vunpack.c.l.b16 %v1341
    %v1440 = vunpack.c.h.b16 %v1341
    %v1441 = vunpack.c.l.b16 %v1342
    %v1442 = vunpack.c.h.b16 %v1342
    %v1443 = vunpack.c.l.b16 %v1343
    %v1444 = vunpack.c.h.b16 %v1343
    %v1445 = vunpack.c.l.b16 %v1344
    %v1446 = vunpack.c.h.b16 %v1344
    %v1447 = vunpack.c.l.b16 %v1345
    %v1448 = vunpack.c.h.b16 %v1345
    %v1449 = vunpack.c.l.b16 %v1346
    %v1450 = vunpack.c.h.b16 %v1346
    %v1451 = vunpack.c.l.b16 %v1347
    %v1452 = vunpack.c.h.b16 %v1347
    %v1453 = vunpack.c.l.b16 %v1348
    %v1454 = vunpack.c.h.b16 %v1348
    %v1455 = vunpack.c.l.b16 %v1349
    %v1456 = vunpack.c.h.b16 %v1349
    %v1457 = vunpack.c.l.b16 %v1350
    %v1458 = vunpack.c.h.b16 %v1350
    %v1459 = vpack.c.b16 %v1397, %v1395
    %v1460 = vpack.c.b16 %v1398, %v1396
    %v1461 = vpack.c.b16 %v1401, %v1399
    %v1462 = vpack.c.b16 %v1402, %v1400
    %v1463 = vpack.c.b16 %v1405, %v1403
    %v1464 = vpack.c.b16 %v1406, %v1404
    %v1465 = vpack.c.b16 %v1409, %v1407
    %v1466 = vpack.c.b16 %v1410, %v1408
    %v1467 = vpack.c.b16 %v1413, %v1411
    %v1468 = vpack.c.b16 %v1414, %v1412
    %v1469 = vpack.c.b16 %v1417, %v1415
    %v1470 = vpack.c.b16 %v1418, %v1416
    %v1471 = vpack.c.b16 %v1421, %v1419
    %v1472 = vpack.c.b16 %v1422, %v1420
    %v1473 = vpack.c.b16 %v1425, %v1423
    %v1474 = vpack.c.b16 %v1426, %v1424
    %v1475 = vpack.c.b16 %v1429, %v1427
    %v1476 = vpack.c.b16 %v1430, %v1428
    %v1477 = vpack.c.b16 %v1433, %v1431
    %v1478 = vpack.c.b16 %v1434, %v1432
    %v1479 = vpack.c.b16 %v1437, %v1435
    %v1480 = vpack.c.b16 %v1438, %v1436
    %v1481 = vpack.c.b16 %v1441, %v1439
    %v1482 = vpack.c.b16 %v1442, %v1440
    %v1483 = vpack.c.b16 %v1445, %v1443
    %v1484 = vpack.c.b16 %v1446, %v1444
    %v1485 = vpack.c.b16 %v1449, %v1447
    %v1486 = vpack.c.b16 %v1450, %v1448
    %v1487 = vpack.c.b16 %v1453, %v1451
    %v1488 = vpack.c.b16 %v1454, %v1452
    %v1489 = vpack.c.b16 %v1457, %v1455
    %v1490 = vpack.c.b16 %v1458, %v1456
    %1523 = vmatprep.subr.bf16.mxu0 %v1460
    %1524 = vmatpush1.bf16.msra.mxu0 %v1459
    %1525 = vmatprep.subr.bf16.mxu0 %v1462
    %1526 = vmatpush1.bf16.msra.mxu0 %v1461
    %1527 = vmatprep.subr.bf16.mxu0 %v1464
    %1528 = vmatpush1.bf16.msra.mxu0 %v1463
    %1529 = vmatprep.subr.bf16.mxu0 %v1466
    %1530 = vmatpush1.bf16.msra.mxu0 %v1465
    %1531 = vmatprep.subr.bf16.mxu0 %v1468
    %1532 = vmatpush1.bf16.msra.mxu0 %v1467
    %1533 = vmatprep.subr.bf16.mxu0 %v1470
    %1534 = vmatpush1.bf16.msra.mxu0 %v1469
    %1535 = vmatprep.subr.bf16.mxu0 %v1472
    %1536 = vmatpush1.bf16.msra.mxu0 %v1471
    %1537 = vmatprep.subr.bf16.mxu0 %v1474
    %1538 = vmatpush1.bf16.msra.mxu0 %v1473
    %1539 = vmatprep.subr.bf16.mxu0 %v1476
    %1540 = vmatpush1.bf16.msra.mxu0 %v1475
    %1541 = vmatprep.subr.bf16.mxu0 %v1478
    %1542 = vmatpush1.bf16.msra.mxu0 %v1477
    %1543 = vmatprep.subr.bf16.mxu0 %v1480
    %1544 = vmatpush1.bf16.msra.mxu0 %v1479
    %1545 = vmatprep.subr.bf16.mxu0 %v1482
    %1546 = vmatpush1.bf16.msra.mxu0 %v1481
    %1547 = vmatprep.subr.bf16.mxu0 %v1484
    %1548 = vmatpush1.bf16.msra.mxu0 %v1483
    %1549 = vmatprep.subr.bf16.mxu0 %v1486
    %1550 = vmatpush1.bf16.msra.mxu0 %v1485
    %1551 = vmatprep.subr.bf16.mxu0 %v1488
    %1552 = vmatpush1.bf16.msra.mxu0 %v1487
    %1553 = vmatprep.subr.bf16.mxu0 %v1490
    %1554 = vmatpush1.bf16.msra.mxu0 %v1489
    %1555 = vmatprep.mubr.bf16.mxu0 %v1318
    %1556 = vmatmul.mubr.bf16.gmra.mrb[0].mxu0 %v1317
    %v1557 = vpop.f32.mrb[0].mxu0
    %v1558 = vadd.f32 %v1356, %v1557
    %v1559 = vpop.f32.mrb[0].mxu0
    %v1560 = vadd.f32 %v1360, %v1559
    %v1561 = vpop.f32.mrb[0].mxu0
    %v1562 = vpop.f32.mrb[0].mxu0
    %1563 = vdwg.mxu0
    %v1564 = vmax.f32 %v1558, 0.0
    %v1565 = vmax.f32 %v1560, 0.0
    %v1566 = vpack.c.bf16 %v1564, %v1564
    %v1567 = vpack.c.bf16 %v1565, %v1565
    %v1568 = vld [vmem:[#allocation4] sm:$0xf]
    %v1569 = vld [vmem:[#allocation4 + $0x4] sm:$0xf]
    %v1570 = vld [vmem:[#allocation4 + $0x8] sm:$0xf]
    %v1571 = vld [vmem:[#allocation4 + $0xc] sm:$0xf]
    %v1572 = vld [vmem:[#allocation4 + $0x10] sm:$0xf]
    %v1573 = vld [vmem:[#allocation4 + $0x14] sm:$0xf]
    %v1574 = vld [vmem:[#allocation4 + $0x18] sm:$0xf]
    %v1575 = vld [vmem:[#allocation4 + $0x1c] sm:$0xf]
    %v1576 = vld [vmem:[#allocation4 + $0x20] sm:$0xf]
    %v1577 = vld [vmem:[#allocation4 + $0x24] sm:$0xf]
    %v1578 = vld [vmem:[#allocation4 + $0x28] sm:$0xf]
    %v1579 = vld [vmem:[#allocation4 + $0x2c] sm:$0xf]
    %v1580 = vld [vmem:[#allocation4 + $0x30] sm:$0xf]
    %v1581 = vld [vmem:[#allocation4 + $0x34] sm:$0xf]
    %v1582 = vld [vmem:[#allocation4 + $0x38] sm:$0xf]
    %v1583 = vld [vmem:[#allocation4 + $0x3c] sm:$0xf]
    %v1584 = vld [vmem:[#allocation4 + $0x40] sm:$0xf]
    %v1585 = vld [vmem:[#allocation4 + $0x44] sm:$0xf]
    %v1586 = vld [vmem:[#allocation4 + $0x48] sm:$0xf]
    %v1587 = vld [vmem:[#allocation4 + $0x4c] sm:$0xf]
    %v1588 = vld [vmem:[#allocation4 + $0x50] sm:$0xf]
    %v1589 = vld [vmem:[#allocation4 + $0x54] sm:$0xf]
    %v1590 = vld [vmem:[#allocation4 + $0x58] sm:$0xf]
    %v1591 = vld [vmem:[#allocation4 + $0x5c] sm:$0xf]
    %v1592 = vld [vmem:[#allocation4 + $0x60] sm:$0xf]
    %v1593 = vld [vmem:[#allocation4 + $0x64] sm:$0xf]
    %v1594 = vld [vmem:[#allocation4 + $0x68] sm:$0xf]
    %v1595 = vld [vmem:[#allocation4 + $0x6c] sm:$0xf]
    %v1596 = vld [vmem:[#allocation4 + $0x70] sm:$0xf]
    %v1597 = vld [vmem:[#allocation4 + $0x74] sm:$0xf]
    %v1598 = vld [vmem:[#allocation4 + $0x78] sm:$0xf]
    %v1599 = vld [vmem:[#allocation4 + $0x7c] sm:$0xf]
    %v1600 = vld [vmem:[%s19] sm:$0x1]
    %v1602 = vlaneseq
    %v1603 = vshrl.u32 %v1602, 7
    %v1604 = vsub.s32 0, %v1603
    %v1605 = vrot.slane %v1600, %v1604
    %v1639 = vunpack.c.l.b16 %v1568
    %v1640 = vunpack.c.l.b16 %v1569
    %v1641 = vunpack.c.l.b16 %v1570
    %v1642 = vunpack.c.l.b16 %v1571
    %v1643 = vunpack.c.l.b16 %v1572
    %v1644 = vunpack.c.l.b16 %v1573
    %v1645 = vunpack.c.l.b16 %v1574
    %v1646 = vunpack.c.l.b16 %v1575
    %v1647 = vunpack.c.l.b16 %v1576
    %v1648 = vunpack.c.l.b16 %v1577
    %v1649 = vunpack.c.l.b16 %v1578
    %v1650 = vunpack.c.l.b16 %v1579
    %v1651 = vunpack.c.l.b16 %v1580
    %v1652 = vunpack.c.l.b16 %v1581
    %v1653 = vunpack.c.l.b16 %v1582
    %v1654 = vunpack.c.l.b16 %v1583
    %v1655 = vunpack.c.l.b16 %v1584
    %v1656 = vunpack.c.l.b16 %v1585
    %v1657 = vunpack.c.l.b16 %v1586
    %v1658 = vunpack.c.l.b16 %v1587
    %v1659 = vunpack.c.l.b16 %v1588
    %v1660 = vunpack.c.l.b16 %v1589
    %v1661 = vunpack.c.l.b16 %v1590
    %v1662 = vunpack.c.l.b16 %v1591
    %v1663 = vunpack.c.l.b16 %v1592
    %v1664 = vunpack.c.l.b16 %v1593
    %v1665 = vunpack.c.l.b16 %v1594
    %v1666 = vunpack.c.l.b16 %v1595
    %v1667 = vunpack.c.l.b16 %v1596
    %v1668 = vunpack.c.l.b16 %v1597
    %v1669 = vunpack.c.l.b16 %v1598
    %v1670 = vunpack.c.l.b16 %v1599
    %v1671 = vpack.c.b16 %v1640, %v1639
    %v1672 = vpack.c.b16 %v1642, %v1641
    %v1673 = vpack.c.b16 %v1644, %v1643
    %v1674 = vpack.c.b16 %v1646, %v1645
    %v1675 = vpack.c.b16 %v1648, %v1647
    %v1676 = vpack.c.b16 %v1650, %v1649
    %v1677 = vpack.c.b16 %v1652, %v1651
    %v1678 = vpack.c.b16 %v1654, %v1653
    %v1679 = vpack.c.b16 %v1656, %v1655
    %v1680 = vpack.c.b16 %v1658, %v1657
    %v1681 = vpack.c.b16 %v1660, %v1659
    %v1682 = vpack.c.b16 %v1662, %v1661
    %v1683 = vpack.c.b16 %v1664, %v1663
    %v1684 = vpack.c.b16 %v1666, %v1665
    %v1685 = vpack.c.b16 %v1668, %v1667
    %v1686 = vpack.c.b16 %v1670, %v1669
    %1703 = vmatprep.subr.bf16.mxu0 0
    %1704 = vmatpush1.bf16.msra.mxu0 %v1671
    %1705 = vmatprep.subr.bf16.mxu0 0
    %1706 = vmatpush1.bf16.msra.mxu0 %v1672
    %1707 = vmatprep.subr.bf16.mxu0 0
    %1708 = vmatpush1.bf16.msra.mxu0 %v1673
    %1709 = vmatprep.subr.bf16.mxu0 0
    %1710 = vmatpush1.bf16.msra.mxu0 %v1674
    %1711 = vmatprep.subr.bf16.mxu0 0
    %1712 = vmatpush1.bf16.msra.mxu0 %v1675
    %1713 = vmatprep.subr.bf16.mxu0 0
    %1714 = vmatpush1.bf16.msra.mxu0 %v1676
    %1715 = vmatprep.subr.bf16.mxu0 0
    %1716 = vmatpush1.bf16.msra.mxu0 %v1677
    %1717 = vmatprep.subr.bf16.mxu0 0
    %1718 = vmatpush1.bf16.msra.mxu0 %v1678
    %1719 = vmatprep.subr.bf16.mxu0 0
    %1720 = vmatpush1.bf16.msra.mxu0 %v1679
    %1721 = vmatprep.subr.bf16.mxu0 0
    %1722 = vmatpush1.bf16.msra.mxu0 %v1680
    %1723 = vmatprep.subr.bf16.mxu0 0
    %1724 = vmatpush1.bf16.msra.mxu0 %v1681
    %1725 = vmatprep.subr.bf16.mxu0 0
    %1726 = vmatpush1.bf16.msra.mxu0 %v1682
    %1727 = vmatprep.subr.bf16.mxu0 0
    %1728 = vmatpush1.bf16.msra.mxu0 %v1683
    %1729 = vmatprep.subr.bf16.mxu0 0
    %1730 = vmatpush1.bf16.msra.mxu0 %v1684
    %1731 = vmatprep.subr.bf16.mxu0 0
    %1732 = vmatpush1.bf16.msra.mxu0 %v1685
    %1733 = vmatprep.subr.bf16.mxu0 0
    %1734 = vmatpush1.bf16.msra.mxu0 %v1686
    %1735 = vmatprep.mubr.bf16.mxu0 %v1567
    %1736 = vmatmul.mubr.bf16.gmra.mrb[0].mxu0 %v1566
    %v1737 = vpop.f32.mrb[0].mxu0
    %v1738 = vadd.f32 %v1605, %v1737
    %v1739 = vpop.f32.mrb[0].mxu0
    %v1740 = vpop.f32.mrb[0].mxu0
    %v1741 = vpop.f32.mrb[0].mxu0
    %1742 = vdwg.mxu0
    %v1743 = vld [vmem:[#allocation6] sm:$0xf]
    %v1744 = vld [vmem:[#allocation6 + $0x4] sm:$0xf]
    %v1745 = vld [vmem:[#allocation6 + $0x8] sm:$0xf]
    %v1746 = vld [vmem:[#allocation6 + $0xc] sm:$0xf]
    %v1747 = vld [vmem:[#allocation6 + $0x10] sm:$0xf]
    %v1748 = vld [vmem:[#allocation6 + $0x14] sm:$0xf]
    %v1749 = vld [vmem:[#allocation6 + $0x18] sm:$0xf]
    %v1750 = vld [vmem:[#allocation6 + $0x1c] sm:$0xf]
    %v1751 = vld [vmem:[#allocation6 + $0x20] sm:$0xf]
    %v1752 = vld [vmem:[#allocation6 + $0x24] sm:$0xf]
    %v1753 = vld [vmem:[#allocation6 + $0x28] sm:$0xf]
    %v1754 = vld [vmem:[#allocation6 + $0x2c] sm:$0xf]
    %v1755 = vld [vmem:[#allocation6 + $0x30] sm:$0xf]
    %v1756 = vld [vmem:[#allocation6 + $0x34] sm:$0xf]
    %v1757 = vld [vmem:[#allocation6 + $0x38] sm:$0xf]
    %v1758 = vld [vmem:[#allocation6 + $0x3c] sm:$0xf]
    %v1759 = vld [vmem:[#allocation6 + $0x40] sm:$0xf]
    %v1760 = vld [vmem:[#allocation6 + $0x44] sm:$0xf]
    %v1761 = vld [vmem:[#allocation6 + $0x48] sm:$0xf]
    %v1762 = vld [vmem:[#allocation6 + $0x4c] sm:$0xf]
    %v1763 = vld [vmem:[#allocation6 + $0x50] sm:$0xf]
    %v1764 = vld [vmem:[#allocation6 + $0x54] sm:$0xf]
    %v1765 = vld [vmem:[#allocation6 + $0x58] sm:$0xf]
    %v1766 = vld [vmem:[#allocation6 + $0x5c] sm:$0xf]
    %v1767 = vld [vmem:[#allocation6 + $0x60] sm:$0xf]
    %v1768 = vld [vmem:[#allocation6 + $0x64] sm:$0xf]
    %v1769 = vld [vmem:[#allocation6 + $0x68] sm:$0xf]
    %v1770 = vld [vmem:[#allocation6 + $0x6c] sm:$0xf]
    %v1771 = vld [vmem:[#allocation6 + $0x70] sm:$0xf]
    %v1772 = vld [vmem:[#allocation6 + $0x74] sm:$0xf]
    %v1773 = vld [vmem:[#allocation6 + $0x78] sm:$0xf]
    %v1774 = vld [vmem:[#allocation6 + $0x7c] sm:$0xf]
    %v1775 = vld [vmem:[%s23] sm:$0x1]
    %v1777 = vlaneseq
    %v1778 = vshrl.u32 %v1777, 7
    %v1779 = vsub.s32 0, %v1778
    %v1780 = vrot.slane %v1775, %v1779
    %v1814 = vunpack.c.l.b16 %v1743
    %v1815 = vunpack.c.l.b16 %v1744
    %v1816 = vunpack.c.l.b16 %v1745
    %v1817 = vunpack.c.l.b16 %v1746
    %v1818 = vunpack.c.l.b16 %v1747
    %v1819 = vunpack.c.l.b16 %v1748
    %v1820 = vunpack.c.l.b16 %v1749
    %v1821 = vunpack.c.l.b16 %v1750
    %v1822 = vunpack.c.l.b16 %v1751
    %v1823 = vunpack.c.l.b16 %v1752
    %v1824 = vunpack.c.l.b16 %v1753
    %v1825 = vunpack.c.l.b16 %v1754
    %v1826 = vunpack.c.l.b16 %v1755
    %v1827 = vunpack.c.l.b16 %v1756
    %v1828 = vunpack.c.l.b16 %v1757
    %v1829 = vunpack.c.l.b16 %v1758
    %v1830 = vunpack.c.l.b16 %v1759
    %v1831 = vunpack.c.l.b16 %v1760
    %v1832 = vunpack.c.l.b16 %v1761
    %v1833 = vunpack.c.l.b16 %v1762
    %v1834 = vunpack.c.l.b16 %v1763
    %v1835 = vunpack.c.l.b16 %v1764
    %v1836 = vunpack.c.l.b16 %v1765
    %v1837 = vunpack.c.l.b16 %v1766
    %v1838 = vunpack.c.l.b16 %v1767
    %v1839 = vunpack.c.l.b16 %v1768
    %v1840 = vunpack.c.l.b16 %v1769
    %v1841 = vunpack.c.l.b16 %v1770
    %v1842 = vunpack.c.l.b16 %v1771
    %v1843 = vunpack.c.l.b16 %v1772
    %v1844 = vunpack.c.l.b16 %v1773
    %v1845 = vunpack.c.l.b16 %v1774
    %v1846 = vpack.c.b16 %v1815, %v1814
    %v1847 = vpack.c.b16 %v1817, %v1816
    %v1848 = vpack.c.b16 %v1819, %v1818
    %v1849 = vpack.c.b16 %v1821, %v1820
    %v1850 = vpack.c.b16 %v1823, %v1822
    %v1851 = vpack.c.b16 %v1825, %v1824
    %v1852 = vpack.c.b16 %v1827, %v1826
    %v1853 = vpack.c.b16 %v1829, %v1828
    %v1854 = vpack.c.b16 %v1831, %v1830
    %v1855 = vpack.c.b16 %v1833, %v1832
    %v1856 = vpack.c.b16 %v1835, %v1834
    %v1857 = vpack.c.b16 %v1837, %v1836
    %v1858 = vpack.c.b16 %v1839, %v1838
    %v1859 = vpack.c.b16 %v1841, %v1840
    %v1860 = vpack.c.b16 %v1843, %v1842
    %v1861 = vpack.c.b16 %v1845, %v1844
    %1878 = vmatprep.subr.bf16.mxu0 0
    %1879 = vmatpush1.bf16.msra.mxu0 %v1846
    %1880 = vmatprep.subr.bf16.mxu0 0
    %1881 = vmatpush1.bf16.msra.mxu0 %v1847
    %1882 = vmatprep.subr.bf16.mxu0 0
    %1883 = vmatpush1.bf16.msra.mxu0 %v1848
    %1884 = vmatprep.subr.bf16.mxu0 0
    %1885 = vmatpush1.bf16.msra.mxu0 %v1849
    %1886 = vmatprep.subr.bf16.mxu0 0
    %1887 = vmatpush1.bf16.msra.mxu0 %v1850
    %1888 = vmatprep.subr.bf16.mxu0 0
    %1889 = vmatpush1.bf16.msra.mxu0 %v1851
    %1890 = vmatprep.subr.bf16.mxu0 0
    %1891 = vmatpush1.bf16.msra.mxu0 %v1852
    %1892 = vmatprep.subr.bf16.mxu0 0
    %1893 = vmatpush1.bf16.msra.mxu0 %v1853
    %1894 = vmatprep.subr.bf16.mxu0 0
    %1895 = vmatpush1.bf16.msra.mxu0 %v1854
    %1896 = vmatprep.subr.bf16.mxu0 0
    %1897 = vmatpush1.bf16.msra.mxu0 %v1855
    %1898 = vmatprep.subr.bf16.mxu0 0
    %1899 = vmatpush1.bf16.msra.mxu0 %v1856
    %1900 = vmatprep.subr.bf16.mxu0 0
    %1901 = vmatpush1.bf16.msra.mxu0 %v1857
    %1902 = vmatprep.subr.bf16.mxu0 0
    %1903 = vmatpush1.bf16.msra.mxu0 %v1858
    %1904 = vmatprep.subr.bf16.mxu0 0
    %1905 = vmatpush1.bf16.msra.mxu0 %v1859
    %1906 = vmatprep.subr.bf16.mxu0 0
    %1907 = vmatpush1.bf16.msra.mxu0 %v1860
    %1908 = vmatprep.subr.bf16.mxu0 0
    %1909 = vmatpush1.bf16.msra.mxu0 %v1861
    %1910 = vmatprep.mubr.bf16.mxu0 %v1567
    %1911 = vmatmul.mubr.bf16.gmra.mrb[0].mxu0 %v1566
    %v1912 = vpop.f32.mrb[0].mxu0
    %v1913 = vadd.f32 %v1780, %v1912
    %v1914 = vpop.f32.mrb[0].mxu0
    %v1915 = vpop.f32.mrb[0].mxu0
    %v1916 = vpop.f32.mrb[0].mxu0
    %1917 = vdwg.mxu0
    %1918 = vst [vmem:[%s63] sm:$0xff] %v1738
    %1919 = vst [vmem:[%s65] sm:$0xff] %v1913
    %v1920 = vld [vmem:[#allocation7] sm:$0xff]
    %v1921 = vld [vmem:[#allocation7 + $0x8] sm:$0xff]
    %v1922 = vld [vmem:[#allocation7 + $0x10] sm:$0xff]
    %v1923 = vld [vmem:[#allocation7 + $0x18] sm:$0xff]
    %v1924 = vld [vmem:[#allocation7 + $0x20] sm:$0xff]
    %v1925 = vld [vmem:[#allocation7 + $0x28] sm:$0xff]
    %v1926 = vld [vmem:[#allocation7 + $0x30] sm:$0xff]
    %v1927 = vld [vmem:[#allocation7 + $0x38] sm:$0xff]
    %v1928 = vld [vmem:[#allocation7 + $0x40] sm:$0xff]
    %v1929 = vld [vmem:[#allocation7 + $0x48] sm:$0xff]
    %v1930 = vld [vmem:[#allocation7 + $0x50] sm:$0xff]
    %v1931 = vld [vmem:[#allocation7 + $0x58] sm:$0xff]
    %v1932 = vld [vmem:[#allocation7 + $0x60] sm:$0xff]
    %v1933 = vld [vmem:[#allocation7 + $0x68] sm:$0xff]
    %v1934 = vld [vmem:[#allocation7 + $0x70] sm:$0xff]
    %v1935 = vld [vmem:[#allocation7 + $0x78] sm:$0xff]
    %v1936 = vld [vmem:[#allocation7 + $0x80] sm:$0xff]
    %v1937 = vld [vmem:[#allocation7 + $0x88] sm:$0xff]
    %v1938 = vld [vmem:[#allocation7 + $0x90] sm:$0xff]
    %v1939 = vld [vmem:[#allocation7 + $0x98] sm:$0xff]
    %v1940 = vld [vmem:[#allocation7 + $0xa0] sm:$0xff]
    %v1941 = vld [vmem:[#allocation7 + $0xa8] sm:$0xff]
    %v1942 = vld [vmem:[#allocation7 + $0xb0] sm:$0xff]
    %v1943 = vld [vmem:[#allocation7 + $0xb8] sm:$0xff]
    %v1944 = vld [vmem:[#allocation7 + $0xc0] sm:$0xff]
    %v1945 = vld [vmem:[#allocation7 + $0xc8] sm:$0xff]
    %v1946 = vld [vmem:[#allocation7 + $0xd0] sm:$0xff]
    %v1947 = vld [vmem:[#allocation7 + $0xd8] sm:$0xff]
    %v1948 = vld [vmem:[#allocation7 + $0xe0] sm:$0xff]
    %v1949 = vld [vmem:[#allocation7 + $0xe8] sm:$0xff]
    %v1950 = vld [vmem:[#allocation7 + $0xf0] sm:$0xff]
    %v1951 = vld [vmem:[#allocation7 + $0xf8] sm:$0xff]
    %v1952 = vld [vmem:[#allocation7 + $0x100] sm:$0xff]
    %v1953 = vld [vmem:[#allocation7 + $0x108] sm:$0xff]
    %v1954 = vld [vmem:[#allocation7 + $0x110] sm:$0xff]
    %v1955 = vld [vmem:[#allocation7 + $0x118] sm:$0xff]
    %v1956 = vld [vmem:[#allocation7 + $0x120] sm:$0xff]
    %v1957 = vld [vmem:[#allocation7 + $0x128] sm:$0xff]
    %v1958 = vld [vmem:[#allocation7 + $0x130] sm:$0xff]
    %v1959 = vld [vmem:[#allocation7 + $0x138] sm:$0xff]
    %v1960 = vld [vmem:[#allocation7 + $0x140] sm:$0xff]
    %v1961 = vld [vmem:[#allocation7 + $0x148] sm:$0xff]
    %v1962 = vld [vmem:[#allocation7 + $0x150] sm:$0xff]
    %v1963 = vld [vmem:[#allocation7 + $0x158] sm:$0xff]
    %v1964 = vld [vmem:[#allocation7 + $0x160] sm:$0xff]
    %v1965 = vld [vmem:[#allocation7 + $0x168] sm:$0xff]
    %v1966 = vld [vmem:[#allocation7 + $0x170] sm:$0xff]
    %v1967 = vld [vmem:[#allocation7 + $0x178] sm:$0xff]
    %v1968 = vld [vmem:[#allocation7 + $0x180] sm:$0xff]
    %v1969 = vld [vmem:[#allocation7 + $0x188] sm:$0xff]
    %v1970 = vld [vmem:[#allocation7 + $0x190] sm:$0xff]
    %v1971 = vld [vmem:[#allocation7 + $0x198] sm:$0xff]
    %v1972 = vld [vmem:[#allocation7 + $0x1a0] sm:$0xff]
    %v1973 = vld [vmem:[#allocation7 + $0x1a8] sm:$0xff]
    %v1974 = vld [vmem:[#allocation7 + $0x1b0] sm:$0xff]
    %v1975 = vld [vmem:[#allocation7 + $0x1b8] sm:$0xff]
    %v1976 = vld [vmem:[#allocation7 + $0x1c0] sm:$0xff]
    %v1977 = vld [vmem:[#allocation7 + $0x1c8] sm:$0xff]
    %v1978 = vld [vmem:[#allocation7 + $0x1d0] sm:$0xff]
    %v1979 = vld [vmem:[#allocation7 + $0x1d8] sm:$0xff]
    %v1980 = vld [vmem:[#allocation7 + $0x1e0] sm:$0xff]
    %v1981 = vld [vmem:[#allocation7 + $0x1e8] sm:$0xff]
    %v1982 = vld [vmem:[#allocation7 + $0x1f0] sm:$0xff]
    %v1983 = vld [vmem:[#allocation7 + $0x1f8] sm:$0xff]
    %v1984 = vld [vmem:[#allocation7 + $0x200] sm:$0xff]
    %v1985 = vld [vmem:[#allocation7 + $0x208] sm:$0xff]
    %v1986 = vld [vmem:[#allocation7 + $0x210] sm:$0xff]
    %v1987 = vld [vmem:[#allocation7 + $0x218] sm:$0xff]
    %v1988 = vld [vmem:[#allocation7 + $0x220] sm:$0xff]
    %v1989 = vld [vmem:[#allocation7 + $0x228] sm:$0xff]
    %v1990 = vld [vmem:[#allocation7 + $0x230] sm:$0xff]
    %v1991 = vld [vmem:[#allocation7 + $0x238] sm:$0xff]
    %v1992 = vld [vmem:[#allocation7 + $0x240] sm:$0xff]
    %v1993 = vld [vmem:[#allocation7 + $0x248] sm:$0xff]
    %v1994 = vld [vmem:[#allocation7 + $0x250] sm:$0xff]
    %v1995 = vld [vmem:[#allocation7 + $0x258] sm:$0xff]
    %v1996 = vld [vmem:[#allocation7 + $0x260] sm:$0xff]
    %v1997 = vld [vmem:[#allocation7 + $0x268] sm:$0xff]
    %v1998 = vld [vmem:[#allocation7 + $0x270] sm:$0xff]
    %v1999 = vld [vmem:[#allocation7 + $0x278] sm:$0xff]
    %v2000 = vld [vmem:[#allocation7 + $0x280] sm:$0xff]
    %v2001 = vld [vmem:[#allocation7 + $0x288] sm:$0xff]
    %v2002 = vld [vmem:[#allocation7 + $0x290] sm:$0xff]
    %v2003 = vld [vmem:[#allocation7 + $0x298] sm:$0xff]
    %v2004 = vld [vmem:[#allocation7 + $0x2a0] sm:$0xff]
    %v2005 = vld [vmem:[#allocation7 + $0x2a8] sm:$0xff]
    %v2006 = vld [vmem:[#allocation7 + $0x2b0] sm:$0xff]
    %v2007 = vld [vmem:[#allocation7 + $0x2b8] sm:$0xff]
    %v2008 = vld [vmem:[#allocation7 + $0x2c0] sm:$0xff]
    %v2009 = vld [vmem:[#allocation7 + $0x2c8] sm:$0xff]
    %v2010 = vld [vmem:[#allocation7 + $0x2d0] sm:$0xff]
    %v2011 = vld [vmem:[#allocation7 + $0x2d8] sm:$0xff]
    %v2012 = vld [vmem:[#allocation7 + $0x2e0] sm:$0xff]
    %v2013 = vld [vmem:[#allocation7 + $0x2e8] sm:$0xff]
    %v2014 = vld [vmem:[#allocation7 + $0x2f0] sm:$0xff]
    %v2015 = vld [vmem:[#allocation7 + $0x2f8] sm:$0xff]
    %v2016 = vld [vmem:[#allocation7 + $0x300] sm:$0xff]
    %v2017 = vld [vmem:[#allocation7 + $0x308] sm:$0xff]
    %v2018 = vld [vmem:[#allocation7 + $0x310] sm:$0xff]
    %v2019 = vld [vmem:[#allocation7 + $0x318] sm:$0xff]
    %v2020 = vld [vmem:[#allocation7 + $0x320] sm:$0xff]
    %v2021 = vld [vmem:[#allocation7 + $0x328] sm:$0xff]
    %v2022 = vld [vmem:[#allocation7 + $0x330] sm:$0xff]
    %v2023 = vld [vmem:[#allocation7 + $0x338] sm:$0xff]
    %v2024 = vld [vmem:[#allocation7 + $0x340] sm:$0xff]
    %v2025 = vld [vmem:[#allocation7 + $0x348] sm:$0xff]
    %v2026 = vld [vmem:[#allocation7 + $0x350] sm:$0xff]
    %v2027 = vld [vmem:[#allocation7 + $0x358] sm:$0xff]
    %v2028 = vld [vmem:[#allocation7 + $0x360] sm:$0xff]
    %v2029 = vld [vmem:[#allocation7 + $0x368] sm:$0xff]
    %v2030 = vld [vmem:[#allocation7 + $0x370] sm:$0xff]
    %v2031 = vld [vmem:[#allocation7 + $0x378] sm:$0xff]
    %v2032 = vld [vmem:[#allocation7 + $0x380] sm:$0xff]
    %v2033 = vld [vmem:[#allocation7 + $0x388] sm:$0xff]
    %v2034 = vld [vmem:[#allocation7 + $0x390] sm:$0xff]
    %v2035 = vld [vmem:[#allocation7 + $0x398] sm:$0xff]
    %v2036 = vld [vmem:[#allocation7 + $0x3a0] sm:$0xff]
    %v2037 = vld [vmem:[#allocation7 + $0x3a8] sm:$0xff]
    %v2038 = vld [vmem:[#allocation7 + $0x3b0] sm:$0xff]
    %v2039 = vld [vmem:[#allocation7 + $0x3b8] sm:$0xff]
    %v2040 = vld [vmem:[#allocation7 + $0x3c0] sm:$0xff]
    %v2041 = vld [vmem:[#allocation7 + $0x3c8] sm:$0xff]
    %v2042 = vld [vmem:[#allocation7 + $0x3d0] sm:$0xff]
    %v2043 = vld [vmem:[#allocation7 + $0x3d8] sm:$0xff]
    %v2044 = vld [vmem:[#allocation7 + $0x3e0] sm:$0xff]
    %v2045 = vld [vmem:[#allocation7 + $0x3e8] sm:$0xff]
    %v2046 = vld [vmem:[#allocation7 + $0x3f0] sm:$0xff]
    %v2047 = vld [vmem:[#allocation7 + $0x3f8] sm:$0xff]
    %v2048 = vld [vmem:[#allocation9] sm:$0xff]
    %v2049 = vld [vmem:[#allocation9 + $0x8] sm:$0xff]
    %v2050 = vld [vmem:[#allocation9 + $0x10] sm:$0xff]
    %v2051 = vld [vmem:[#allocation9 + $0x18] sm:$0xff]
    %v2052 = vld [vmem:[#allocation9 + $0x20] sm:$0xff]
    %v2053 = vld [vmem:[#allocation9 + $0x28] sm:$0xff]
    %v2054 = vld [vmem:[#allocation9 + $0x30] sm:$0xff]
    %v2055 = vld [vmem:[#allocation9 + $0x38] sm:$0xff]
    %v2056 = vld [vmem:[#allocation9 + $0x40] sm:$0xff]
    %v2057 = vld [vmem:[#allocation9 + $0x48] sm:$0xff]
    %v2058 = vld [vmem:[#allocation9 + $0x50] sm:$0xff]
    %v2059 = vld [vmem:[#allocation9 + $0x58] sm:$0xff]
    %v2060 = vld [vmem:[#allocation9 + $0x60] sm:$0xff]
    %v2061 = vld [vmem:[#allocation9 + $0x68] sm:$0xff]
    %v2062 = vld [vmem:[#allocation9 + $0x70] sm:$0xff]
    %v2063 = vld [vmem:[#allocation9 + $0x78] sm:$0xff]
    %v2080 = vunpack.c.l.b16 %v2048
    %v2081 = vunpack.c.h.b16 %v2048
    %v2082 = vunpack.c.l.b16 %v2049
    %v2083 = vunpack.c.h.b16 %v2049
    %v2084 = vunpack.c.l.b16 %v2050
    %v2085 = vunpack.c.h.b16 %v2050
    %v2086 = vunpack.c.l.b16 %v2051
    %v2087 = vunpack.c.h.b16 %v2051
    %v2088 = vunpack.c.l.b16 %v2052
    %v2089 = vunpack.c.h.b16 %v2052
    %v2090 = vunpack.c.l.b16 %v2053
    %v2091 = vunpack.c.h.b16 %v2053
    %v2092 = vunpack.c.l.b16 %v2054
    %v2093 = vunpack.c.h.b16 %v2054
    %v2094 = vunpack.c.l.b16 %v2055
    %v2095 = vunpack.c.h.b16 %v2055
    %v2096 = vunpack.c.l.b16 %v2056
    %v2097 = vunpack.c.h.b16 %v2056
    %v2098 = vunpack.c.l.b16 %v2057
    %v2099 = vunpack.c.h.b16 %v2057
    %v2100 = vunpack.c.l.b16 %v2058
    %v2101 = vunpack.c.h.b16 %v2058
    %v2102 = vunpack.c.l.b16 %v2059
    %v2103 = vunpack.c.h.b16 %v2059
    %v2104 = vunpack.c.l.b16 %v2060
    %v2105 = vunpack.c.h.b16 %v2060
    %v2106 = vunpack.c.l.b16 %v2061
    %v2107 = vunpack.c.h.b16 %v2061
    %v2108 = vunpack.c.l.b16 %v2062
    %v2109 = vunpack.c.h.b16 %v2062
    %v2110 = vunpack.c.l.b16 %v2063
    %v2111 = vunpack.c.h.b16 %v2063
    %v2112 = vpack.c.b16 %v2082, %v2080
    %v2113 = vpack.c.b16 %v2083, %v2081
    %v2114 = vpack.c.b16 %v2086, %v2084
    %v2115 = vpack.c.b16 %v2087, %v2085
    %v2116 = vpack.c.b16 %v2090, %v2088
    %v2117 = vpack.c.b16 %v2091, %v2089
    %v2118 = vpack.c.b16 %v2094, %v2092
    %v2119 = vpack.c.b16 %v2095, %v2093
    %v2120 = vpack.c.b16 %v2098, %v2096
    %v2121 = vpack.c.b16 %v2099, %v2097
    %v2122 = vpack.c.b16 %v2102, %v2100
    %v2123 = vpack.c.b16 %v2103, %v2101
    %v2124 = vpack.c.b16 %v2106, %v2104
    %v2125 = vpack.c.b16 %v2107, %v2105
    %v2126 = vpack.c.b16 %v2110, %v2108
    %v2127 = vpack.c.b16 %v2111, %v2109
    %2144 = vmatprep.subr.bf16.mxu0 %v2113
    %2145 = vmatpush1.bf16.msra.mxu0 %v2112
    %2146 = vmatprep.subr.bf16.mxu0 %v2115
    %2147 = vmatpush1.bf16.msra.mxu0 %v2114
    %2148 = vmatprep.subr.bf16.mxu0 %v2117
    %2149 = vmatpush1.bf16.msra.mxu0 %v2116
    %2150 = vmatprep.subr.bf16.mxu0 %v2119
    %2151 = vmatpush1.bf16.msra.mxu0 %v2118
    %2152 = vmatprep.subr.bf16.mxu0 %v2121
    %2153 = vmatpush1.bf16.msra.mxu0 %v2120
    %2154 = vmatprep.subr.bf16.mxu0 %v2123
    %2155 = vmatpush1.bf16.msra.mxu0 %v2122
    %2156 = vmatprep.subr.bf16.mxu0 %v2125
    %2157 = vmatpush1.bf16.msra.mxu0 %v2124
    %2158 = vmatprep.subr.bf16.mxu0 %v2127
    %2159 = vmatpush1.bf16.msra.mxu0 %v2126
    %2160 = vmatprep.subr.bf16.mxu0 0
    %2161 = vmatpush1.bf16.msra.mxu0 0
    %2162 = vmatprep.subr.bf16.mxu0 0
    %2163 = vmatpush1.bf16.msra.mxu0 0
    %2164 = vmatprep.subr.bf16.mxu0 0
    %2165 = vmatpush1.bf16.msra.mxu0 0
    %2166 = vmatprep.subr.bf16.mxu0 0
    %2167 = vmatpush1.bf16.msra.mxu0 0
    %2168 = vmatprep.subr.bf16.mxu0 0
    %2169 = vmatpush1.bf16.msra.mxu0 0
    %2170 = vmatprep.subr.bf16.mxu0 0
    %2171 = vmatpush1.bf16.msra.mxu0 0
    %2172 = vmatprep.subr.bf16.mxu0 0
    %2173 = vmatpush1.bf16.msra.mxu0 0
    %2174 = vmatprep.subr.bf16.mxu0 0
    %2175 = vmatpush1.bf16.msra.mxu0 0
    %2176 = vmatprep.mubr.bf16.mxu0 0
    %2177 = vmatmul.mubr.bf16.gmra.mrb[0].mxu0 %v370
    %v2178 = vpop.f32.mrb[0].mxu0
    %v2179 = vadd.f32 0.0, %v2178
    %v2180 = vpop.f32.mrb[0].mxu0
    %v2181 = vadd.f32 0.0, %v2180
    %v2182 = vpop.f32.mrb[0].mxu0
    %v2183 = vpop.f32.mrb[0].mxu0
    %2184 = vdwg.mxu0
    %v2313 = vunpack.c.l.b16 %v1920
    %v2314 = vunpack.c.h.b16 %v1920
    %v2315 = vunpack.c.l.b16 %v1921
    %v2316 = vunpack.c.h.b16 %v1921
    %v2317 = vunpack.c.l.b16 %v1922
    %v2318 = vunpack.c.h.b16 %v1922
    %v2319 = vunpack.c.l.b16 %v1923
    %v2320 = vunpack.c.h.b16 %v1923
    %v2321 = vunpack.c.l.b16 %v1924
    %v2322 = vunpack.c.h.b16 %v1924
    %v2323 = vunpack.c.l.b16 %v1925
    %v2324 = vunpack.c.h.b16 %v1925
    %v2325 = vunpack.c.l.b16 %v1926
    %v2326 = vunpack.c.h.b16 %v1926
    %v2327 = vunpack.c.l.b16 %v1927
    %v2328 = vunpack.c.h.b16 %v1927
    %v2329 = vunpack.c.l.b16 %v1928
    %v2330 = vunpack.c.h.b16 %v1928
    %v2331 = vunpack.c.l.b16 %v1929
    %v2332 = vunpack.c.h.b16 %v1929
    %v2333 = vunpack.c.l.b16 %v1930
    %v2334 = vunpack.c.h.b16 %v1930
    %v2335 = vunpack.c.l.b16 %v1931
    %v2336 = vunpack.c.h.b16 %v1931
    %v2337 = vunpack.c.l.b16 %v1932
    %v2338 = vunpack.c.h.b16 %v1932
    %v2339 = vunpack.c.l.b16 %v1933
    %v2340 = vunpack.c.h.b16 %v1933
    %v2341 = vunpack.c.l.b16 %v1934
    %v2342 = vunpack.c.h.b16 %v1934
    %v2343 = vunpack.c.l.b16 %v1935
    %v2344 = vunpack.c.h.b16 %v1935
    %v2345 = vunpack.c.l.b16 %v1936
    %v2346 = vunpack.c.h.b16 %v1936
    %v2347 = vunpack.c.l.b16 %v1937
    %v2348 = vunpack.c.h.b16 %v1937
    %v2349 = vunpack.c.l.b16 %v1938
    %v2350 = vunpack.c.h.b16 %v1938
    %v2351 = vunpack.c.l.b16 %v1939
    %v2352 = vunpack.c.h.b16 %v1939
    %v2353 = vunpack.c.l.b16 %v1940
    %v2354 = vunpack.c.h.b16 %v1940
    %v2355 = vunpack.c.l.b16 %v1941
    %v2356 = vunpack.c.h.b16 %v1941
    %v2357 = vunpack.c.l.b16 %v1942
    %v2358 = vunpack.c.h.b16 %v1942
    %v2359 = vunpack.c.l.b16 %v1943
    %v2360 = vunpack.c.h.b16 %v1943
    %v2361 = vunpack.c.l.b16 %v1944
    %v2362 = vunpack.c.h.b16 %v1944
    %v2363 = vunpack.c.l.b16 %v1945
    %v2364 = vunpack.c.h.b16 %v1945
    %v2365 = vunpack.c.l.b16 %v1946
    %v2366 = vunpack.c.h.b16 %v1946
    %v2367 = vunpack.c.l.b16 %v1947
    %v2368 = vunpack.c.h.b16 %v1947
    %v2369 = vunpack.c.l.b16 %v1948
    %v2370 = vunpack.c.h.b16 %v1948
    %v2371 = vunpack.c.l.b16 %v1949
    %v2372 = vunpack.c.h.b16 %v1949
    %v2373 = vunpack.c.l.b16 %v1950
    %v2374 = vunpack.c.h.b16 %v1950
    %v2375 = vunpack.c.l.b16 %v1951
    %v2376 = vunpack.c.h.b16 %v1951
    %v2377 = vunpack.c.l.b16 %v1952
    %v2378 = vunpack.c.h.b16 %v1952
    %v2379 = vunpack.c.l.b16 %v1953
    %v2380 = vunpack.c.h.b16 %v1953
    %v2381 = vunpack.c.l.b16 %v1954
    %v2382 = vunpack.c.h.b16 %v1954
    %v2383 = vunpack.c.l.b16 %v1955
    %v2384 = vunpack.c.h.b16 %v1955
    %v2385 = vunpack.c.l.b16 %v1956
    %v2386 = vunpack.c.h.b16 %v1956
    %v2387 = vunpack.c.l.b16 %v1957
    %v2388 = vunpack.c.h.b16 %v1957
    %v2389 = vunpack.c.l.b16 %v1958
    %v2390 = vunpack.c.h.b16 %v1958
    %v2391 = vunpack.c.l.b16 %v1959
    %v2392 = vunpack.c.h.b16 %v1959
    %v2393 = vunpack.c.l.b16 %v1960
    %v2394 = vunpack.c.h.b16 %v1960
    %v2395 = vunpack.c.l.b16 %v1961
    %v2396 = vunpack.c.h.b16 %v1961
    %v2397 = vunpack.c.l.b16 %v1962
    %v2398 = vunpack.c.h.b16 %v1962
    %v2399 = vunpack.c.l.b16 %v1963
    %v2400 = vunpack.c.h.b16 %v1963
    %v2401 = vunpack.c.l.b16 %v1964
    %v2402 = vunpack.c.h.b16 %v1964
    %v2403 = vunpack.c.l.b16 %v1965
    %v2404 = vunpack.c.h.b16 %v1965
    %v2405 = vunpack.c.l.b16 %v1966
    %v2406 = vunpack.c.h.b16 %v1966
    %v2407 = vunpack.c.l.b16 %v1967
    %v2408 = vunpack.c.h.b16 %v1967
    %v2409 = vunpack.c.l.b16 %v1968
    %v2410 = vunpack.c.h.b16 %v1968
    %v2411 = vunpack.c.l.b16 %v1969
    %v2412 = vunpack.c.h.b16 %v1969
    %v2413 = vunpack.c.l.b16 %v1970
    %v2414 = vunpack.c.h.b16 %v1970
    %v2415 = vunpack.c.l.b16 %v1971
    %v2416 = vunpack.c.h.b16 %v1971
    %v2417 = vunpack.c.l.b16 %v1972
    %v2418 = vunpack.c.h.b16 %v1972
    %v2419 = vunpack.c.l.b16 %v1973
    %v2420 = vunpack.c.h.b16 %v1973
    %v2421 = vunpack.c.l.b16 %v1974
    %v2422 = vunpack.c.h.b16 %v1974
    %v2423 = vunpack.c.l.b16 %v1975
    %v2424 = vunpack.c.h.b16 %v1975
    %v2425 = vunpack.c.l.b16 %v1976
    %v2426 = vunpack.c.h.b16 %v1976
    %v2427 = vunpack.c.l.b16 %v1977
    %v2428 = vunpack.c.h.b16 %v1977
    %v2429 = vunpack.c.l.b16 %v1978
    %v2430 = vunpack.c.h.b16 %v1978
    %v2431 = vunpack.c.l.b16 %v1979
    %v2432 = vunpack.c.h.b16 %v1979
    %v2433 = vunpack.c.l.b16 %v1980
    %v2434 = vunpack.c.h.b16 %v1980
    %v2435 = vunpack.c.l.b16 %v1981
    %v2436 = vunpack.c.h.b16 %v1981
    %v2437 = vunpack.c.l.b16 %v1982
    %v2438 = vunpack.c.h.b16 %v1982
    %v2439 = vunpack.c.l.b16 %v1983
    %v2440 = vunpack.c.h.b16 %v1983
    %v2441 = vunpack.c.l.b16 %v1984
    %v2442 = vunpack.c.h.b16 %v1984
    %v2443 = vunpack.c.l.b16 %v1985
    %v2444 = vunpack.c.h.b16 %v1985
    %v2445 = vunpack.c.l.b16 %v1986
    %v2446 = vunpack.c.h.b16 %v1986
    %v2447 = vunpack.c.l.b16 %v1987
    %v2448 = vunpack.c.h.b16 %v1987
    %v2449 = vunpack.c.l.b16 %v1988
    %v2450 = vunpack.c.h.b16 %v1988
    %v2451 = vunpack.c.l.b16 %v1989
    %v2452 = vunpack.c.h.b16 %v1989
    %v2453 = vunpack.c.l.b16 %v1990
    %v2454 = vunpack.c.h.b16 %v1990
    %v2455 = vunpack.c.l.b16 %v1991
    %v2456 = vunpack.c.h.b16 %v1991
    %v2457 = vunpack.c.l.b16 %v1992
    %v2458 = vunpack.c.h.b16 %v1992
    %v2459 = vunpack.c.l.b16 %v1993
    %v2460 = vunpack.c.h.b16 %v1993
    %v2461 = vunpack.c.l.b16 %v1994
    %v2462 = vunpack.c.h.b16 %v1994
    %v2463 = vunpack.c.l.b16 %v1995
    %v2464 = vunpack.c.h.b16 %v1995
    %v2465 = vunpack.c.l.b16 %v1996
    %v2466 = vunpack.c.h.b16 %v1996
    %v2467 = vunpack.c.l.b16 %v1997
    %v2468 = vunpack.c.h.b16 %v1997
    %v2469 = vunpack.c.l.b16 %v1998
    %v2470 = vunpack.c.h.b16 %v1998
    %v2471 = vunpack.c.l.b16 %v1999
    %v2472 = vunpack.c.h.b16 %v1999
    %v2473 = vunpack.c.l.b16 %v2000
    %v2474 = vunpack.c.h.b16 %v2000
    %v2475 = vunpack.c.l.b16 %v2001
    %v2476 = vunpack.c.h.b16 %v2001
    %v2477 = vunpack.c.l.b16 %v2002
    %v2478 = vunpack.c.h.b16 %v2002
    %v2479 = vunpack.c.l.b16 %v2003
    %v2480 = vunpack.c.h.b16 %v2003
    %v2481 = vunpack.c.l.b16 %v2004
    %v2482 = vunpack.c.h.b16 %v2004
    %v2483 = vunpack.c.l.b16 %v2005
    %v2484 = vunpack.c.h.b16 %v2005
    %v2485 = vunpack.c.l.b16 %v2006
    %v2486 = vunpack.c.h.b16 %v2006
    %v2487 = vunpack.c.l.b16 %v2007
    %v2488 = vunpack.c.h.b16 %v2007
    %v2489 = vunpack.c.l.b16 %v2008
    %v2490 = vunpack.c.h.b16 %v2008
    %v2491 = vunpack.c.l.b16 %v2009
    %v2492 = vunpack.c.h.b16 %v2009
    %v2493 = vunpack.c.l.b16 %v2010
    %v2494 = vunpack.c.h.b16 %v2010
    %v2495 = vunpack.c.l.b16 %v2011
    %v2496 = vunpack.c.h.b16 %v2011
    %v2497 = vunpack.c.l.b16 %v2012
    %v2498 = vunpack.c.h.b16 %v2012
    %v2499 = vunpack.c.l.b16 %v2013
    %v2500 = vunpack.c.h.b16 %v2013
    %v2501 = vunpack.c.l.b16 %v2014
    %v2502 = vunpack.c.h.b16 %v2014
    %v2503 = vunpack.c.l.b16 %v2015
    %v2504 = vunpack.c.h.b16 %v2015
    %v2505 = vunpack.c.l.b16 %v2016
    %v2506 = vunpack.c.h.b16 %v2016
    %v2507 = vunpack.c.l.b16 %v2017
    %v2508 = vunpack.c.h.b16 %v2017
    %v2509 = vunpack.c.l.b16 %v2018
    %v2510 = vunpack.c.h.b16 %v2018
    %v2511 = vunpack.c.l.b16 %v2019
    %v2512 = vunpack.c.h.b16 %v2019
    %v2513 = vunpack.c.l.b16 %v2020
    %v2514 = vunpack.c.h.b16 %v2020
    %v2515 = vunpack.c.l.b16 %v2021
    %v2516 = vunpack.c.h.b16 %v2021
    %v2517 = vunpack.c.l.b16 %v2022
    %v2518 = vunpack.c.h.b16 %v2022
    %v2519 = vunpack.c.l.b16 %v2023
    %v2520 = vunpack.c.h.b16 %v2023
    %v2521 = vunpack.c.l.b16 %v2024
    %v2522 = vunpack.c.h.b16 %v2024
    %v2523 = vunpack.c.l.b16 %v2025
    %v2524 = vunpack.c.h.b16 %v2025
    %v2525 = vunpack.c.l.b16 %v2026
    %v2526 = vunpack.c.h.b16 %v2026
    %v2527 = vunpack.c.l.b16 %v2027
    %v2528 = vunpack.c.h.b16 %v2027
    %v2529 = vunpack.c.l.b16 %v2028
    %v2530 = vunpack.c.h.b16 %v2028
    %v2531 = vunpack.c.l.b16 %v2029
    %v2532 = vunpack.c.h.b16 %v2029
    %v2533 = vunpack.c.l.b16 %v2030
    %v2534 = vunpack.c.h.b16 %v2030
    %v2535 = vunpack.c.l.b16 %v2031
    %v2536 = vunpack.c.h.b16 %v2031
    %v2537 = vunpack.c.l.b16 %v2032
    %v2538 = vunpack.c.h.b16 %v2032
    %v2539 = vunpack.c.l.b16 %v2033
    %v2540 = vunpack.c.h.b16 %v2033
    %v2541 = vunpack.c.l.b16 %v2034
    %v2542 = vunpack.c.h.b16 %v2034
    %v2543 = vunpack.c.l.b16 %v2035
    %v2544 = vunpack.c.h.b16 %v2035
    %v2545 = vunpack.c.l.b16 %v2036
    %v2546 = vunpack.c.h.b16 %v2036
    %v2547 = vunpack.c.l.b16 %v2037
    %v2548 = vunpack.c.h.b16 %v2037
    %v2549 = vunpack.c.l.b16 %v2038
    %v2550 = vunpack.c.h.b16 %v2038
    %v2551 = vunpack.c.l.b16 %v2039
    %v2552 = vunpack.c.h.b16 %v2039
    %v2553 = vunpack.c.l.b16 %v2040
    %v2554 = vunpack.c.h.b16 %v2040
    %v2555 = vunpack.c.l.b16 %v2041
    %v2556 = vunpack.c.h.b16 %v2041
    %v2557 = vunpack.c.l.b16 %v2042
    %v2558 = vunpack.c.h.b16 %v2042
    %v2559 = vunpack.c.l.b16 %v2043
    %v2560 = vunpack.c.h.b16 %v2043
    %v2561 = vunpack.c.l.b16 %v2044
    %v2562 = vunpack.c.h.b16 %v2044
    %v2563 = vunpack.c.l.b16 %v2045
    %v2564 = vunpack.c.h.b16 %v2045
    %v2565 = vunpack.c.l.b16 %v2046
    %v2566 = vunpack.c.h.b16 %v2046
    %v2567 = vunpack.c.l.b16 %v2047
    %v2568 = vunpack.c.h.b16 %v2047
    %v2569 = vpack.c.b16 %v2315, %v2313
    %v2570 = vpack.c.b16 %v2316, %v2314
    %v2571 = vpack.c.b16 %v2319, %v2317
    %v2572 = vpack.c.b16 %v2320, %v2318
    %v2573 = vpack.c.b16 %v2323, %v2321
    %v2574 = vpack.c.b16 %v2324, %v2322
    %v2575 = vpack.c.b16 %v2327, %v2325
    %v2576 = vpack.c.b16 %v2328, %v2326
    %v2577 = vpack.c.b16 %v2331, %v2329
    %v2578 = vpack.c.b16 %v2332, %v2330
    %v2579 = vpack.c.b16 %v2335, %v2333
    %v2580 = vpack.c.b16 %v2336, %v2334
    %v2581 = vpack.c.b16 %v2339, %v2337
    %v2582 = vpack.c.b16 %v2340, %v2338
    %v2583 = vpack.c.b16 %v2343, %v2341
    %v2584 = vpack.c.b16 %v2344, %v2342
    %v2585 = vpack.c.b16 %v2347, %v2345
    %v2586 = vpack.c.b16 %v2348, %v2346
    %v2587 = vpack.c.b16 %v2351, %v2349
    %v2588 = vpack.c.b16 %v2352, %v2350
    %v2589 = vpack.c.b16 %v2355, %v2353
    %v2590 = vpack.c.b16 %v2356, %v2354
    %v2591 = vpack.c.b16 %v2359, %v2357
    %v2592 = vpack.c.b16 %v2360, %v2358
    %v2593 = vpack.c.b16 %v2363, %v2361
    %v2594 = vpack.c.b16 %v2364, %v2362
    %v2595 = vpack.c.b16 %v2367, %v2365
    %v2596 = vpack.c.b16 %v2368, %v2366
    %v2597 = vpack.c.b16 %v2371, %v2369
    %v2598 = vpack.c.b16 %v2372, %v2370
    %v2599 = vpack.c.b16 %v2375, %v2373
    %v2600 = vpack.c.b16 %v2376, %v2374
    %v2601 = vpack.c.b16 %v2379, %v2377
    %v2602 = vpack.c.b16 %v2380, %v2378
    %v2603 = vpack.c.b16 %v2383, %v2381
    %v2604 = vpack.c.b16 %v2384, %v2382
    %v2605 = vpack.c.b16 %v2387, %v2385
    %v2606 = vpack.c.b16 %v2388, %v2386
    %v2607 = vpack.c.b16 %v2391, %v2389
    %v2608 = vpack.c.b16 %v2392, %v2390
    %v2609 = vpack.c.b16 %v2395, %v2393
    %v2610 = vpack.c.b16 %v2396, %v2394
    %v2611 = vpack.c.b16 %v2399, %v2397
    %v2612 = vpack.c.b16 %v2400, %v2398
    %v2613 = vpack.c.b16 %v2403, %v2401
    %v2614 = vpack.c.b16 %v2404, %v2402
    %v2615 = vpack.c.b16 %v2407, %v2405
    %v2616 = vpack.c.b16 %v2408, %v2406
    %v2617 = vpack.c.b16 %v2411, %v2409
    %v2618 = vpack.c.b16 %v2412, %v2410
    %v2619 = vpack.c.b16 %v2415, %v2413
    %v2620 = vpack.c.b16 %v2416, %v2414
    %v2621 = vpack.c.b16 %v2419, %v2417
    %v2622 = vpack.c.b16 %v2420, %v2418
    %v2623 = vpack.c.b16 %v2423, %v2421
    %v2624 = vpack.c.b16 %v2424, %v2422
    %v2625 = vpack.c.b16 %v2427, %v2425
    %v2626 = vpack.c.b16 %v2428, %v2426
    %v2627 = vpack.c.b16 %v2431, %v2429
    %v2628 = vpack.c.b16 %v2432, %v2430
    %v2629 = vpack.c.b16 %v2435, %v2433
    %v2630 = vpack.c.b16 %v2436, %v2434
    %v2631 = vpack.c.b16 %v2439, %v2437
    %v2632 = vpack.c.b16 %v2440, %v2438
    %v2633 = vpack.c.b16 %v2443, %v2441
    %v2634 = vpack.c.b16 %v2444, %v2442
    %v2635 = vpack.c.b16 %v2447, %v2445
    %v2636 = vpack.c.b16 %v2448, %v2446
    %v2637 = vpack.c.b16 %v2451, %v2449
    %v2638 = vpack.c.b16 %v2452, %v2450
    %v2639 = vpack.c.b16 %v2455, %v2453
    %v2640 = vpack.c.b16 %v2456, %v2454
    %v2641 = vpack.c.b16 %v2459, %v2457
    %v2642 = vpack.c.b16 %v2460, %v2458
    %v2643 = vpack.c.b16 %v2463, %v2461
    %v2644 = vpack.c.b16 %v2464, %v2462
    %v2645 = vpack.c.b16 %v2467, %v2465
    %v2646 = vpack.c.b16 %v2468, %v2466
    %v2647 = vpack.c.b16 %v2471, %v2469
    %v2648 = vpack.c.b16 %v2472, %v2470
    %v2649 = vpack.c.b16 %v2475, %v2473
    %v2650 = vpack.c.b16 %v2476, %v2474
    %v2651 = vpack.c.b16 %v2479, %v2477
    %v2652 = vpack.c.b16 %v2480, %v2478
    %v2653 = vpack.c.b16 %v2483, %v2481
    %v2654 = vpack.c.b16 %v2484, %v2482
    %v2655 = vpack.c.b16 %v2487, %v2485
    %v2656 = vpack.c.b16 %v2488, %v2486
    %v2657 = vpack.c.b16 %v2491, %v2489
    %v2658 = vpack.c.b16 %v2492, %v2490
    %v2659 = vpack.c.b16 %v2495, %v2493
    %v2660 = vpack.c.b16 %v2496, %v2494
    %v2661 = vpack.c.b16 %v2499, %v2497
    %v2662 = vpack.c.b16 %v2500, %v2498
    %v2663 = vpack.c.b16 %v2503, %v2501
    %v2664 = vpack.c.b16 %v2504, %v2502
    %v2665 = vpack.c.b16 %v2507, %v2505
    %v2666 = vpack.c.b16 %v2508, %v2506
    %v2667 = vpack.c.b16 %v2511, %v2509
    %v2668 = vpack.c.b16 %v2512, %v2510
    %v2669 = vpack.c.b16 %v2515, %v2513
    %v2670 = vpack.c.b16 %v2516, %v2514
    %v2671 = vpack.c.b16 %v2519, %v2517
    %v2672 = vpack.c.b16 %v2520, %v2518
    %v2673 = vpack.c.b16 %v2523, %v2521
    %v2674 = vpack.c.b16 %v2524, %v2522
    %v2675 = vpack.c.b16 %v2527, %v2525
    %v2676 = vpack.c.b16 %v2528, %v2526
    %v2677 = vpack.c.b16 %v2531, %v2529
    %v2678 = vpack.c.b16 %v2532, %v2530
    %v2679 = vpack.c.b16 %v2535, %v2533
    %v2680 = vpack.c.b16 %v2536, %v2534
    %v2681 = vpack.c.b16 %v2539, %v2537
    %v2682 = vpack.c.b16 %v2540, %v2538
    %v2683 = vpack.c.b16 %v2543, %v2541
    %v2684 = vpack.c.b16 %v2544, %v2542
    %v2685 = vpack.c.b16 %v2547, %v2545
    %v2686 = vpack.c.b16 %v2548, %v2546
    %v2687 = vpack.c.b16 %v2551, %v2549
    %v2688 = vpack.c.b16 %v2552, %v2550
    %v2689 = vpack.c.b16 %v2555, %v2553
    %v2690 = vpack.c.b16 %v2556, %v2554
    %v2691 = vpack.c.b16 %v2559, %v2557
    %v2692 = vpack.c.b16 %v2560, %v2558
    %v2693 = vpack.c.b16 %v2563, %v2561
    %v2694 = vpack.c.b16 %v2564, %v2562
    %v2695 = vpack.c.b16 %v2567, %v2565
    %v2696 = vpack.c.b16 %v2568, %v2566
    %2825 = vmatprep.subr.bf16.mxu0 %v2570
    %2826 = vmatpush1.bf16.msra.mxu0 %v2569
    %2827 = vmatprep.subr.bf16.mxu0 %v2572
    %2828 = vmatpush1.bf16.msra.mxu0 %v2571
    %2829 = vmatprep.subr.bf16.mxu0 %v2574
    %2830 = vmatpush1.bf16.msra.mxu0 %v2573
    %2831 = vmatprep.subr.bf16.mxu0 %v2576
    %2832 = vmatpush1.bf16.msra.mxu0 %v2575
    %2833 = vmatprep.subr.bf16.mxu0 %v2578
    %2834 = vmatpush1.bf16.msra.mxu0 %v2577
    %2835 = vmatprep.subr.bf16.mxu0 %v2580
    %2836 = vmatpush1.bf16.msra.mxu0 %v2579
    %2837 = vmatprep.subr.bf16.mxu0 %v2582
    %2838 = vmatpush1.bf16.msra.mxu0 %v2581
    %2839 = vmatprep.subr.bf16.mxu0 %v2584
    %2840 = vmatpush1.bf16.msra.mxu0 %v2583
    %2841 = vmatprep.subr.bf16.mxu0 %v2586
    %2842 = vmatpush1.bf16.msra.mxu0 %v2585
    %2843 = vmatprep.subr.bf16.mxu0 %v2588
    %2844 = vmatpush1.bf16.msra.mxu0 %v2587
    %2845 = vmatprep.subr.bf16.mxu0 %v2590
    %2846 = vmatpush1.bf16.msra.mxu0 %v2589
    %2847 = vmatprep.subr.bf16.mxu0 %v2592
    %2848 = vmatpush1.bf16.msra.mxu0 %v2591
    %2849 = vmatprep.subr.bf16.mxu0 %v2594
    %2850 = vmatpush1.bf16.msra.mxu0 %v2593
    %2851 = vmatprep.subr.bf16.mxu0 %v2596
    %2852 = vmatpush1.bf16.msra.mxu0 %v2595
    %2853 = vmatprep.subr.bf16.mxu0 %v2598
    %2854 = vmatpush1.bf16.msra.mxu0 %v2597
    %2855 = vmatprep.subr.bf16.mxu0 %v2600
    %2856 = vmatpush1.bf16.msra.mxu0 %v2599
    %2857 = vmatprep.mubr.bf16.mxu0 %v362
    %2858 = vmatmul.mubr.bf16.gmra.mrb[0].mxu0 %v361
    %v2859 = vpop.f32.mrb[0].mxu0
    %v2860 = vadd.f32 %v2179, %v2859
    %v2861 = vpop.f32.mrb[0].mxu0
    %v2862 = vadd.f32 %v2181, %v2861
    %v2863 = vpop.f32.mrb[0].mxu0
    %v2864 = vpop.f32.mrb[0].mxu0
    %2865 = vdwg.mxu0
    %2866 = vmatprep.subr.bf16.mxu0 %v2602
    %2867 = vmatpush1.bf16.msra.mxu0 %v2601
    %2868 = vmatprep.subr.bf16.mxu0 %v2604
    %2869 = vmatpush1.bf16.msra.mxu0 %v2603
    %2870 = vmatprep.subr.bf16.mxu0 %v2606
    %2871 = vmatpush1.bf16.msra.mxu0 %v2605
    %2872 = vmatprep.subr.bf16.mxu0 %v2608
    %2873 = vmatpush1.bf16.msra.mxu0 %v2607
    %2874 = vmatprep.subr.bf16.mxu0 %v2610
    %2875 = vmatpush1.bf16.msra.mxu0 %v2609
    %2876 = vmatprep.subr.bf16.mxu0 %v2612
    %2877 = vmatpush1.bf16.msra.mxu0 %v2611
    %2878 = vmatprep.subr.bf16.mxu0 %v2614
    %2879 = vmatpush1.bf16.msra.mxu0 %v2613
    %2880 = vmatprep.subr.bf16.mxu0 %v2616
    %2881 = vmatpush1.bf16.msra.mxu0 %v2615
    %2882 = vmatprep.subr.bf16.mxu0 %v2618
    %2883 = vmatpush1.bf16.msra.mxu0 %v2617
    %2884 = vmatprep.subr.bf16.mxu0 %v2620
    %2885 = vmatpush1.bf16.msra.mxu0 %v2619
    %2886 = vmatprep.subr.bf16.mxu0 %v2622
    %2887 = vmatpush1.bf16.msra.mxu0 %v2621
    %2888 = vmatprep.subr.bf16.mxu0 %v2624
    %2889 = vmatpush1.bf16.msra.mxu0 %v2623
    %2890 = vmatprep.subr.bf16.mxu0 %v2626
    %2891 = vmatpush1.bf16.msra.mxu0 %v2625
    %2892 = vmatprep.subr.bf16.mxu0 %v2628
    %2893 = vmatpush1.bf16.msra.mxu0 %v2627
    %2894 = vmatprep.subr.bf16.mxu0 %v2630
    %2895 = vmatpush1.bf16.msra.mxu0 %v2629
    %2896 = vmatprep.subr.bf16.mxu0 %v2632
    %2897 = vmatpush1.bf16.msra.mxu0 %v2631
    %2898 = vmatprep.mubr.bf16.mxu0 %v364
    %2899 = vmatmul.mubr.bf16.gmra.mrb[0].mxu0 %v363
    %v2900 = vpop.f32.mrb[0].mxu0
    %v2901 = vadd.f32 %v2860, %v2900
    %v2902 = vpop.f32.mrb[0].mxu0
    %v2903 = vadd.f32 %v2862, %v2902
    %v2904 = vpop.f32.mrb[0].mxu0
    %v2905 = vpop.f32.mrb[0].mxu0
    %2906 = vdwg.mxu0
    %2907 = vmatprep.subr.bf16.mxu0 %v2634
    %2908 = vmatpush1.bf16.msra.mxu0 %v2633
    %2909 = vmatprep.subr.bf16.mxu0 %v2636
    %2910 = vmatpush1.bf16.msra.mxu0 %v2635
    %2911 = vmatprep.subr.bf16.mxu0 %v2638
    %2912 = vmatpush1.bf16.msra.mxu0 %v2637
    %2913 = vmatprep.subr.bf16.mxu0 %v2640
    %2914 = vmatpush1.bf16.msra.mxu0 %v2639
    %2915 = vmatprep.subr.bf16.mxu0 %v2642
    %2916 = vmatpush1.bf16.msra.mxu0 %v2641
    %2917 = vmatprep.subr.bf16.mxu0 %v2644
    %2918 = vmatpush1.bf16.msra.mxu0 %v2643
    %2919 = vmatprep.subr.bf16.mxu0 %v2646
    %2920 = vmatpush1.bf16.msra.mxu0 %v2645
    %2921 = vmatprep.subr.bf16.mxu0 %v2648
    %2922 = vmatpush1.bf16.msra.mxu0 %v2647
    %2923 = vmatprep.subr.bf16.mxu0 %v2650
    %2924 = vmatpush1.bf16.msra.mxu0 %v2649
    %2925 = vmatprep.subr.bf16.mxu0 %v2652
    %2926 = vmatpush1.bf16.msra.mxu0 %v2651
    %2927 = vmatprep.subr.bf16.mxu0 %v2654
    %2928 = vmatpush1.bf16.msra.mxu0 %v2653
    %2929 = vmatprep.subr.bf16.mxu0 %v2656
    %2930 = vmatpush1.bf16.msra.mxu0 %v2655
    %2931 = vmatprep.subr.bf16.mxu0 %v2658
    %2932 = vmatpush1.bf16.msra.mxu0 %v2657
    %2933 = vmatprep.subr.bf16.mxu0 %v2660
    %2934 = vmatpush1.bf16.msra.mxu0 %v2659
    %2935 = vmatprep.subr.bf16.mxu0 %v2662
    %2936 = vmatpush1.bf16.msra.mxu0 %v2661
    %2937 = vmatprep.subr.bf16.mxu0 %v2664
    %2938 = vmatpush1.bf16.msra.mxu0 %v2663
    %2939 = vmatprep.mubr.bf16.mxu0 %v366
    %2940 = vmatmul.mubr.bf16.gmra.mrb[0].mxu0 %v365
    %v2941 = vpop.f32.mrb[0].mxu0
    %v2942 = vadd.f32 %v2901, %v2941
    %v2943 = vpop.f32.mrb[0].mxu0
    %v2944 = vadd.f32 %v2903, %v2943
    %v2945 = vpop.f32.mrb[0].mxu0
    %v2946 = vpop.f32.mrb[0].mxu0
    %2947 = vdwg.mxu0
    %2948 = vmatprep.subr.bf16.mxu0 %v2666
    %2949 = vmatpush1.bf16.msra.mxu0 %v2665
    %2950 = vmatprep.subr.bf16.mxu0 %v2668
    %2951 = vmatpush1.bf16.msra.mxu0 %v2667
    %2952 = vmatprep.subr.bf16.mxu0 %v2670
    %2953 = vmatpush1.bf16.msra.mxu0 %v2669
    %2954 = vmatprep.subr.bf16.mxu0 %v2672
    %2955 = vmatpush1.bf16.msra.mxu0 %v2671
    %2956 = vmatprep.subr.bf16.mxu0 %v2674
    %2957 = vmatpush1.bf16.msra.mxu0 %v2673
    %2958 = vmatprep.subr.bf16.mxu0 %v2676
    %2959 = vmatpush1.bf16.msra.mxu0 %v2675
    %2960 = vmatprep.subr.bf16.mxu0 %v2678
    %2961 = vmatpush1.bf16.msra.mxu0 %v2677
    %2962 = vmatprep.subr.bf16.mxu0 %v2680
    %2963 = vmatpush1.bf16.msra.mxu0 %v2679
    %2964 = vmatprep.subr.bf16.mxu0 %v2682
    %2965 = vmatpush1.bf16.msra.mxu0 %v2681
    %2966 = vmatprep.subr.bf16.mxu0 %v2684
    %2967 = vmatpush1.bf16.msra.mxu0 %v2683
    %2968 = vmatprep.subr.bf16.mxu0 %v2686
    %2969 = vmatpush1.bf16.msra.mxu0 %v2685
    %2970 = vmatprep.subr.bf16.mxu0 %v2688
    %2971 = vmatpush1.bf16.msra.mxu0 %v2687
    %2972 = vmatprep.subr.bf16.mxu0 %v2690
    %2973 = vmatpush1.bf16.msra.mxu0 %v2689
    %2974 = vmatprep.subr.bf16.mxu0 %v2692
    %2975 = vmatpush1.bf16.msra.mxu0 %v2691
    %2976 = vmatprep.subr.bf16.mxu0 %v2694
    %2977 = vmatpush1.bf16.msra.mxu0 %v2693
    %2978 = vmatprep.subr.bf16.mxu0 %v2696
    %2979 = vmatpush1.bf16.msra.mxu0 %v2695
    %2980 = vmatprep.mubr.bf16.mxu0 %v368
    %2981 = vmatmul.mubr.bf16.gmra.mrb[0].mxu0 %v367
    %v2982 = vpop.f32.mrb[0].mxu0
    %v2983 = vadd.f32 %v2942, %v2982
    %v2984 = vpop.f32.mrb[0].mxu0
    %v2985 = vadd.f32 %v2944, %v2984
    %v2986 = vpop.f32.mrb[0].mxu0
    %v2987 = vpop.f32.mrb[0].mxu0
    %2988 = vdwg.mxu0
    %v2989 = vld [vmem:[%s29] sm:$0x3]
    %v2991 = vlaneseq
    %v2992 = vshrl.u32 %v2991, 7
    %v2993 = vsub.s32 0, %v2992
    %v2994 = vrot.slane %v2989, %v2993
    %v2995 = vlaneseq
    %v2996 = vshrl.u32 %v2995, 7
    %v2997 = vsub.s32 1, %v2996
    %v2998 = vrot.slane %v2989, %v2997
    %v3001 = vadd.f32 %v2983, %v2994
    %v3002 = vadd.f32 %v2985, %v2998
    %v3003 = vmax.f32 %v3001, 0.0
    %v3004 = vmax.f32 %v3002, 0.0
    %v3005 = vpack.c.bf16 %v3003, %v3003
    %v3006 = vpack.c.bf16 %v3004, %v3004
    %v3007 = vld [vmem:[#allocation10] sm:$0xff]
    %v3008 = vld [vmem:[#allocation10 + $0x8] sm:$0xff]
    %v3009 = vld [vmem:[#allocation10 + $0x10] sm:$0xff]
    %v3010 = vld [vmem:[#allocation10 + $0x18] sm:$0xff]
    %v3011 = vld [vmem:[#allocation10 + $0x20] sm:$0xff]
    %v3012 = vld [vmem:[#allocation10 + $0x28] sm:$0xff]
    %v3013 = vld [vmem:[#allocation10 + $0x30] sm:$0xff]
    %v3014 = vld [vmem:[#allocation10 + $0x38] sm:$0xff]
    %v3015 = vld [vmem:[#allocation10 + $0x40] sm:$0xff]
    %v3016 = vld [vmem:[#allocation10 + $0x48] sm:$0xff]
    %v3017 = vld [vmem:[#allocation10 + $0x50] sm:$0xff]
    %v3018 = vld [vmem:[#allocation10 + $0x58] sm:$0xff]
    %v3019 = vld [vmem:[#allocation10 + $0x60] sm:$0xff]
    %v3020 = vld [vmem:[#allocation10 + $0x68] sm:$0xff]
    %v3021 = vld [vmem:[#allocation10 + $0x70] sm:$0xff]
    %v3022 = vld [vmem:[#allocation10 + $0x78] sm:$0xff]
    %v3023 = vld [vmem:[#allocation10 + $0x80] sm:$0xff]
    %v3024 = vld [vmem:[#allocation10 + $0x88] sm:$0xff]
    %v3025 = vld [vmem:[#allocation10 + $0x90] sm:$0xff]
    %v3026 = vld [vmem:[#allocation10 + $0x98] sm:$0xff]
    %v3027 = vld [vmem:[#allocation10 + $0xa0] sm:$0xff]
    %v3028 = vld [vmem:[#allocation10 + $0xa8] sm:$0xff]
    %v3029 = vld [vmem:[#allocation10 + $0xb0] sm:$0xff]
    %v3030 = vld [vmem:[#allocation10 + $0xb8] sm:$0xff]
    %v3031 = vld [vmem:[#allocation10 + $0xc0] sm:$0xff]
    %v3032 = vld [vmem:[#allocation10 + $0xc8] sm:$0xff]
    %v3033 = vld [vmem:[#allocation10 + $0xd0] sm:$0xff]
    %v3034 = vld [vmem:[#allocation10 + $0xd8] sm:$0xff]
    %v3035 = vld [vmem:[#allocation10 + $0xe0] sm:$0xff]
    %v3036 = vld [vmem:[#allocation10 + $0xe8] sm:$0xff]
    %v3037 = vld [vmem:[#allocation10 + $0xf0] sm:$0xff]
    %v3038 = vld [vmem:[#allocation10 + $0xf8] sm:$0xff]
    %v3039 = vld [vmem:[%s33] sm:$0x3]
    %v3041 = vlaneseq
    %v3042 = vshrl.u32 %v3041, 7
    %v3043 = vsub.s32 0, %v3042
    %v3044 = vrot.slane %v3039, %v3043
    %v3045 = vlaneseq
    %v3046 = vshrl.u32 %v3045, 7
    %v3047 = vsub.s32 1, %v3046
    %v3048 = vrot.slane %v3039, %v3047
    %v3083 = vunpack.c.l.b16 %v3007
    %v3084 = vunpack.c.h.b16 %v3007
    %v3085 = vunpack.c.l.b16 %v3008
    %v3086 = vunpack.c.h.b16 %v3008
    %v3087 = vunpack.c.l.b16 %v3009
    %v3088 = vunpack.c.h.b16 %v3009
    %v3089 = vunpack.c.l.b16 %v3010
    %v3090 = vunpack.c.h.b16 %v3010
    %v3091 = vunpack.c.l.b16 %v3011
    %v3092 = vunpack.c.h.b16 %v3011
    %v3093 = vunpack.c.l.b16 %v3012
    %v3094 = vunpack.c.h.b16 %v3012
    %v3095 = vunpack.c.l.b16 %v3013
    %v3096 = vunpack.c.h.b16 %v3013
    %v3097 = vunpack.c.l.b16 %v3014
    %v3098 = vunpack.c.h.b16 %v3014
    %v3099 = vunpack.c.l.b16 %v3015
    %v3100 = vunpack.c.h.b16 %v3015
    %v3101 = vunpack.c.l.b16 %v3016
    %v3102 = vunpack.c.h.b16 %v3016
    %v3103 = vunpack.c.l.b16 %v3017
    %v3104 = vunpack.c.h.b16 %v3017
    %v3105 = vunpack.c.l.b16 %v3018
    %v3106 = vunpack.c.h.b16 %v3018
    %v3107 = vunpack.c.l.b16 %v3019
    %v3108 = vunpack.c.h.b16 %v3019
    %v3109 = vunpack.c.l.b16 %v3020
    %v3110 = vunpack.c.h.b16 %v3020
    %v3111 = vunpack.c.l.b16 %v3021
    %v3112 = vunpack.c.h.b16 %v3021
    %v3113 = vunpack.c.l.b16 %v3022
    %v3114 = vunpack.c.h.b16 %v3022
    %v3115 = vunpack.c.l.b16 %v3023
    %v3116 = vunpack.c.h.b16 %v3023
    %v3117 = vunpack.c.l.b16 %v3024
    %v3118 = vunpack.c.h.b16 %v3024
    %v3119 = vunpack.c.l.b16 %v3025
    %v3120 = vunpack.c.h.b16 %v3025
    %v3121 = vunpack.c.l.b16 %v3026
    %v3122 = vunpack.c.h.b16 %v3026
    %v3123 = vunpack.c.l.b16 %v3027
    %v3124 = vunpack.c.h.b16 %v3027
    %v3125 = vunpack.c.l.b16 %v3028
    %v3126 = vunpack.c.h.b16 %v3028
    %v3127 = vunpack.c.l.b16 %v3029
    %v3128 = vunpack.c.h.b16 %v3029
    %v3129 = vunpack.c.l.b16 %v3030
    %v3130 = vunpack.c.h.b16 %v3030
    %v3131 = vunpack.c.l.b16 %v3031
    %v3132 = vunpack.c.h.b16 %v3031
    %v3133 = vunpack.c.l.b16 %v3032
    %v3134 = vunpack.c.h.b16 %v3032
    %v3135 = vunpack.c.l.b16 %v3033
    %v3136 = vunpack.c.h.b16 %v3033
    %v3137 = vunpack.c.l.b16 %v3034
    %v3138 = vunpack.c.h.b16 %v3034
    %v3139 = vunpack.c.l.b16 %v3035
    %v3140 = vunpack.c.h.b16 %v3035
    %v3141 = vunpack.c.l.b16 %v3036
    %v3142 = vunpack.c.h.b16 %v3036
    %v3143 = vunpack.c.l.b16 %v3037
    %v3144 = vunpack.c.h.b16 %v3037
    %v3145 = vunpack.c.l.b16 %v3038
    %v3146 = vunpack.c.h.b16 %v3038
    %v3147 = vpack.c.b16 %v3085, %v3083
    %v3148 = vpack.c.b16 %v3086, %v3084
    %v3149 = vpack.c.b16 %v3089, %v3087
    %v3150 = vpack.c.b16 %v3090, %v3088
    %v3151 = vpack.c.b16 %v3093, %v3091
    %v3152 = vpack.c.b16 %v3094, %v3092
    %v3153 = vpack.c.b16 %v3097, %v3095
    %v3154 = vpack.c.b16 %v3098, %v3096
    %v3155 = vpack.c.b16 %v3101, %v3099
    %v3156 = vpack.c.b16 %v3102, %v3100
    %v3157 = vpack.c.b16 %v3105, %v3103
    %v3158 = vpack.c.b16 %v3106, %v3104
    %v3159 = vpack.c.b16 %v3109, %v3107
    %v3160 = vpack.c.b16 %v3110, %v3108
    %v3161 = vpack.c.b16 %v3113, %v3111
    %v3162 = vpack.c.b16 %v3114, %v3112
    %v3163 = vpack.c.b16 %v3117, %v3115
    %v3164 = vpack.c.b16 %v3118, %v3116
    %v3165 = vpack.c.b16 %v3121, %v3119
    %v3166 = vpack.c.b16 %v3122, %v3120
    %v3167 = vpack.c.b16 %v3125, %v3123
    %v3168 = vpack.c.b16 %v3126, %v3124
    %v3169 = vpack.c.b16 %v3129, %v3127
    %v3170 = vpack.c.b16 %v3130, %v3128
    %v3171 = vpack.c.b16 %v3133, %v3131
    %v3172 = vpack.c.b16 %v3134, %v3132
    %v3173 = vpack.c.b16 %v3137, %v3135
    %v3174 = vpack.c.b16 %v3138, %v3136
    %v3175 = vpack.c.b16 %v3141, %v3139
    %v3176 = vpack.c.b16 %v3142, %v3140
    %v3177 = vpack.c.b16 %v3145, %v3143
    %v3178 = vpack.c.b16 %v3146, %v3144
    %3211 = vmatprep.subr.bf16.mxu0 %v3148
    %3212 = vmatpush1.bf16.msra.mxu0 %v3147
    %3213 = vmatprep.subr.bf16.mxu0 %v3150
    %3214 = vmatpush1.bf16.msra.mxu0 %v3149
    %3215 = vmatprep.subr.bf16.mxu0 %v3152
    %3216 = vmatpush1.bf16.msra.mxu0 %v3151
    %3217 = vmatprep.subr.bf16.mxu0 %v3154
    %3218 = vmatpush1.bf16.msra.mxu0 %v3153
    %3219 = vmatprep.subr.bf16.mxu0 %v3156
    %3220 = vmatpush1.bf16.msra.mxu0 %v3155
    %3221 = vmatprep.subr.bf16.mxu0 %v3158
    %3222 = vmatpush1.bf16.msra.mxu0 %v3157
    %3223 = vmatprep.subr.bf16.mxu0 %v3160
    %3224 = vmatpush1.bf16.msra.mxu0 %v3159
    %3225 = vmatprep.subr.bf16.mxu0 %v3162
    %3226 = vmatpush1.bf16.msra.mxu0 %v3161
    %3227 = vmatprep.subr.bf16.mxu0 %v3164
    %3228 = vmatpush1.bf16.msra.mxu0 %v3163
    %3229 = vmatprep.subr.bf16.mxu0 %v3166
    %3230 = vmatpush1.bf16.msra.mxu0 %v3165
    %3231 = vmatprep.subr.bf16.mxu0 %v3168
    %3232 = vmatpush1.bf16.msra.mxu0 %v3167
    %3233 = vmatprep.subr.bf16.mxu0 %v3170
    %3234 = vmatpush1.bf16.msra.mxu0 %v3169
    %3235 = vmatprep.subr.bf16.mxu0 %v3172
    %3236 = vmatpush1.bf16.msra.mxu0 %v3171
    %3237 = vmatprep.subr.bf16.mxu0 %v3174
    %3238 = vmatpush1.bf16.msra.mxu0 %v3173
    %3239 = vmatprep.subr.bf16.mxu0 %v3176
    %3240 = vmatpush1.bf16.msra.mxu0 %v3175
    %3241 = vmatprep.subr.bf16.mxu0 %v3178
    %3242 = vmatpush1.bf16.msra.mxu0 %v3177
    %3243 = vmatprep.mubr.bf16.mxu0 %v3006
    %3244 = vmatmul.mubr.bf16.gmra.mrb[0].mxu0 %v3005
    %v3245 = vpop.f32.mrb[0].mxu0
    %v3246 = vadd.f32 %v3044, %v3245
    %v3247 = vpop.f32.mrb[0].mxu0
    %v3248 = vadd.f32 %v3048, %v3247
    %v3249 = vpop.f32.mrb[0].mxu0
    %v3250 = vpop.f32.mrb[0].mxu0
    %3251 = vdwg.mxu0
    %v3252 = vmax.f32 %v3246, 0.0
    %v3253 = vmax.f32 %v3248, 0.0
    %v3254 = vpack.c.bf16 %v3252, %v3252
    %v3255 = vpack.c.bf16 %v3253, %v3253
    %v3256 = vld [vmem:[#allocation12] sm:$0xf]
    %v3257 = vld [vmem:[#allocation12 + $0x4] sm:$0xf]
    %v3258 = vld [vmem:[#allocation12 + $0x8] sm:$0xf]
    %v3259 = vld [vmem:[#allocation12 + $0xc] sm:$0xf]
    %v3260 = vld [vmem:[#allocation12 + $0x10] sm:$0xf]
    %v3261 = vld [vmem:[#allocation12 + $0x14] sm:$0xf]
    %v3262 = vld [vmem:[#allocation12 + $0x18] sm:$0xf]
    %v3263 = vld [vmem:[#allocation12 + $0x1c] sm:$0xf]
    %v3264 = vld [vmem:[#allocation12 + $0x20] sm:$0xf]
    %v3265 = vld [vmem:[#allocation12 + $0x24] sm:$0xf]
    %v3266 = vld [vmem:[#allocation12 + $0x28] sm:$0xf]
    %v3267 = vld [vmem:[#allocation12 + $0x2c] sm:$0xf]
    %v3268 = vld [vmem:[#allocation12 + $0x30] sm:$0xf]
    %v3269 = vld [vmem:[#allocation12 + $0x34] sm:$0xf]
    %v3270 = vld [vmem:[#allocation12 + $0x38] sm:$0xf]
    %v3271 = vld [vmem:[#allocation12 + $0x3c] sm:$0xf]
    %v3272 = vld [vmem:[#allocation12 + $0x40] sm:$0xf]
    %v3273 = vld [vmem:[#allocation12 + $0x44] sm:$0xf]
    %v3274 = vld [vmem:[#allocation12 + $0x48] sm:$0xf]
    %v3275 = vld [vmem:[#allocation12 + $0x4c] sm:$0xf]
    %v3276 = vld [vmem:[#allocation12 + $0x50] sm:$0xf]
    %v3277 = vld [vmem:[#allocation12 + $0x54] sm:$0xf]
    %v3278 = vld [vmem:[#allocation12 + $0x58] sm:$0xf]
    %v3279 = vld [vmem:[#allocation12 + $0x5c] sm:$0xf]
    %v3280 = vld [vmem:[#allocation12 + $0x60] sm:$0xf]
    %v3281 = vld [vmem:[#allocation12 + $0x64] sm:$0xf]
    %v3282 = vld [vmem:[#allocation12 + $0x68] sm:$0xf]
    %v3283 = vld [vmem:[#allocation12 + $0x6c] sm:$0xf]
    %v3284 = vld [vmem:[#allocation12 + $0x70] sm:$0xf]
    %v3285 = vld [vmem:[#allocation12 + $0x74] sm:$0xf]
    %v3286 = vld [vmem:[#allocation12 + $0x78] sm:$0xf]
    %v3287 = vld [vmem:[#allocation12 + $0x7c] sm:$0xf]
    %v3288 = vld [vmem:[#allocation13] sm:$0x1]
    %v3290 = vlaneseq
    %v3291 = vshrl.u32 %v3290, 7
    %v3292 = vsub.s32 0, %v3291
    %v3293 = vrot.slane %v3288, %v3292
    %v3327 = vunpack.c.l.b16 %v3256
    %v3328 = vunpack.c.l.b16 %v3257
    %v3329 = vunpack.c.l.b16 %v3258
    %v3330 = vunpack.c.l.b16 %v3259
    %v3331 = vunpack.c.l.b16 %v3260
    %v3332 = vunpack.c.l.b16 %v3261
    %v3333 = vunpack.c.l.b16 %v3262
    %v3334 = vunpack.c.l.b16 %v3263
    %v3335 = vunpack.c.l.b16 %v3264
    %v3336 = vunpack.c.l.b16 %v3265
    %v3337 = vunpack.c.l.b16 %v3266
    %v3338 = vunpack.c.l.b16 %v3267
    %v3339 = vunpack.c.l.b16 %v3268
    %v3340 = vunpack.c.l.b16 %v3269
    %v3341 = vunpack.c.l.b16 %v3270
    %v3342 = vunpack.c.l.b16 %v3271
    %v3343 = vunpack.c.l.b16 %v3272
    %v3344 = vunpack.c.l.b16 %v3273
    %v3345 = vunpack.c.l.b16 %v3274
    %v3346 = vunpack.c.l.b16 %v3275
    %v3347 = vunpack.c.l.b16 %v3276
    %v3348 = vunpack.c.l.b16 %v3277
    %v3349 = vunpack.c.l.b16 %v3278
    %v3350 = vunpack.c.l.b16 %v3279
    %v3351 = vunpack.c.l.b16 %v3280
    %v3352 = vunpack.c.l.b16 %v3281
    %v3353 = vunpack.c.l.b16 %v3282
    %v3354 = vunpack.c.l.b16 %v3283
    %v3355 = vunpack.c.l.b16 %v3284
    %v3356 = vunpack.c.l.b16 %v3285
    %v3357 = vunpack.c.l.b16 %v3286
    %v3358 = vunpack.c.l.b16 %v3287
    %v3359 = vpack.c.b16 %v3328, %v3327
    %v3360 = vpack.c.b16 %v3330, %v3329
    %v3361 = vpack.c.b16 %v3332, %v3331
    %v3362 = vpack.c.b16 %v3334, %v3333
    %v3363 = vpack.c.b16 %v3336, %v3335
    %v3364 = vpack.c.b16 %v3338, %v3337
    %v3365 = vpack.c.b16 %v3340, %v3339
    %v3366 = vpack.c.b16 %v3342, %v3341
    %v3367 = vpack.c.b16 %v3344, %v3343
    %v3368 = vpack.c.b16 %v3346, %v3345
    %v3369 = vpack.c.b16 %v3348, %v3347
    %v3370 = vpack.c.b16 %v3350, %v3349
    %v3371 = vpack.c.b16 %v3352, %v3351
    %v3372 = vpack.c.b16 %v3354, %v3353
    %v3373 = vpack.c.b16 %v3356, %v3355
    %v3374 = vpack.c.b16 %v3358, %v3357
    %3391 = vmatprep.subr.bf16.mxu0 0
    %3392 = vmatpush1.bf16.msra.mxu0 %v3359
    %3393 = vmatprep.subr.bf16.mxu0 0
    %3394 = vmatpush1.bf16.msra.mxu0 %v3360
    %3395 = vmatprep.subr.bf16.mxu0 0
    %3396 = vmatpush1.bf16.msra.mxu0 %v3361
    %3397 = vmatprep.subr.bf16.mxu0 0
    %3398 = vmatpush1.bf16.msra.mxu0 %v3362
    %3399 = vmatprep.subr.bf16.mxu0 0
    %3400 = vmatpush1.bf16.msra.mxu0 %v3363
    %3401 = vmatprep.subr.bf16.mxu0 0
    %3402 = vmatpush1.bf16.msra.mxu0 %v3364
    %3403 = vmatprep.subr.bf16.mxu0 0
    %3404 = vmatpush1.bf16.msra.mxu0 %v3365
    %3405 = vmatprep.subr.bf16.mxu0 0
    %3406 = vmatpush1.bf16.msra.mxu0 %v3366
    %3407 = vmatprep.subr.bf16.mxu0 0
    %3408 = vmatpush1.bf16.msra.mxu0 %v3367
    %3409 = vmatprep.subr.bf16.mxu0 0
    %3410 = vmatpush1.bf16.msra.mxu0 %v3368
    %3411 = vmatprep.subr.bf16.mxu0 0
    %3412 = vmatpush1.bf16.msra.mxu0 %v3369
    %3413 = vmatprep.subr.bf16.mxu0 0
    %3414 = vmatpush1.bf16.msra.mxu0 %v3370
    %3415 = vmatprep.subr.bf16.mxu0 0
    %3416 = vmatpush1.bf16.msra.mxu0 %v3371
    %3417 = vmatprep.subr.bf16.mxu0 0
    %3418 = vmatpush1.bf16.msra.mxu0 %v3372
    %3419 = vmatprep.subr.bf16.mxu0 0
    %3420 = vmatpush1.bf16.msra.mxu0 %v3373
    %3421 = vmatprep.subr.bf16.mxu0 0
    %3422 = vmatpush1.bf16.msra.mxu0 %v3374
    %3423 = vmatprep.mubr.bf16.mxu0 %v3255
    %3424 = vmatmul.mubr.bf16.gmra.mrb[0].mxu0 %v3254
    %v3425 = vpop.f32.mrb[0].mxu0
    %v3426 = vadd.f32 %v3293, %v3425
    %v3427 = vpop.f32.mrb[0].mxu0
    %v3428 = vpop.f32.mrb[0].mxu0
    %v3429 = vpop.f32.mrb[0].mxu0
    %3430 = vdwg.mxu0
    %v3431 = vld [vmem:[#allocation15] sm:$0xf]
    %v3432 = vld [vmem:[#allocation15 + $0x4] sm:$0xf]
    %v3433 = vld [vmem:[#allocation15 + $0x8] sm:$0xf]
    %v3434 = vld [vmem:[#allocation15 + $0xc] sm:$0xf]
    %v3435 = vld [vmem:[#allocation15 + $0x10] sm:$0xf]
    %v3436 = vld [vmem:[#allocation15 + $0x14] sm:$0xf]
    %v3437 = vld [vmem:[#allocation15 + $0x18] sm:$0xf]
    %v3438 = vld [vmem:[#allocation15 + $0x1c] sm:$0xf]
    %v3439 = vld [vmem:[#allocation15 + $0x20] sm:$0xf]
    %v3440 = vld [vmem:[#allocation15 + $0x24] sm:$0xf]
    %v3441 = vld [vmem:[#allocation15 + $0x28] sm:$0xf]
    %v3442 = vld [vmem:[#allocation15 + $0x2c] sm:$0xf]
    %v3443 = vld [vmem:[#allocation15 + $0x30] sm:$0xf]
    %v3444 = vld [vmem:[#allocation15 + $0x34] sm:$0xf]
    %v3445 = vld [vmem:[#allocation15 + $0x38] sm:$0xf]
    %v3446 = vld [vmem:[#allocation15 + $0x3c] sm:$0xf]
    %v3447 = vld [vmem:[#allocation15 + $0x40] sm:$0xf]
    %v3448 = vld [vmem:[#allocation15 + $0x44] sm:$0xf]
    %v3449 = vld [vmem:[#allocation15 + $0x48] sm:$0xf]
    %v3450 = vld [vmem:[#allocation15 + $0x4c] sm:$0xf]
    %v3451 = vld [vmem:[#allocation15 + $0x50] sm:$0xf]
    %v3452 = vld [vmem:[#allocation15 + $0x54] sm:$0xf]
    %v3453 = vld [vmem:[#allocation15 + $0x58] sm:$0xf]
    %v3454 = vld [vmem:[#allocation15 + $0x5c] sm:$0xf]
    %v3455 = vld [vmem:[#allocation15 + $0x60] sm:$0xf]
    %v3456 = vld [vmem:[#allocation15 + $0x64] sm:$0xf]
    %v3457 = vld [vmem:[#allocation15 + $0x68] sm:$0xf]
    %v3458 = vld [vmem:[#allocation15 + $0x6c] sm:$0xf]
    %v3459 = vld [vmem:[#allocation15 + $0x70] sm:$0xf]
    %v3460 = vld [vmem:[#allocation15 + $0x74] sm:$0xf]
    %v3461 = vld [vmem:[#allocation15 + $0x78] sm:$0xf]
    %v3462 = vld [vmem:[#allocation15 + $0x7c] sm:$0xf]
    %v3463 = vld [vmem:[#allocation16] sm:$0x1]
    %v3465 = vlaneseq
    %v3466 = vshrl.u32 %v3465, 7
    %v3467 = vsub.s32 0, %v3466
    %v3468 = vrot.slane %v3463, %v3467
    %v3502 = vunpack.c.l.b16 %v3431
    %v3503 = vunpack.c.l.b16 %v3432
    %v3504 = vunpack.c.l.b16 %v3433
    %v3505 = vunpack.c.l.b16 %v3434
    %v3506 = vunpack.c.l.b16 %v3435
    %v3507 = vunpack.c.l.b16 %v3436
    %v3508 = vunpack.c.l.b16 %v3437
    %v3509 = vunpack.c.l.b16 %v3438
    %v3510 = vunpack.c.l.b16 %v3439
    %v3511 = vunpack.c.l.b16 %v3440
    %v3512 = vunpack.c.l.b16 %v3441
    %v3513 = vunpack.c.l.b16 %v3442
    %v3514 = vunpack.c.l.b16 %v3443
    %v3515 = vunpack.c.l.b16 %v3444
    %v3516 = vunpack.c.l.b16 %v3445
    %v3517 = vunpack.c.l.b16 %v3446
    %v3518 = vunpack.c.l.b16 %v3447
    %v3519 = vunpack.c.l.b16 %v3448
    %v3520 = vunpack.c.l.b16 %v3449
    %v3521 = vunpack.c.l.b16 %v3450
    %v3522 = vunpack.c.l.b16 %v3451
    %v3523 = vunpack.c.l.b16 %v3452
    %v3524 = vunpack.c.l.b16 %v3453
    %v3525 = vunpack.c.l.b16 %v3454
    %v3526 = vunpack.c.l.b16 %v3455
    %v3527 = vunpack.c.l.b16 %v3456
    %v3528 = vunpack.c.l.b16 %v3457
    %v3529 = vunpack.c.l.b16 %v3458
    %v3530 = vunpack.c.l.b16 %v3459
    %v3531 = vunpack.c.l.b16 %v3460
    %v3532 = vunpack.c.l.b16 %v3461
    %v3533 = vunpack.c.l.b16 %v3462
    %v3534 = vpack.c.b16 %v3503, %v3502
    %v3535 = vpack.c.b16 %v3505, %v3504
    %v3536 = vpack.c.b16 %v3507, %v3506
    %v3537 = vpack.c.b16 %v3509, %v3508
    %v3538 = vpack.c.b16 %v3511, %v3510
    %v3539 = vpack.c.b16 %v3513, %v3512
    %v3540 = vpack.c.b16 %v3515, %v3514
    %v3541 = vpack.c.b16 %v3517, %v3516
    %v3542 = vpack.c.b16 %v3519, %v3518
    %v3543 = vpack.c.b16 %v3521, %v3520
    %v3544 = vpack.c.b16 %v3523, %v3522
    %v3545 = vpack.c.b16 %v3525, %v3524
    %v3546 = vpack.c.b16 %v3527, %v3526
    %v3547 = vpack.c.b16 %v3529, %v3528
    %v3548 = vpack.c.b16 %v3531, %v3530
    %v3549 = vpack.c.b16 %v3533, %v3532
    %3566 = vmatprep.subr.bf16.mxu0 0
    %3567 = vmatpush1.bf16.msra.mxu0 %v3534
    %3568 = vmatprep.subr.bf16.mxu0 0
    %3569 = vmatpush1.bf16.msra.mxu0 %v3535
    %3570 = vmatprep.subr.bf16.mxu0 0
    %3571 = vmatpush1.bf16.msra.mxu0 %v3536
    %3572 = vmatprep.subr.bf16.mxu0 0
    %3573 = vmatpush1.bf16.msra.mxu0 %v3537
    %3574 = vmatprep.subr.bf16.mxu0 0
    %3575 = vmatpush1.bf16.msra.mxu0 %v3538
    %3576 = vmatprep.subr.bf16.mxu0 0
    %3577 = vmatpush1.bf16.msra.mxu0 %v3539
    %3578 = vmatprep.subr.bf16.mxu0 0
    %3579 = vmatpush1.bf16.msra.mxu0 %v3540
    %3580 = vmatprep.subr.bf16.mxu0 0
    %3581 = vmatpush1.bf16.msra.mxu0 %v3541
    %3582 = vmatprep.subr.bf16.mxu0 0
    %3583 = vmatpush1.bf16.msra.mxu0 %v3542
    %3584 = vmatprep.subr.bf16.mxu0 0
    %3585 = vmatpush1.bf16.msra.mxu0 %v3543
    %3586 = vmatprep.subr.bf16.mxu0 0
    %3587 = vmatpush1.bf16.msra.mxu0 %v3544
    %3588 = vmatprep.subr.bf16.mxu0 0
    %3589 = vmatpush1.bf16.msra.mxu0 %v3545
    %3590 = vmatprep.subr.bf16.mxu0 0
    %3591 = vmatpush1.bf16.msra.mxu0 %v3546
    %3592 = vmatprep.subr.bf16.mxu0 0
    %3593 = vmatpush1.bf16.msra.mxu0 %v3547
    %3594 = vmatprep.subr.bf16.mxu0 0
    %3595 = vmatpush1.bf16.msra.mxu0 %v3548
    %3596 = vmatprep.subr.bf16.mxu0 0
    %3597 = vmatpush1.bf16.msra.mxu0 %v3549
    %3598 = vmatprep.mubr.bf16.mxu0 %v3255
    %3599 = vmatmul.mubr.bf16.gmra.mrb[0].mxu0 %v3254
    %v3600 = vpop.f32.mrb[0].mxu0
    %v3601 = vadd.f32 %v3468, %v3600
    %v3602 = vpop.f32.mrb[0].mxu0
    %v3603 = vpop.f32.mrb[0].mxu0
    %v3604 = vpop.f32.mrb[0].mxu0
    %3605 = vdwg.mxu0
    %3606 = vst [vmem:[%s67] sm:$0xff] %v3426
    %3607 = vst [vmem:[%s69] sm:$0xff] %v3601
    %v3608 = vld [vmem:[#allocation18] sm:$0xf]
    %v3609 = vld [vmem:[#allocation18 + $0x4] sm:$0xf]
    %v3610 = vld [vmem:[#allocation18 + $0x8] sm:$0xf]
    %v3611 = vld [vmem:[#allocation18 + $0xc] sm:$0xf]
    %v3612 = vld [vmem:[#allocation18 + $0x10] sm:$0xf]
    %v3613 = vld [vmem:[#allocation18 + $0x14] sm:$0xf]
    %v3614 = vld [vmem:[#allocation18 + $0x18] sm:$0xf]
    %v3615 = vld [vmem:[#allocation18 + $0x1c] sm:$0xf]
    %v3616 = vld [vmem:[#allocation18 + $0x20] sm:$0xf]
    %v3617 = vld [vmem:[#allocation18 + $0x24] sm:$0xf]
    %v3618 = vld [vmem:[#allocation18 + $0x28] sm:$0xf]
    %v3619 = vld [vmem:[#allocation18 + $0x2c] sm:$0xf]
    %v3620 = vld [vmem:[#allocation18 + $0x30] sm:$0xf]
    %v3621 = vld [vmem:[#allocation18 + $0x34] sm:$0xf]
    %v3622 = vld [vmem:[#allocation18 + $0x38] sm:$0xf]
    %v3623 = vld [vmem:[#allocation18 + $0x3c] sm:$0xf]
    %v3624 = vld [vmem:[#allocation18 + $0x40] sm:$0xf]
    %v3625 = vld [vmem:[#allocation18 + $0x44] sm:$0xf]
    %v3626 = vld [vmem:[#allocation18 + $0x48] sm:$0xf]
    %v3627 = vld [vmem:[#allocation18 + $0x4c] sm:$0xf]
    %v3628 = vld [vmem:[#allocation18 + $0x50] sm:$0xf]
    %v3629 = vld [vmem:[#allocation18 + $0x54] sm:$0xf]
    %v3630 = vld [vmem:[#allocation18 + $0x58] sm:$0xf]
    %v3631 = vld [vmem:[#allocation18 + $0x5c] sm:$0xf]
    %v3632 = vld [vmem:[#allocation18 + $0x60] sm:$0xf]
    %v3633 = vld [vmem:[#allocation18 + $0x64] sm:$0xf]
    %v3634 = vld [vmem:[#allocation18 + $0x68] sm:$0xf]
    %v3635 = vld [vmem:[#allocation18 + $0x6c] sm:$0xf]
    %v3636 = vld [vmem:[#allocation18 + $0x70] sm:$0xf]
    %v3637 = vld [vmem:[#allocation18 + $0x74] sm:$0xf]
    %v3638 = vld [vmem:[#allocation18 + $0x78] sm:$0xf]
    %v3639 = vld [vmem:[#allocation18 + $0x7c] sm:$0xf]
    %v3640 = vld [vmem:[#allocation19] sm:$0x1]
    %v3642 = vlaneseq
    %v3643 = vshrl.u32 %v3642, 7
    %v3644 = vsub.s32 0, %v3643
    %v3645 = vrot.slane %v3640, %v3644
    %v3679 = vunpack.c.l.b16 %v3608
    %v3680 = vunpack.c.l.b16 %v3609
    %v3681 = vunpack.c.l.b16 %v3610
    %v3682 = vunpack.c.l.b16 %v3611
    %v3683 = vunpack.c.l.b16 %v3612
    %v3684 = vunpack.c.l.b16 %v3613
    %v3685 = vunpack.c.l.b16 %v3614
    %v3686 = vunpack.c.l.b16 %v3615
    %v3687 = vunpack.c.l.b16 %v3616
    %v3688 = vunpack.c.l.b16 %v3617
    %v3689 = vunpack.c.l.b16 %v3618
    %v3690 = vunpack.c.l.b16 %v3619
    %v3691 = vunpack.c.l.b16 %v3620
    %v3692 = vunpack.c.l.b16 %v3621
    %v3693 = vunpack.c.l.b16 %v3622
    %v3694 = vunpack.c.l.b16 %v3623
    %v3695 = vunpack.c.l.b16 %v3624
    %v3696 = vunpack.c.l.b16 %v3625
    %v3697 = vunpack.c.l.b16 %v3626
    %v3698 = vunpack.c.l.b16 %v3627
    %v3699 = vunpack.c.l.b16 %v3628
    %v3700 = vunpack.c.l.b16 %v3629
    %v3701 = vunpack.c.l.b16 %v3630
    %v3702 = vunpack.c.l.b16 %v3631
    %v3703 = vunpack.c.l.b16 %v3632
    %v3704 = vunpack.c.l.b16 %v3633
    %v3705 = vunpack.c.l.b16 %v3634
    %v3706 = vunpack.c.l.b16 %v3635
    %v3707 = vunpack.c.l.b16 %v3636
    %v3708 = vunpack.c.l.b16 %v3637
    %v3709 = vunpack.c.l.b16 %v3638
    %v3710 = vunpack.c.l.b16 %v3639
    %v3711 = vpack.c.b16 %v3680, %v3679
    %v3712 = vpack.c.b16 %v3682, %v3681
    %v3713 = vpack.c.b16 %v3684, %v3683
    %v3714 = vpack.c.b16 %v3686, %v3685
    %v3715 = vpack.c.b16 %v3688, %v3687
    %v3716 = vpack.c.b16 %v3690, %v3689
    %v3717 = vpack.c.b16 %v3692, %v3691
    %v3718 = vpack.c.b16 %v3694, %v3693
    %v3719 = vpack.c.b16 %v3696, %v3695
    %v3720 = vpack.c.b16 %v3698, %v3697
    %v3721 = vpack.c.b16 %v3700, %v3699
    %v3722 = vpack.c.b16 %v3702, %v3701
    %v3723 = vpack.c.b16 %v3704, %v3703
    %v3724 = vpack.c.b16 %v3706, %v3705
    %v3725 = vpack.c.b16 %v3708, %v3707
    %v3726 = vpack.c.b16 %v3710, %v3709
    %3743 = vmatprep.subr.bf16.mxu0 0
    %3744 = vmatpush1.bf16.msra.mxu0 %v3711
    %3745 = vmatprep.subr.bf16.mxu0 0
    %3746 = vmatpush1.bf16.msra.mxu0 %v3712
    %3747 = vmatprep.subr.bf16.mxu0 0
    %3748 = vmatpush1.bf16.msra.mxu0 %v3713
    %3749 = vmatprep.subr.bf16.mxu0 0
    %3750 = vmatpush1.bf16.msra.mxu0 %v3714
    %3751 = vmatprep.subr.bf16.mxu0 0
    %3752 = vmatpush1.bf16.msra.mxu0 %v3715
    %3753 = vmatprep.subr.bf16.mxu0 0
    %3754 = vmatpush1.bf16.msra.mxu0 %v3716
    %3755 = vmatprep.subr.bf16.mxu0 0
    %3756 = vmatpush1.bf16.msra.mxu0 %v3717
    %3757 = vmatprep.subr.bf16.mxu0 0
    %3758 = vmatpush1.bf16.msra.mxu0 %v3718
    %3759 = vmatprep.subr.bf16.mxu0 0
    %3760 = vmatpush1.bf16.msra.mxu0 %v3719
    %3761 = vmatprep.subr.bf16.mxu0 0
    %3762 = vmatpush1.bf16.msra.mxu0 %v3720
    %3763 = vmatprep.subr.bf16.mxu0 0
    %3764 = vmatpush1.bf16.msra.mxu0 %v3721
    %3765 = vmatprep.subr.bf16.mxu0 0
    %3766 = vmatpush1.bf16.msra.mxu0 %v3722
    %3767 = vmatprep.subr.bf16.mxu0 0
    %3768 = vmatpush1.bf16.msra.mxu0 %v3723
    %3769 = vmatprep.subr.bf16.mxu0 0
    %3770 = vmatpush1.bf16.msra.mxu0 %v3724
    %3771 = vmatprep.subr.bf16.mxu0 0
    %3772 = vmatpush1.bf16.msra.mxu0 %v3725
    %3773 = vmatprep.subr.bf16.mxu0 0
    %3774 = vmatpush1.bf16.msra.mxu0 %v3726
    %3775 = vmatprep.mubr.bf16.mxu0 %v3255
    %3776 = vmatmul.mubr.bf16.gmra.mrb[0].mxu0 %v3254
    %v3777 = vpop.f32.mrb[0].mxu0
    %v3778 = vadd.f32 %v3645, %v3777
    %v3779 = vpop.f32.mrb[0].mxu0
    %v3780 = vpop.f32.mrb[0].mxu0
    %v3781 = vpop.f32.mrb[0].mxu0
    %3782 = vdwg.mxu0
    %v3783 = vand.u32 2147483647, %v3778
    %v3784 = vsub.f32 0.0, %v3783
    %v3785 = vmul.f32 %v3784, 1.442695
    %v3786 = vpow.pop %v3785
    %v3787 = vadd.f32 %v3786, 1.0
    %v3788 = vrcp.pop %v3787
    %vm3789 = vcmp.ge.f32.partialorder %v3778, 0.0
    %v3790 = vmul.f32 %v3786, %v3788
    %v3791 = vsel %vm3789, %v3788, %v3790
    %3792 = vst [vmem:[%s75] sm:$0xff] %v3791
    %v3793 = vmul.f32 %v1913, 0.5
    %v3794 = vmul.f32 %v3793, 1.442695
    %v3795 = vpow.pop %v3794
    %v3796 = vld [vmem:[%s5] sm:$0xff]
    %v3797 = vmul.f32 %v3795, %v3796
    %v3798 = vadd.f32 %v1738, %v3797
    %v3799 = vmul.f32 %v3601, 0.5
    %v3800 = vmul.f32 %v3799, 1.442695
    %v3801 = vpow.pop %v3800
    %v3802 = vld [vmem:[%s7] sm:$0xff]
    %v3803 = vmul.f32 %v3801, %v3802
    %v3804 = vadd.f32 %v3426, %v3803
    %3805 = vst [vmem:[%s71] sm:$0xff] %v3798
    %3806 = vst [vmem:[%s73] sm:$0xff] %v3804
    %v3807 = vpack.c.bf16 %v3798, %v3798
    %v3808 = vld [vmem:[#allocation21] sm:$0xff]
    %v3809 = vld [vmem:[#allocation21 + $0x8] sm:$0xff]
    %v3810 = vld [vmem:[#allocation21 + $0x10] sm:$0xff]
    %v3811 = vld [vmem:[#allocation21 + $0x18] sm:$0xff]
    %v3812 = vld [vmem:[#allocation21 + $0x20] sm:$0xff]
    %v3813 = vld [vmem:[#allocation21 + $0x28] sm:$0xff]
    %v3814 = vld [vmem:[#allocation21 + $0x30] sm:$0xff]
    %v3815 = vld [vmem:[#allocation21 + $0x38] sm:$0xff]
    %v3816 = vld [vmem:[#allocation21 + $0x40] sm:$0xff]
    %v3817 = vld [vmem:[#allocation21 + $0x48] sm:$0xff]
    %v3818 = vld [vmem:[#allocation21 + $0x50] sm:$0xff]
    %v3819 = vld [vmem:[#allocation21 + $0x58] sm:$0xff]
    %v3820 = vld [vmem:[#allocation21 + $0x60] sm:$0xff]
    %v3821 = vld [vmem:[#allocation21 + $0x68] sm:$0xff]
    %v3822 = vld [vmem:[#allocation21 + $0x70] sm:$0xff]
    %v3823 = vld [vmem:[#allocation21 + $0x78] sm:$0xff]
    %v3824 = vpack.c.bf16 %v3804, %v3804
    %v3825 = vld [vmem:[#allocation22] sm:$0xff]
    %v3826 = vld [vmem:[#allocation22 + $0x8] sm:$0xff]
    %v3827 = vld [vmem:[#allocation22 + $0x10] sm:$0xff]
    %v3828 = vld [vmem:[#allocation22 + $0x18] sm:$0xff]
    %v3829 = vld [vmem:[#allocation22 + $0x20] sm:$0xff]
    %v3830 = vld [vmem:[#allocation22 + $0x28] sm:$0xff]
    %v3831 = vld [vmem:[#allocation22 + $0x30] sm:$0xff]
    %v3832 = vld [vmem:[#allocation22 + $0x38] sm:$0xff]
    %v3833 = vld [vmem:[#allocation22 + $0x40] sm:$0xff]
    %v3834 = vld [vmem:[#allocation22 + $0x48] sm:$0xff]
    %v3835 = vld [vmem:[#allocation22 + $0x50] sm:$0xff]
    %v3836 = vld [vmem:[#allocation22 + $0x58] sm:$0xff]
    %v3837 = vld [vmem:[#allocation22 + $0x60] sm:$0xff]
    %v3838 = vld [vmem:[#allocation22 + $0x68] sm:$0xff]
    %v3839 = vld [vmem:[#allocation22 + $0x70] sm:$0xff]
    %v3840 = vld [vmem:[#allocation22 + $0x78] sm:$0xff]
    %v3857 = vunpack.c.l.b16 %v3825
    %v3858 = vunpack.c.h.b16 %v3825
    %v3859 = vunpack.c.l.b16 %v3826
    %v3860 = vunpack.c.h.b16 %v3826
    %v3861 = vunpack.c.l.b16 %v3827
    %v3862 = vunpack.c.h.b16 %v3827
    %v3863 = vunpack.c.l.b16 %v3828
    %v3864 = vunpack.c.h.b16 %v3828
    %v3865 = vunpack.c.l.b16 %v3829
    %v3866 = vunpack.c.h.b16 %v3829
    %v3867 = vunpack.c.l.b16 %v3830
    %v3868 = vunpack.c.h.b16 %v3830
    %v3869 = vunpack.c.l.b16 %v3831
    %v3870 = vunpack.c.h.b16 %v3831
    %v3871 = vunpack.c.l.b16 %v3832
    %v3872 = vunpack.c.h.b16 %v3832
    %v3873 = vunpack.c.l.b16 %v3833
    %v3874 = vunpack.c.h.b16 %v3833
    %v3875 = vunpack.c.l.b16 %v3834
    %v3876 = vunpack.c.h.b16 %v3834
    %v3877 = vunpack.c.l.b16 %v3835
    %v3878 = vunpack.c.h.b16 %v3835
    %v3879 = vunpack.c.l.b16 %v3836
    %v3880 = vunpack.c.h.b16 %v3836
    %v3881 = vunpack.c.l.b16 %v3837
    %v3882 = vunpack.c.h.b16 %v3837
    %v3883 = vunpack.c.l.b16 %v3838
    %v3884 = vunpack.c.h.b16 %v3838
    %v3885 = vunpack.c.l.b16 %v3839
    %v3886 = vunpack.c.h.b16 %v3839
    %v3887 = vunpack.c.l.b16 %v3840
    %v3888 = vunpack.c.h.b16 %v3840
    %v3889 = vpack.c.b16 %v3859, %v3857
    %v3890 = vpack.c.b16 %v3860, %v3858
    %v3891 = vpack.c.b16 %v3863, %v3861
    %v3892 = vpack.c.b16 %v3864, %v3862
    %v3893 = vpack.c.b16 %v3867, %v3865
    %v3894 = vpack.c.b16 %v3868, %v3866
    %v3895 = vpack.c.b16 %v3871, %v3869
    %v3896 = vpack.c.b16 %v3872, %v3870
    %v3897 = vpack.c.b16 %v3875, %v3873
    %v3898 = vpack.c.b16 %v3876, %v3874
    %v3899 = vpack.c.b16 %v3879, %v3877
    %v3900 = vpack.c.b16 %v3880, %v3878
    %v3901 = vpack.c.b16 %v3883, %v3881
    %v3902 = vpack.c.b16 %v3884, %v3882
    %v3903 = vpack.c.b16 %v3887, %v3885
    %v3904 = vpack.c.b16 %v3888, %v3886
    %3921 = vmatprep.subr.bf16.mxu0 %v3890
    %3922 = vmatpush1.bf16.msra.mxu0 %v3889
    %3923 = vmatprep.subr.bf16.mxu0 %v3892
    %3924 = vmatpush1.bf16.msra.mxu0 %v3891
    %3925 = vmatprep.subr.bf16.mxu0 %v3894
    %3926 = vmatpush1.bf16.msra.mxu0 %v3893
    %3927 = vmatprep.subr.bf16.mxu0 %v3896
    %3928 = vmatpush1.bf16.msra.mxu0 %v3895
    %3929 = vmatprep.subr.bf16.mxu0 %v3898
    %3930 = vmatpush1.bf16.msra.mxu0 %v3897
    %3931 = vmatprep.subr.bf16.mxu0 %v3900
    %3932 = vmatpush1.bf16.msra.mxu0 %v3899
    %3933 = vmatprep.subr.bf16.mxu0 %v3902
    %3934 = vmatpush1.bf16.msra.mxu0 %v3901
    %3935 = vmatprep.subr.bf16.mxu0 %v3904
    %3936 = vmatpush1.bf16.msra.mxu0 %v3903
    %3937 = vmatprep.subr.bf16.mxu0 0
    %3938 = vmatpush1.bf16.msra.mxu0 0
    %3939 = vmatprep.subr.bf16.mxu0 0
    %3940 = vmatpush1.bf16.msra.mxu0 0
    %3941 = vmatprep.subr.bf16.mxu0 0
    %3942 = vmatpush1.bf16.msra.mxu0 0
    %3943 = vmatprep.subr.bf16.mxu0 0
    %3944 = vmatpush1.bf16.msra.mxu0 0
    %3945 = vmatprep.subr.bf16.mxu0 0
    %3946 = vmatpush1.bf16.msra.mxu0 0
    %3947 = vmatprep.subr.bf16.mxu0 0
    %3948 = vmatpush1.bf16.msra.mxu0 0
    %3949 = vmatprep.subr.bf16.mxu0 0
    %3950 = vmatpush1.bf16.msra.mxu0 0
    %3951 = vmatprep.subr.bf16.mxu0 0
    %3952 = vmatpush1.bf16.msra.mxu0 0
    %3953 = vmatprep.mubr.bf16.mxu0 0
    %3954 = vmatmul.mubr.bf16.gmra.mrb[0].mxu0 %v3824
    %v3955 = vpop.f32.mrb[0].mxu0
    %v3956 = vadd.f32 0.0, %v3955
    %v3957 = vpop.f32.mrb[0].mxu0
    %v3958 = vadd.f32 0.0, %v3957
    %v3959 = vpop.f32.mrb[0].mxu0
    %v3960 = vpop.f32.mrb[0].mxu0
    %3961 = vdwg.mxu0
    %v3978 = vunpack.c.l.b16 %v3808
    %v3979 = vunpack.c.h.b16 %v3808
    %v3980 = vunpack.c.l.b16 %v3809
    %v3981 = vunpack.c.h.b16 %v3809
    %v3982 = vunpack.c.l.b16 %v3810
    %v3983 = vunpack.c.h.b16 %v3810
    %v3984 = vunpack.c.l.b16 %v3811
    %v3985 = vunpack.c.h.b16 %v3811
    %v3986 = vunpack.c.l.b16 %v3812
    %v3987 = vunpack.c.h.b16 %v3812
    %v3988 = vunpack.c.l.b16 %v3813
    %v3989 = vunpack.c.h.b16 %v3813
    %v3990 = vunpack.c.l.b16 %v3814
    %v3991 = vunpack.c.h.b16 %v3814
    %v3992 = vunpack.c.l.b16 %v3815
    %v3993 = vunpack.c.h.b16 %v3815
    %v3994 = vunpack.c.l.b16 %v3816
    %v3995 = vunpack.c.h.b16 %v3816
    %v3996 = vunpack.c.l.b16 %v3817
    %v3997 = vunpack.c.h.b16 %v3817
    %v3998 = vunpack.c.l.b16 %v3818
    %v3999 = vunpack.c.h.b16 %v3818
    %v4000 = vunpack.c.l.b16 %v3819
    %v4001 = vunpack.c.h.b16 %v3819
    %v4002 = vunpack.c.l.b16 %v3820
    %v4003 = vunpack.c.h.b16 %v3820
    %v4004 = vunpack.c.l.b16 %v3821
    %v4005 = vunpack.c.h.b16 %v3821
    %v4006 = vunpack.c.l.b16 %v3822
    %v4007 = vunpack.c.h.b16 %v3822
    %v4008 = vunpack.c.l.b16 %v3823
    %v4009 = vunpack.c.h.b16 %v3823
    %v4010 = vpack.c.b16 %v3980, %v3978
    %v4011 = vpack.c.b16 %v3981, %v3979
    %v4012 = vpack.c.b16 %v3984, %v3982
    %v4013 = vpack.c.b16 %v3985, %v3983
    %v4014 = vpack.c.b16 %v3988, %v3986
    %v4015 = vpack.c.b16 %v3989, %v3987
    %v4016 = vpack.c.b16 %v3992, %v3990
    %v4017 = vpack.c.b16 %v3993, %v3991
    %v4018 = vpack.c.b16 %v3996, %v3994
    %v4019 = vpack.c.b16 %v3997, %v3995
    %v4020 = vpack.c.b16 %v4000, %v3998
    %v4021 = vpack.c.b16 %v4001, %v3999
    %v4022 = vpack.c.b16 %v4004, %v4002
    %v4023 = vpack.c.b16 %v4005, %v4003
    %v4024 = vpack.c.b16 %v4008, %v4006
    %v4025 = vpack.c.b16 %v4009, %v4007
    %4042 = vmatprep.subr.bf16.mxu0 %v4011
    %4043 = vmatpush1.bf16.msra.mxu0 %v4010
    %4044 = vmatprep.subr.bf16.mxu0 %v4013
    %4045 = vmatpush1.bf16.msra.mxu0 %v4012
    %4046 = vmatprep.subr.bf16.mxu0 %v4015
    %4047 = vmatpush1.bf16.msra.mxu0 %v4014
    %4048 = vmatprep.subr.bf16.mxu0 %v4017
    %4049 = vmatpush1.bf16.msra.mxu0 %v4016
    %4050 = vmatprep.subr.bf16.mxu0 %v4019
    %4051 = vmatpush1.bf16.msra.mxu0 %v4018
    %4052 = vmatprep.subr.bf16.mxu0 %v4021
    %4053 = vmatpush1.bf16.msra.mxu0 %v4020
    %4054 = vmatprep.subr.bf16.mxu0 %v4023
    %4055 = vmatpush1.bf16.msra.mxu0 %v4022
    %4056 = vmatprep.subr.bf16.mxu0 %v4025
    %4057 = vmatpush1.bf16.msra.mxu0 %v4024
    %4058 = vmatprep.subr.bf16.mxu0 0
    %4059 = vmatpush1.bf16.msra.mxu0 0
    %4060 = vmatprep.subr.bf16.mxu0 0
    %4061 = vmatpush1.bf16.msra.mxu0 0
    %4062 = vmatprep.subr.bf16.mxu0 0
    %4063 = vmatpush1.bf16.msra.mxu0 0
    %4064 = vmatprep.subr.bf16.mxu0 0
    %4065 = vmatpush1.bf16.msra.mxu0 0
    %4066 = vmatprep.subr.bf16.mxu0 0
    %4067 = vmatpush1.bf16.msra.mxu0 0
    %4068 = vmatprep.subr.bf16.mxu0 0
    %4069 = vmatpush1.bf16.msra.mxu0 0
    %4070 = vmatprep.subr.bf16.mxu0 0
    %4071 = vmatpush1.bf16.msra.mxu0 0
    %4072 = vmatprep.subr.bf16.mxu0 0
    %4073 = vmatpush1.bf16.msra.mxu0 0
    %4074 = vmatprep.mubr.bf16.mxu0 0
    %4075 = vmatmul.mubr.bf16.gmra.mrb[0].mxu0 %v3807
    %v4076 = vpop.f32.mrb[0].mxu0
    %v4077 = vadd.f32 %v3956, %v4076
    %v4078 = vpop.f32.mrb[0].mxu0
    %v4079 = vadd.f32 %v3958, %v4078
    %v4080 = vpop.f32.mrb[0].mxu0
    %v4081 = vpop.f32.mrb[0].mxu0
    %4082 = vdwg.mxu0
    %v4083 = vld [vmem:[%s51] sm:$0x3]
    %v4085 = vlaneseq
    %v4086 = vshrl.u32 %v4085, 7
    %v4087 = vsub.s32 0, %v4086
    %v4088 = vrot.slane %v4083, %v4087
    %v4089 = vlaneseq
    %v4090 = vshrl.u32 %v4089, 7
    %v4091 = vsub.s32 1, %v4090
    %v4092 = vrot.slane %v4083, %v4091
    %v4095 = vadd.f32 %v4077, %v4088
    %v4096 = vadd.f32 %v4079, %v4092
    %v4097 = vmax.f32 %v4095, 0.0
    %v4098 = vmax.f32 %v4096, 0.0
    %v4099 = vpack.c.bf16 %v4097, %v4097
    %v4100 = vpack.c.bf16 %v4098, %v4098
    %v4101 = vld [vmem:[#allocation24] sm:$0xff]
    %v4102 = vld [vmem:[#allocation24 + $0x8] sm:$0xff]
    %v4103 = vld [vmem:[#allocation24 + $0x10] sm:$0xff]
    %v4104 = vld [vmem:[#allocation24 + $0x18] sm:$0xff]
    %v4105 = vld [vmem:[#allocation24 + $0x20] sm:$0xff]
    %v4106 = vld [vmem:[#allocation24 + $0x28] sm:$0xff]
    %v4107 = vld [vmem:[#allocation24 + $0x30] sm:$0xff]
    %v4108 = vld [vmem:[#allocation24 + $0x38] sm:$0xff]
    %v4109 = vld [vmem:[#allocation24 + $0x40] sm:$0xff]
    %v4110 = vld [vmem:[#allocation24 + $0x48] sm:$0xff]
    %v4111 = vld [vmem:[#allocation24 + $0x50] sm:$0xff]
    %v4112 = vld [vmem:[#allocation24 + $0x58] sm:$0xff]
    %v4113 = vld [vmem:[#allocation24 + $0x60] sm:$0xff]
    %v4114 = vld [vmem:[#allocation24 + $0x68] sm:$0xff]
    %v4115 = vld [vmem:[#allocation24 + $0x70] sm:$0xff]
    %v4116 = vld [vmem:[#allocation24 + $0x78] sm:$0xff]
    %v4117 = vld [vmem:[#allocation24 + $0x80] sm:$0xff]
    %v4118 = vld [vmem:[#allocation24 + $0x88] sm:$0xff]
    %v4119 = vld [vmem:[#allocation24 + $0x90] sm:$0xff]
    %v4120 = vld [vmem:[#allocation24 + $0x98] sm:$0xff]
    %v4121 = vld [vmem:[#allocation24 + $0xa0] sm:$0xff]
    %v4122 = vld [vmem:[#allocation24 + $0xa8] sm:$0xff]
    %v4123 = vld [vmem:[#allocation24 + $0xb0] sm:$0xff]
    %v4124 = vld [vmem:[#allocation24 + $0xb8] sm:$0xff]
    %v4125 = vld [vmem:[#allocation24 + $0xc0] sm:$0xff]
    %v4126 = vld [vmem:[#allocation24 + $0xc8] sm:$0xff]
    %v4127 = vld [vmem:[#allocation24 + $0xd0] sm:$0xff]
    %v4128 = vld [vmem:[#allocation24 + $0xd8] sm:$0xff]
    %v4129 = vld [vmem:[#allocation24 + $0xe0] sm:$0xff]
    %v4130 = vld [vmem:[#allocation24 + $0xe8] sm:$0xff]
    %v4131 = vld [vmem:[#allocation24 + $0xf0] sm:$0xff]
    %v4132 = vld [vmem:[#allocation24 + $0xf8] sm:$0xff]
    %v4133 = vld [vmem:[%s55] sm:$0x3]
    %v4135 = vlaneseq
    %v4136 = vshrl.u32 %v4135, 7
    %v4137 = vsub.s32 0, %v4136
    %v4138 = vrot.slane %v4133, %v4137
    %v4139 = vlaneseq
    %v4140 = vshrl.u32 %v4139, 7
    %v4141 = vsub.s32 1, %v4140
    %v4142 = vrot.slane %v4133, %v4141
    %v4177 = vunpack.c.l.b16 %v4101
    %v4178 = vunpack.c.h.b16 %v4101
    %v4179 = vunpack.c.l.b16 %v4102
    %v4180 = vunpack.c.h.b16 %v4102
    %v4181 = vunpack.c.l.b16 %v4103
    %v4182 = vunpack.c.h.b16 %v4103
    %v4183 = vunpack.c.l.b16 %v4104
    %v4184 = vunpack.c.h.b16 %v4104
    %v4185 = vunpack.c.l.b16 %v4105
    %v4186 = vunpack.c.h.b16 %v4105
    %v4187 = vunpack.c.l.b16 %v4106
    %v4188 = vunpack.c.h.b16 %v4106
    %v4189 = vunpack.c.l.b16 %v4107
    %v4190 = vunpack.c.h.b16 %v4107
    %v4191 = vunpack.c.l.b16 %v4108
    %v4192 = vunpack.c.h.b16 %v4108
    %v4193 = vunpack.c.l.b16 %v4109
    %v4194 = vunpack.c.h.b16 %v4109
    %v4195 = vunpack.c.l.b16 %v4110
    %v4196 = vunpack.c.h.b16 %v4110
    %v4197 = vunpack.c.l.b16 %v4111
    %v4198 = vunpack.c.h.b16 %v4111
    %v4199 = vunpack.c.l.b16 %v4112
    %v4200 = vunpack.c.h.b16 %v4112
    %v4201 = vunpack.c.l.b16 %v4113
    %v4202 = vunpack.c.h.b16 %v4113
    %v4203 = vunpack.c.l.b16 %v4114
    %v4204 = vunpack.c.h.b16 %v4114
    %v4205 = vunpack.c.l.b16 %v4115
    %v4206 = vunpack.c.h.b16 %v4115
    %v4207 = vunpack.c.l.b16 %v4116
    %v4208 = vunpack.c.h.b16 %v4116
    %v4209 = vunpack.c.l.b16 %v4117
    %v4210 = vunpack.c.h.b16 %v4117
    %v4211 = vunpack.c.l.b16 %v4118
    %v4212 = vunpack.c.h.b16 %v4118
    %v4213 = vunpack.c.l.b16 %v4119
    %v4214 = vunpack.c.h.b16 %v4119
    %v4215 = vunpack.c.l.b16 %v4120
    %v4216 = vunpack.c.h.b16 %v4120
    %v4217 = vunpack.c.l.b16 %v4121
    %v4218 = vunpack.c.h.b16 %v4121
    %v4219 = vunpack.c.l.b16 %v4122
    %v4220 = vunpack.c.h.b16 %v4122
    %v4221 = vunpack.c.l.b16 %v4123
    %v4222 = vunpack.c.h.b16 %v4123
    %v4223 = vunpack.c.l.b16 %v4124
    %v4224 = vunpack.c.h.b16 %v4124
    %v4225 = vunpack.c.l.b16 %v4125
    %v4226 = vunpack.c.h.b16 %v4125
    %v4227 = vunpack.c.l.b16 %v4126
    %v4228 = vunpack.c.h.b16 %v4126
    %v4229 = vunpack.c.l.b16 %v4127
    %v4230 = vunpack.c.h.b16 %v4127
    %v4231 = vunpack.c.l.b16 %v4128
    %v4232 = vunpack.c.h.b16 %v4128
    %v4233 = vunpack.c.l.b16 %v4129
    %v4234 = vunpack.c.h.b16 %v4129
    %v4235 = vunpack.c.l.b16 %v4130
    %v4236 = vunpack.c.h.b16 %v4130
    %v4237 = vunpack.c.l.b16 %v4131
    %v4238 = vunpack.c.h.b16 %v4131
    %v4239 = vunpack.c.l.b16 %v4132
    %v4240 = vunpack.c.h.b16 %v4132
    %v4241 = vpack.c.b16 %v4179, %v4177
    %v4242 = vpack.c.b16 %v4180, %v4178
    %v4243 = vpack.c.b16 %v4183, %v4181
    %v4244 = vpack.c.b16 %v4184, %v4182
    %v4245 = vpack.c.b16 %v4187, %v4185
    %v4246 = vpack.c.b16 %v4188, %v4186
    %v4247 = vpack.c.b16 %v4191, %v4189
    %v4248 = vpack.c.b16 %v4192, %v4190
    %v4249 = vpack.c.b16 %v4195, %v4193
    %v4250 = vpack.c.b16 %v4196, %v4194
    %v4251 = vpack.c.b16 %v4199, %v4197
    %v4252 = vpack.c.b16 %v4200, %v4198
    %v4253 = vpack.c.b16 %v4203, %v4201
    %v4254 = vpack.c.b16 %v4204, %v4202
    %v4255 = vpack.c.b16 %v4207, %v4205
    %v4256 = vpack.c.b16 %v4208, %v4206
    %v4257 = vpack.c.b16 %v4211, %v4209
    %v4258 = vpack.c.b16 %v4212, %v4210
    %v4259 = vpack.c.b16 %v4215, %v4213
    %v4260 = vpack.c.b16 %v4216, %v4214
    %v4261 = vpack.c.b16 %v4219, %v4217
    %v4262 = vpack.c.b16 %v4220, %v4218
    %v4263 = vpack.c.b16 %v4223, %v4221
    %v4264 = vpack.c.b16 %v4224, %v4222
    %v4265 = vpack.c.b16 %v4227, %v4225
    %v4266 = vpack.c.b16 %v4228, %v4226
    %v4267 = vpack.c.b16 %v4231, %v4229
    %v4268 = vpack.c.b16 %v4232, %v4230
    %v4269 = vpack.c.b16 %v4235, %v4233
    %v4270 = vpack.c.b16 %v4236, %v4234
    %v4271 = vpack.c.b16 %v4239, %v4237
    %v4272 = vpack.c.b16 %v4240, %v4238
    %4305 = vmatprep.subr.bf16.mxu0 %v4242
    %4306 = vmatpush1.bf16.msra.mxu0 %v4241
    %4307 = vmatprep.subr.bf16.mxu0 %v4244
    %4308 = vmatpush1.bf16.msra.mxu0 %v4243
    %4309 = vmatprep.subr.bf16.mxu0 %v4246
    %4310 = vmatpush1.bf16.msra.mxu0 %v4245
    %4311 = vmatprep.subr.bf16.mxu0 %v4248
    %4312 = vmatpush1.bf16.msra.mxu0 %v4247
    %4313 = vmatprep.subr.bf16.mxu0 %v4250
    %4314 = vmatpush1.bf16.msra.mxu0 %v4249
    %4315 = vmatprep.subr.bf16.mxu0 %v4252
    %4316 = vmatpush1.bf16.msra.mxu0 %v4251
    %4317 = vmatprep.subr.bf16.mxu0 %v4254
    %4318 = vmatpush1.bf16.msra.mxu0 %v4253
    %4319 = vmatprep.subr.bf16.mxu0 %v4256
    %4320 = vmatpush1.bf16.msra.mxu0 %v4255
    %4321 = vmatprep.subr.bf16.mxu0 %v4258
    %4322 = vmatpush1.bf16.msra.mxu0 %v4257
    %4323 = vmatprep.subr.bf16.mxu0 %v4260
    %4324 = vmatpush1.bf16.msra.mxu0 %v4259
    %4325 = vmatprep.subr.bf16.mxu0 %v4262
    %4326 = vmatpush1.bf16.msra.mxu0 %v4261
    %4327 = vmatprep.subr.bf16.mxu0 %v4264
    %4328 = vmatpush1.bf16.msra.mxu0 %v4263
    %4329 = vmatprep.subr.bf16.mxu0 %v4266
    %4330 = vmatpush1.bf16.msra.mxu0 %v4265
    %4331 = vmatprep.subr.bf16.mxu0 %v4268
    %4332 = vmatpush1.bf16.msra.mxu0 %v4267
    %4333 = vmatprep.subr.bf16.mxu0 %v4270
    %4334 = vmatpush1.bf16.msra.mxu0 %v4269
    %4335 = vmatprep.subr.bf16.mxu0 %v4272
    %4336 = vmatpush1.bf16.msra.mxu0 %v4271
    %4337 = vmatprep.mubr.bf16.mxu0 %v4100
    %4338 = vmatmul.mubr.bf16.gmra.mrb[0].mxu0 %v4099
    %v4339 = vpop.f32.mrb[0].mxu0
    %v4340 = vadd.f32 %v4138, %v4339
    %v4341 = vpop.f32.mrb[0].mxu0
    %v4342 = vadd.f32 %v4142, %v4341
    %v4343 = vpop.f32.mrb[0].mxu0
    %v4344 = vpop.f32.mrb[0].mxu0
    %4345 = vdwg.mxu0
    %v4346 = vmax.f32 %v4340, 0.0
    %v4347 = vmax.f32 %v4342, 0.0
    %v4348 = vpack.c.bf16 %v4346, %v4346
    %v4349 = vpack.c.bf16 %v4347, %v4347
    %v4350 = vld [vmem:[#allocation25] sm:$0xff]
    %v4351 = vld [vmem:[#allocation25 + $0x8] sm:$0xff]
    %v4352 = vld [vmem:[#allocation25 + $0x10] sm:$0xff]
    %v4353 = vld [vmem:[#allocation25 + $0x18] sm:$0xff]
    %v4354 = vld [vmem:[#allocation25 + $0x20] sm:$0xff]
    %v4355 = vld [vmem:[#allocation25 + $0x28] sm:$0xff]
    %v4356 = vld [vmem:[#allocation25 + $0x30] sm:$0xff]
    %v4357 = vld [vmem:[#allocation25 + $0x38] sm:$0xff]
    %v4358 = vld [vmem:[#allocation25 + $0x40] sm:$0xff]
    %v4359 = vld [vmem:[#allocation25 + $0x48] sm:$0xff]
    %v4360 = vld [vmem:[#allocation25 + $0x50] sm:$0xff]
    %v4361 = vld [vmem:[#allocation25 + $0x58] sm:$0xff]
    %v4362 = vld [vmem:[#allocation25 + $0x60] sm:$0xff]
    %v4363 = vld [vmem:[#allocation25 + $0x68] sm:$0xff]
    %v4364 = vld [vmem:[#allocation25 + $0x70] sm:$0xff]
    %v4365 = vld [vmem:[#allocation25 + $0x78] sm:$0xff]
    %v4366 = vld [vmem:[#allocation25 + $0x80] sm:$0xff]
    %v4367 = vld [vmem:[#allocation25 + $0x88] sm:$0xff]
    %v4368 = vld [vmem:[#allocation25 + $0x90] sm:$0xff]
    %v4369 = vld [vmem:[#allocation25 + $0x98] sm:$0xff]
    %v4370 = vld [vmem:[#allocation25 + $0xa0] sm:$0xff]
    %v4371 = vld [vmem:[#allocation25 + $0xa8] sm:$0xff]
    %v4372 = vld [vmem:[#allocation25 + $0xb0] sm:$0xff]
    %v4373 = vld [vmem:[#allocation25 + $0xb8] sm:$0xff]
    %v4374 = vld [vmem:[#allocation25 + $0xc0] sm:$0xff]
    %v4375 = vld [vmem:[#allocation25 + $0xc8] sm:$0xff]
    %v4376 = vld [vmem:[#allocation25 + $0xd0] sm:$0xff]
    %v4377 = vld [vmem:[#allocation25 + $0xd8] sm:$0xff]
    %v4378 = vld [vmem:[#allocation25 + $0xe0] sm:$0xff]
    %v4379 = vld [vmem:[#allocation25 + $0xe8] sm:$0xff]
    %v4380 = vld [vmem:[#allocation25 + $0xf0] sm:$0xff]
    %v4381 = vld [vmem:[#allocation25 + $0xf8] sm:$0xff]
    %v4382 = vld [vmem:[#allocation25 + $0x100] sm:$0xff]
    %v4383 = vld [vmem:[#allocation25 + $0x108] sm:$0xff]
    %v4384 = vld [vmem:[#allocation25 + $0x110] sm:$0xff]
    %v4385 = vld [vmem:[#allocation25 + $0x118] sm:$0xff]
    %v4386 = vld [vmem:[#allocation25 + $0x120] sm:$0xff]
    %v4387 = vld [vmem:[#allocation25 + $0x128] sm:$0xff]
    %v4388 = vld [vmem:[#allocation25 + $0x130] sm:$0xff]
    %v4389 = vld [vmem:[#allocation25 + $0x138] sm:$0xff]
    %v4390 = vld [vmem:[#allocation25 + $0x140] sm:$0xff]
    %v4391 = vld [vmem:[#allocation25 + $0x148] sm:$0xff]
    %v4392 = vld [vmem:[#allocation25 + $0x150] sm:$0xff]
    %v4393 = vld [vmem:[#allocation25 + $0x158] sm:$0xff]
    %v4394 = vld [vmem:[#allocation25 + $0x160] sm:$0xff]
    %v4395 = vld [vmem:[#allocation25 + $0x168] sm:$0xff]
    %v4396 = vld [vmem:[#allocation25 + $0x170] sm:$0xff]
    %v4397 = vld [vmem:[#allocation25 + $0x178] sm:$0xff]
    %v4398 = vld [vmem:[#allocation25 + $0x180] sm:$0xff]
    %v4399 = vld [vmem:[#allocation25 + $0x188] sm:$0xff]
    %v4400 = vld [vmem:[#allocation25 + $0x190] sm:$0xff]
    %v4401 = vld [vmem:[#allocation25 + $0x198] sm:$0xff]
    %v4402 = vld [vmem:[#allocation25 + $0x1a0] sm:$0xff]
    %v4403 = vld [vmem:[#allocation25 + $0x1a8] sm:$0xff]
    %v4404 = vld [vmem:[#allocation25 + $0x1b0] sm:$0xff]
    %v4405 = vld [vmem:[#allocation25 + $0x1b8] sm:$0xff]
    %v4406 = vld [vmem:[#allocation25 + $0x1c0] sm:$0xff]
    %v4407 = vld [vmem:[#allocation25 + $0x1c8] sm:$0xff]
    %v4408 = vld [vmem:[#allocation25 + $0x1d0] sm:$0xff]
    %v4409 = vld [vmem:[#allocation25 + $0x1d8] sm:$0xff]
    %v4410 = vld [vmem:[#allocation25 + $0x1e0] sm:$0xff]
    %v4411 = vld [vmem:[#allocation25 + $0x1e8] sm:$0xff]
    %v4412 = vld [vmem:[#allocation25 + $0x1f0] sm:$0xff]
    %v4413 = vld [vmem:[#allocation25 + $0x1f8] sm:$0xff]
    %v4414 = vld [vmem:[#allocation25 + $0x200] sm:$0xff]
    %v4415 = vld [vmem:[#allocation25 + $0x208] sm:$0xff]
    %v4416 = vld [vmem:[#allocation25 + $0x210] sm:$0xff]
    %v4417 = vld [vmem:[#allocation25 + $0x218] sm:$0xff]
    %v4418 = vld [vmem:[#allocation25 + $0x220] sm:$0xff]
    %v4419 = vld [vmem:[#allocation25 + $0x228] sm:$0xff]
    %v4420 = vld [vmem:[#allocation25 + $0x230] sm:$0xff]
    %v4421 = vld [vmem:[#allocation25 + $0x238] sm:$0xff]
    %v4422 = vld [vmem:[#allocation25 + $0x240] sm:$0xff]
    %v4423 = vld [vmem:[#allocation25 + $0x248] sm:$0xff]
    %v4424 = vld [vmem:[#allocation25 + $0x250] sm:$0xff]
    %v4425 = vld [vmem:[#allocation25 + $0x258] sm:$0xff]
    %v4426 = vld [vmem:[#allocation25 + $0x260] sm:$0xff]
    %v4427 = vld [vmem:[#allocation25 + $0x268] sm:$0xff]
    %v4428 = vld [vmem:[#allocation25 + $0x270] sm:$0xff]
    %v4429 = vld [vmem:[#allocation25 + $0x278] sm:$0xff]
    %v4430 = vld [vmem:[#allocation25 + $0x280] sm:$0xff]
    %v4431 = vld [vmem:[#allocation25 + $0x288] sm:$0xff]
    %v4432 = vld [vmem:[#allocation25 + $0x290] sm:$0xff]
    %v4433 = vld [vmem:[#allocation25 + $0x298] sm:$0xff]
    %v4434 = vld [vmem:[#allocation25 + $0x2a0] sm:$0xff]
    %v4435 = vld [vmem:[#allocation25 + $0x2a8] sm:$0xff]
    %v4436 = vld [vmem:[#allocation25 + $0x2b0] sm:$0xff]
    %v4437 = vld [vmem:[#allocation25 + $0x2b8] sm:$0xff]
    %v4438 = vld [vmem:[#allocation25 + $0x2c0] sm:$0xff]
    %v4439 = vld [vmem:[#allocation25 + $0x2c8] sm:$0xff]
    %v4440 = vld [vmem:[#allocation25 + $0x2d0] sm:$0xff]
    %v4441 = vld [vmem:[#allocation25 + $0x2d8] sm:$0xff]
    %v4442 = vld [vmem:[#allocation25 + $0x2e0] sm:$0xff]
    %v4443 = vld [vmem:[#allocation25 + $0x2e8] sm:$0xff]
    %v4444 = vld [vmem:[#allocation25 + $0x2f0] sm:$0xff]
    %v4445 = vld [vmem:[#allocation25 + $0x2f8] sm:$0xff]
    %v4446 = vld [vmem:[#allocation25 + $0x300] sm:$0xff]
    %v4447 = vld [vmem:[#allocation25 + $0x308] sm:$0xff]
    %v4448 = vld [vmem:[#allocation25 + $0x310] sm:$0xff]
    %v4449 = vld [vmem:[#allocation25 + $0x318] sm:$0xff]
    %v4450 = vld [vmem:[#allocation25 + $0x320] sm:$0xff]
    %v4451 = vld [vmem:[#allocation25 + $0x328] sm:$0xff]
    %v4452 = vld [vmem:[#allocation25 + $0x330] sm:$0xff]
    %v4453 = vld [vmem:[#allocation25 + $0x338] sm:$0xff]
    %v4454 = vld [vmem:[#allocation25 + $0x340] sm:$0xff]
    %v4455 = vld [vmem:[#allocation25 + $0x348] sm:$0xff]
    %v4456 = vld [vmem:[#allocation25 + $0x350] sm:$0xff]
    %v4457 = vld [vmem:[#allocation25 + $0x358] sm:$0xff]
    %v4458 = vld [vmem:[#allocation25 + $0x360] sm:$0xff]
    %v4459 = vld [vmem:[#allocation25 + $0x368] sm:$0xff]
    %v4460 = vld [vmem:[#allocation25 + $0x370] sm:$0xff]
    %v4461 = vld [vmem:[#allocation25 + $0x378] sm:$0xff]
    %v4462 = vld [vmem:[#allocation25 + $0x380] sm:$0xff]
    %v4463 = vld [vmem:[#allocation25 + $0x388] sm:$0xff]
    %v4464 = vld [vmem:[#allocation25 + $0x390] sm:$0xff]
    %v4465 = vld [vmem:[#allocation25 + $0x398] sm:$0xff]
    %v4466 = vld [vmem:[#allocation25 + $0x3a0] sm:$0xff]
    %v4467 = vld [vmem:[#allocation25 + $0x3a8] sm:$0xff]
    %v4468 = vld [vmem:[#allocation25 + $0x3b0] sm:$0xff]
    %v4469 = vld [vmem:[#allocation25 + $0x3b8] sm:$0xff]
    %v4470 = vld [vmem:[#allocation25 + $0x3c0] sm:$0xff]
    %v4471 = vld [vmem:[#allocation25 + $0x3c8] sm:$0xff]
    %v4472 = vld [vmem:[#allocation25 + $0x3d0] sm:$0xff]
    %v4473 = vld [vmem:[#allocation25 + $0x3d8] sm:$0xff]
    %v4474 = vld [vmem:[#allocation25 + $0x3e0] sm:$0xff]
    %v4475 = vld [vmem:[#allocation25 + $0x3e8] sm:$0xff]
    %v4476 = vld [vmem:[#allocation25 + $0x3f0] sm:$0xff]
    %v4477 = vld [vmem:[#allocation25 + $0x3f8] sm:$0xff]
    %v4478 = vld [vmem:[%s59] sm:$0xff]
    %v4480 = vlaneseq
    %v4481 = vshrl.u32 %v4480, 7
    %v4482 = vsub.s32 0, %v4481
    %v4483 = vrot.slane %v4478, %v4482
    %v4484 = vlaneseq
    %v4485 = vshrl.u32 %v4484, 7
    %v4486 = vsub.s32 1, %v4485
    %v4487 = vrot.slane %v4478, %v4486
    %v4488 = vlaneseq
    %v4489 = vshrl.u32 %v4488, 7
    %v4490 = vsub.s32 2, %v4489
    %v4491 = vrot.slane %v4478, %v4490
    %v4492 = vlaneseq
    %v4493 = vshrl.u32 %v4492, 7
    %v4494 = vsub.s32 3, %v4493
    %v4495 = vrot.slane %v4478, %v4494
    %v4496 = vlaneseq
    %v4497 = vshrl.u32 %v4496, 7
    %v4498 = vsub.s32 4, %v4497
    %v4499 = vrot.slane %v4478, %v4498
    %v4500 = vlaneseq
    %v4501 = vshrl.u32 %v4500, 7
    %v4502 = vsub.s32 5, %v4501
    %v4503 = vrot.slane %v4478, %v4502
    %v4504 = vlaneseq
    %v4505 = vshrl.u32 %v4504, 7
    %v4506 = vsub.s32 6, %v4505
    %v4507 = vrot.slane %v4478, %v4506
    %v4508 = vlaneseq
    %v4509 = vshrl.u32 %v4508, 7
    %v4510 = vsub.s32 7, %v4509
    %v4511 = vrot.slane %v4478, %v4510
    %v4648 = vunpack.c.l.b16 %v4350
    %v4649 = vunpack.c.h.b16 %v4350
    %v4650 = vunpack.c.l.b16 %v4351
    %v4651 = vunpack.c.h.b16 %v4351
    %v4652 = vunpack.c.l.b16 %v4352
    %v4653 = vunpack.c.h.b16 %v4352
    %v4654 = vunpack.c.l.b16 %v4353
    %v4655 = vunpack.c.h.b16 %v4353
    %v4656 = vunpack.c.l.b16 %v4354
    %v4657 = vunpack.c.h.b16 %v4354
    %v4658 = vunpack.c.l.b16 %v4355
    %v4659 = vunpack.c.h.b16 %v4355
    %v4660 = vunpack.c.l.b16 %v4356
    %v4661 = vunpack.c.h.b16 %v4356
    %v4662 = vunpack.c.l.b16 %v4357
    %v4663 = vunpack.c.h.b16 %v4357
    %v4664 = vunpack.c.l.b16 %v4358
    %v4665 = vunpack.c.h.b16 %v4358
    %v4666 = vunpack.c.l.b16 %v4359
    %v4667 = vunpack.c.h.b16 %v4359
    %v4668 = vunpack.c.l.b16 %v4360
    %v4669 = vunpack.c.h.b16 %v4360
    %v4670 = vunpack.c.l.b16 %v4361
    %v4671 = vunpack.c.h.b16 %v4361
    %v4672 = vunpack.c.l.b16 %v4362
    %v4673 = vunpack.c.h.b16 %v4362
    %v4674 = vunpack.c.l.b16 %v4363
    %v4675 = vunpack.c.h.b16 %v4363
    %v4676 = vunpack.c.l.b16 %v4364
    %v4677 = vunpack.c.h.b16 %v4364
    %v4678 = vunpack.c.l.b16 %v4365
    %v4679 = vunpack.c.h.b16 %v4365
    %v4680 = vunpack.c.l.b16 %v4366
    %v4681 = vunpack.c.h.b16 %v4366
    %v4682 = vunpack.c.l.b16 %v4367
    %v4683 = vunpack.c.h.b16 %v4367
    %v4684 = vunpack.c.l.b16 %v4368
    %v4685 = vunpack.c.h.b16 %v4368
    %v4686 = vunpack.c.l.b16 %v4369
    %v4687 = vunpack.c.h.b16 %v4369
    %v4688 = vunpack.c.l.b16 %v4370
    %v4689 = vunpack.c.h.b16 %v4370
    %v4690 = vunpack.c.l.b16 %v4371
    %v4691 = vunpack.c.h.b16 %v4371
    %v4692 = vunpack.c.l.b16 %v4372
    %v4693 = vunpack.c.h.b16 %v4372
    %v4694 = vunpack.c.l.b16 %v4373
    %v4695 = vunpack.c.h.b16 %v4373
    %v4696 = vunpack.c.l.b16 %v4374
    %v4697 = vunpack.c.h.b16 %v4374
    %v4698 = vunpack.c.l.b16 %v4375
    %v4699 = vunpack.c.h.b16 %v4375
    %v4700 = vunpack.c.l.b16 %v4376
    %v4701 = vunpack.c.h.b16 %v4376
    %v4702 = vunpack.c.l.b16 %v4377
    %v4703 = vunpack.c.h.b16 %v4377
    %v4704 = vunpack.c.l.b16 %v4378
    %v4705 = vunpack.c.h.b16 %v4378
    %v4706 = vunpack.c.l.b16 %v4379
    %v4707 = vunpack.c.h.b16 %v4379
    %v4708 = vunpack.c.l.b16 %v4380
    %v4709 = vunpack.c.h.b16 %v4380
    %v4710 = vunpack.c.l.b16 %v4381
    %v4711 = vunpack.c.h.b16 %v4381
    %v4712 = vunpack.c.l.b16 %v4382
    %v4713 = vunpack.c.h.b16 %v4382
    %v4714 = vunpack.c.l.b16 %v4383
    %v4715 = vunpack.c.h.b16 %v4383
    %v4716 = vunpack.c.l.b16 %v4384
    %v4717 = vunpack.c.h.b16 %v4384
    %v4718 = vunpack.c.l.b16 %v4385
    %v4719 = vunpack.c.h.b16 %v4385
    %v4720 = vunpack.c.l.b16 %v4386
    %v4721 = vunpack.c.h.b16 %v4386
    %v4722 = vunpack.c.l.b16 %v4387
    %v4723 = vunpack.c.h.b16 %v4387
    %v4724 = vunpack.c.l.b16 %v4388
    %v4725 = vunpack.c.h.b16 %v4388
    %v4726 = vunpack.c.l.b16 %v4389
    %v4727 = vunpack.c.h.b16 %v4389
    %v4728 = vunpack.c.l.b16 %v4390
    %v4729 = vunpack.c.h.b16 %v4390
    %v4730 = vunpack.c.l.b16 %v4391
    %v4731 = vunpack.c.h.b16 %v4391
    %v4732 = vunpack.c.l.b16 %v4392
    %v4733 = vunpack.c.h.b16 %v4392
    %v4734 = vunpack.c.l.b16 %v4393
    %v4735 = vunpack.c.h.b16 %v4393
    %v4736 = vunpack.c.l.b16 %v4394
    %v4737 = vunpack.c.h.b16 %v4394
    %v4738 = vunpack.c.l.b16 %v4395
    %v4739 = vunpack.c.h.b16 %v4395
    %v4740 = vunpack.c.l.b16 %v4396
    %v4741 = vunpack.c.h.b16 %v4396
    %v4742 = vunpack.c.l.b16 %v4397
    %v4743 = vunpack.c.h.b16 %v4397
    %v4744 = vunpack.c.l.b16 %v4398
    %v4745 = vunpack.c.h.b16 %v4398
    %v4746 = vunpack.c.l.b16 %v4399
    %v4747 = vunpack.c.h.b16 %v4399
    %v4748 = vunpack.c.l.b16 %v4400
    %v4749 = vunpack.c.h.b16 %v4400
    %v4750 = vunpack.c.l.b16 %v4401
    %v4751 = vunpack.c.h.b16 %v4401
    %v4752 = vunpack.c.l.b16 %v4402
    %v4753 = vunpack.c.h.b16 %v4402
    %v4754 = vunpack.c.l.b16 %v4403
    %v4755 = vunpack.c.h.b16 %v4403
    %v4756 = vunpack.c.l.b16 %v4404
    %v4757 = vunpack.c.h.b16 %v4404
    %v4758 = vunpack.c.l.b16 %v4405
    %v4759 = vunpack.c.h.b16 %v4405
    %v4760 = vunpack.c.l.b16 %v4406
    %v4761 = vunpack.c.h.b16 %v4406
    %v4762 = vunpack.c.l.b16 %v4407
    %v4763 = vunpack.c.h.b16 %v4407
    %v4764 = vunpack.c.l.b16 %v4408
    %v4765 = vunpack.c.h.b16 %v4408
    %v4766 = vunpack.c.l.b16 %v4409
    %v4767 = vunpack.c.h.b16 %v4409
    %v4768 = vunpack.c.l.b16 %v4410
    %v4769 = vunpack.c.h.b16 %v4410
    %v4770 = vunpack.c.l.b16 %v4411
    %v4771 = vunpack.c.h.b16 %v4411
    %v4772 = vunpack.c.l.b16 %v4412
    %v4773 = vunpack.c.h.b16 %v4412
    %v4774 = vunpack.c.l.b16 %v4413
    %v4775 = vunpack.c.h.b16 %v4413
    %v4776 = vunpack.c.l.b16 %v4414
    %v4777 = vunpack.c.h.b16 %v4414
    %v4778 = vunpack.c.l.b16 %v4415
    %v4779 = vunpack.c.h.b16 %v4415
    %v4780 = vunpack.c.l.b16 %v4416
    %v4781 = vunpack.c.h.b16 %v4416
    %v4782 = vunpack.c.l.b16 %v4417
    %v4783 = vunpack.c.h.b16 %v4417
    %v4784 = vunpack.c.l.b16 %v4418
    %v4785 = vunpack.c.h.b16 %v4418
    %v4786 = vunpack.c.l.b16 %v4419
    %v4787 = vunpack.c.h.b16 %v4419
    %v4788 = vunpack.c.l.b16 %v4420
    %v4789 = vunpack.c.h.b16 %v4420
    %v4790 = vunpack.c.l.b16 %v4421
    %v4791 = vunpack.c.h.b16 %v4421
    %v4792 = vunpack.c.l.b16 %v4422
    %v4793 = vunpack.c.h.b16 %v4422
    %v4794 = vunpack.c.l.b16 %v4423
    %v4795 = vunpack.c.h.b16 %v4423
    %v4796 = vunpack.c.l.b16 %v4424
    %v4797 = vunpack.c.h.b16 %v4424
    %v4798 = vunpack.c.l.b16 %v4425
    %v4799 = vunpack.c.h.b16 %v4425
    %v4800 = vunpack.c.l.b16 %v4426
    %v4801 = vunpack.c.h.b16 %v4426
    %v4802 = vunpack.c.l.b16 %v4427
    %v4803 = vunpack.c.h.b16 %v4427
    %v4804 = vunpack.c.l.b16 %v4428
    %v4805 = vunpack.c.h.b16 %v4428
    %v4806 = vunpack.c.l.b16 %v4429
    %v4807 = vunpack.c.h.b16 %v4429
    %v4808 = vunpack.c.l.b16 %v4430
    %v4809 = vunpack.c.h.b16 %v4430
    %v4810 = vunpack.c.l.b16 %v4431
    %v4811 = vunpack.c.h.b16 %v4431
    %v4812 = vunpack.c.l.b16 %v4432
    %v4813 = vunpack.c.h.b16 %v4432
    %v4814 = vunpack.c.l.b16 %v4433
    %v4815 = vunpack.c.h.b16 %v4433
    %v4816 = vunpack.c.l.b16 %v4434
    %v4817 = vunpack.c.h.b16 %v4434
    %v4818 = vunpack.c.l.b16 %v4435
    %v4819 = vunpack.c.h.b16 %v4435
    %v4820 = vunpack.c.l.b16 %v4436
    %v4821 = vunpack.c.h.b16 %v4436
    %v4822 = vunpack.c.l.b16 %v4437
    %v4823 = vunpack.c.h.b16 %v4437
    %v4824 = vunpack.c.l.b16 %v4438
    %v4825 = vunpack.c.h.b16 %v4438
    %v4826 = vunpack.c.l.b16 %v4439
    %v4827 = vunpack.c.h.b16 %v4439
    %v4828 = vunpack.c.l.b16 %v4440
    %v4829 = vunpack.c.h.b16 %v4440
    %v4830 = vunpack.c.l.b16 %v4441
    %v4831 = vunpack.c.h.b16 %v4441
    %v4832 = vunpack.c.l.b16 %v4442
    %v4833 = vunpack.c.h.b16 %v4442
    %v4834 = vunpack.c.l.b16 %v4443
    %v4835 = vunpack.c.h.b16 %v4443
    %v4836 = vunpack.c.l.b16 %v4444
    %v4837 = vunpack.c.h.b16 %v4444
    %v4838 = vunpack.c.l.b16 %v4445
    %v4839 = vunpack.c.h.b16 %v4445
    %v4840 = vunpack.c.l.b16 %v4446
    %v4841 = vunpack.c.h.b16 %v4446
    %v4842 = vunpack.c.l.b16 %v4447
    %v4843 = vunpack.c.h.b16 %v4447
    %v4844 = vunpack.c.l.b16 %v4448
    %v4845 = vunpack.c.h.b16 %v4448
    %v4846 = vunpack.c.l.b16 %v4449
    %v4847 = vunpack.c.h.b16 %v4449
    %v4848 = vunpack.c.l.b16 %v4450
    %v4849 = vunpack.c.h.b16 %v4450
    %v4850 = vunpack.c.l.b16 %v4451
    %v4851 = vunpack.c.h.b16 %v4451
    %v4852 = vunpack.c.l.b16 %v4452
    %v4853 = vunpack.c.h.b16 %v4452
    %v4854 = vunpack.c.l.b16 %v4453
    %v4855 = vunpack.c.h.b16 %v4453
    %v4856 = vunpack.c.l.b16 %v4454
    %v4857 = vunpack.c.h.b16 %v4454
    %v4858 = vunpack.c.l.b16 %v4455
    %v4859 = vunpack.c.h.b16 %v4455
    %v4860 = vunpack.c.l.b16 %v4456
    %v4861 = vunpack.c.h.b16 %v4456
    %v4862 = vunpack.c.l.b16 %v4457
    %v4863 = vunpack.c.h.b16 %v4457
    %v4864 = vunpack.c.l.b16 %v4458
    %v4865 = vunpack.c.h.b16 %v4458
    %v4866 = vunpack.c.l.b16 %v4459
    %v4867 = vunpack.c.h.b16 %v4459
    %v4868 = vunpack.c.l.b16 %v4460
    %v4869 = vunpack.c.h.b16 %v4460
    %v4870 = vunpack.c.l.b16 %v4461
    %v4871 = vunpack.c.h.b16 %v4461
    %v4872 = vunpack.c.l.b16 %v4462
    %v4873 = vunpack.c.h.b16 %v4462
    %v4874 = vunpack.c.l.b16 %v4463
    %v4875 = vunpack.c.h.b16 %v4463
    %v4876 = vunpack.c.l.b16 %v4464
    %v4877 = vunpack.c.h.b16 %v4464
    %v4878 = vunpack.c.l.b16 %v4465
    %v4879 = vunpack.c.h.b16 %v4465
    %v4880 = vunpack.c.l.b16 %v4466
    %v4881 = vunpack.c.h.b16 %v4466
    %v4882 = vunpack.c.l.b16 %v4467
    %v4883 = vunpack.c.h.b16 %v4467
    %v4884 = vunpack.c.l.b16 %v4468
    %v4885 = vunpack.c.h.b16 %v4468
    %v4886 = vunpack.c.l.b16 %v4469
    %v4887 = vunpack.c.h.b16 %v4469
    %v4888 = vunpack.c.l.b16 %v4470
    %v4889 = vunpack.c.h.b16 %v4470
    %v4890 = vunpack.c.l.b16 %v4471
    %v4891 = vunpack.c.h.b16 %v4471
    %v4892 = vunpack.c.l.b16 %v4472
    %v4893 = vunpack.c.h.b16 %v4472
    %v4894 = vunpack.c.l.b16 %v4473
    %v4895 = vunpack.c.h.b16 %v4473
    %v4896 = vunpack.c.l.b16 %v4474
    %v4897 = vunpack.c.h.b16 %v4474
    %v4898 = vunpack.c.l.b16 %v4475
    %v4899 = vunpack.c.h.b16 %v4475
    %v4900 = vunpack.c.l.b16 %v4476
    %v4901 = vunpack.c.h.b16 %v4476
    %v4902 = vunpack.c.l.b16 %v4477
    %v4903 = vunpack.c.h.b16 %v4477
    %v4904 = vpack.c.b16 %v4656, %v4648
    %v4905 = vpack.c.b16 %v4657, %v4649
    %v4906 = vpack.c.b16 %v4658, %v4650
    %v4907 = vpack.c.b16 %v4659, %v4651
    %v4908 = vpack.c.b16 %v4660, %v4652
    %v4909 = vpack.c.b16 %v4661, %v4653
    %v4910 = vpack.c.b16 %v4662, %v4654
    %v4911 = vpack.c.b16 %v4663, %v4655
    %v4912 = vpack.c.b16 %v4672, %v4664
    %v4913 = vpack.c.b16 %v4673, %v4665
    %v4914 = vpack.c.b16 %v4674, %v4666
    %v4915 = vpack.c.b16 %v4675, %v4667
    %v4916 = vpack.c.b16 %v4676, %v4668
    %v4917 = vpack.c.b16 %v4677, %v4669
    %v4918 = vpack.c.b16 %v4678, %v4670
    %v4919 = vpack.c.b16 %v4679, %v4671
    %v4920 = vpack.c.b16 %v4688, %v4680
    %v4921 = vpack.c.b16 %v4689, %v4681
    %v4922 = vpack.c.b16 %v4690, %v4682
    %v4923 = vpack.c.b16 %v4691, %v4683
    %v4924 = vpack.c.b16 %v4692, %v4684
    %v4925 = vpack.c.b16 %v4693, %v4685
    %v4926 = vpack.c.b16 %v4694, %v4686
    %v4927 = vpack.c.b16 %v4695, %v4687
    %v4928 = vpack.c.b16 %v4704, %v4696
    %v4929 = vpack.c.b16 %v4705, %v4697
    %v4930 = vpack.c.b16 %v4706, %v4698
    %v4931 = vpack.c.b16 %v4707, %v4699
    %v4932 = vpack.c.b16 %v4708, %v4700
    %v4933 = vpack.c.b16 %v4709, %v4701
    %v4934 = vpack.c.b16 %v4710, %v4702
    %v4935 = vpack.c.b16 %v4711, %v4703
    %v4936 = vpack.c.b16 %v4720, %v4712
    %v4937 = vpack.c.b16 %v4721, %v4713
    %v4938 = vpack.c.b16 %v4722, %v4714
    %v4939 = vpack.c.b16 %v4723, %v4715
    %v4940 = vpack.c.b16 %v4724, %v4716
    %v4941 = vpack.c.b16 %v4725, %v4717
    %v4942 = vpack.c.b16 %v4726, %v4718
    %v4943 = vpack.c.b16 %v4727, %v4719
    %v4944 = vpack.c.b16 %v4736, %v4728
    %v4945 = vpack.c.b16 %v4737, %v4729
    %v4946 = vpack.c.b16 %v4738, %v4730
    %v4947 = vpack.c.b16 %v4739, %v4731
    %v4948 = vpack.c.b16 %v4740, %v4732
    %v4949 = vpack.c.b16 %v4741, %v4733
    %v4950 = vpack.c.b16 %v4742, %v4734
    %v4951 = vpack.c.b16 %v4743, %v4735
    %v4952 = vpack.c.b16 %v4752, %v4744
    %v4953 = vpack.c.b16 %v4753, %v4745
    %v4954 = vpack.c.b16 %v4754, %v4746
    %v4955 = vpack.c.b16 %v4755, %v4747
    %v4956 = vpack.c.b16 %v4756, %v4748
    %v4957 = vpack.c.b16 %v4757, %v4749
    %v4958 = vpack.c.b16 %v4758, %v4750
    %v4959 = vpack.c.b16 %v4759, %v4751
    %v4960 = vpack.c.b16 %v4768, %v4760
    %v4961 = vpack.c.b16 %v4769, %v4761
    %v4962 = vpack.c.b16 %v4770, %v4762
    %v4963 = vpack.c.b16 %v4771, %v4763
    %v4964 = vpack.c.b16 %v4772, %v4764
    %v4965 = vpack.c.b16 %v4773, %v4765
    %v4966 = vpack.c.b16 %v4774, %v4766
    %v4967 = vpack.c.b16 %v4775, %v4767
    %v4968 = vpack.c.b16 %v4784, %v4776
    %v4969 = vpack.c.b16 %v4785, %v4777
    %v4970 = vpack.c.b16 %v4786, %v4778
    %v4971 = vpack.c.b16 %v4787, %v4779
    %v4972 = vpack.c.b16 %v4788, %v4780
    %v4973 = vpack.c.b16 %v4789, %v4781
    %v4974 = vpack.c.b16 %v4790, %v4782
    %v4975 = vpack.c.b16 %v4791, %v4783
    %v4976 = vpack.c.b16 %v4800, %v4792
    %v4977 = vpack.c.b16 %v4801, %v4793
    %v4978 = vpack.c.b16 %v4802, %v4794
    %v4979 = vpack.c.b16 %v4803, %v4795
    %v4980 = vpack.c.b16 %v4804, %v4796
    %v4981 = vpack.c.b16 %v4805, %v4797
    %v4982 = vpack.c.b16 %v4806, %v4798
    %v4983 = vpack.c.b16 %v4807, %v4799
    %v4984 = vpack.c.b16 %v4816, %v4808
    %v4985 = vpack.c.b16 %v4817, %v4809
    %v4986 = vpack.c.b16 %v4818, %v4810
    %v4987 = vpack.c.b16 %v4819, %v4811
    %v4988 = vpack.c.b16 %v4820, %v4812
    %v4989 = vpack.c.b16 %v4821, %v4813
    %v4990 = vpack.c.b16 %v4822, %v4814
    %v4991 = vpack.c.b16 %v4823, %v4815
    %v4992 = vpack.c.b16 %v4832, %v4824
    %v4993 = vpack.c.b16 %v4833, %v4825
    %v4994 = vpack.c.b16 %v4834, %v4826
    %v4995 = vpack.c.b16 %v4835, %v4827
    %v4996 = vpack.c.b16 %v4836, %v4828
    %v4997 = vpack.c.b16 %v4837, %v4829
    %v4998 = vpack.c.b16 %v4838, %v4830
    %v4999 = vpack.c.b16 %v4839, %v4831
    %v5000 = vpack.c.b16 %v4848, %v4840
    %v5001 = vpack.c.b16 %v4849, %v4841
    %v5002 = vpack.c.b16 %v4850, %v4842
    %v5003 = vpack.c.b16 %v4851, %v4843
    %v5004 = vpack.c.b16 %v4852, %v4844
    %v5005 = vpack.c.b16 %v4853, %v4845
    %v5006 = vpack.c.b16 %v4854, %v4846
    %v5007 = vpack.c.b16 %v4855, %v4847
    %v5008 = vpack.c.b16 %v4864, %v4856
    %v5009 = vpack.c.b16 %v4865, %v4857
    %v5010 = vpack.c.b16 %v4866, %v4858
    %v5011 = vpack.c.b16 %v4867, %v4859
    %v5012 = vpack.c.b16 %v4868, %v4860
    %v5013 = vpack.c.b16 %v4869, %v4861
    %v5014 = vpack.c.b16 %v4870, %v4862
    %v5015 = vpack.c.b16 %v4871, %v4863
    %v5016 = vpack.c.b16 %v4880, %v4872
    %v5017 = vpack.c.b16 %v4881, %v4873
    %v5018 = vpack.c.b16 %v4882, %v4874
    %v5019 = vpack.c.b16 %v4883, %v4875
    %v5020 = vpack.c.b16 %v4884, %v4876
    %v5021 = vpack.c.b16 %v4885, %v4877
    %v5022 = vpack.c.b16 %v4886, %v4878
    %v5023 = vpack.c.b16 %v4887, %v4879
    %v5024 = vpack.c.b16 %v4896, %v4888
    %v5025 = vpack.c.b16 %v4897, %v4889
    %v5026 = vpack.c.b16 %v4898, %v4890
    %v5027 = vpack.c.b16 %v4899, %v4891
    %v5028 = vpack.c.b16 %v4900, %v4892
    %v5029 = vpack.c.b16 %v4901, %v4893
    %v5030 = vpack.c.b16 %v4902, %v4894
    %v5031 = vpack.c.b16 %v4903, %v4895
    %5160 = vmatprep.subr.bf16.mxu0 %v4905
    %5161 = vmatpush1.bf16.msra.mxu0 %v4904
    %5162 = vmatprep.subr.bf16.mxu0 %v4913
    %5163 = vmatpush1.bf16.msra.mxu0 %v4912
    %5164 = vmatprep.subr.bf16.mxu0 %v4921
    %5165 = vmatpush1.bf16.msra.mxu0 %v4920
    %5166 = vmatprep.subr.bf16.mxu0 %v4929
    %5167 = vmatpush1.bf16.msra.mxu0 %v4928
    %5168 = vmatprep.subr.bf16.mxu0 %v4937
    %5169 = vmatpush1.bf16.msra.mxu0 %v4936
    %5170 = vmatprep.subr.bf16.mxu0 %v4945
    %5171 = vmatpush1.bf16.msra.mxu0 %v4944
    %5172 = vmatprep.subr.bf16.mxu0 %v4953
    %5173 = vmatpush1.bf16.msra.mxu0 %v4952
    %5174 = vmatprep.subr.bf16.mxu0 %v4961
    %5175 = vmatpush1.bf16.msra.mxu0 %v4960
    %5176 = vmatprep.subr.bf16.mxu0 %v4969
    %5177 = vmatpush1.bf16.msra.mxu0 %v4968
    %5178 = vmatprep.subr.bf16.mxu0 %v4977
    %5179 = vmatpush1.bf16.msra.mxu0 %v4976
    %5180 = vmatprep.subr.bf16.mxu0 %v4985
    %5181 = vmatpush1.bf16.msra.mxu0 %v4984
    %5182 = vmatprep.subr.bf16.mxu0 %v4993
    %5183 = vmatpush1.bf16.msra.mxu0 %v4992
    %5184 = vmatprep.subr.bf16.mxu0 %v5001
    %5185 = vmatpush1.bf16.msra.mxu0 %v5000
    %5186 = vmatprep.subr.bf16.mxu0 %v5009
    %5187 = vmatpush1.bf16.msra.mxu0 %v5008
    %5188 = vmatprep.subr.bf16.mxu0 %v5017
    %5189 = vmatpush1.bf16.msra.mxu0 %v5016
    %5190 = vmatprep.subr.bf16.mxu0 %v5025
    %5191 = vmatpush1.bf16.msra.mxu0 %v5024
    %5192 = vmatprep.mubr.bf16.mxu0 %v4349
    %5193 = vmatmul.mubr.bf16.gmra.mrb[0].mxu0 %v4348
    %v5194 = vpop.f32.mrb[0].mxu0
    %v5195 = vadd.f32 %v4483, %v5194
    %v5196 = vpop.f32.mrb[0].mxu0
    %v5197 = vadd.f32 %v4487, %v5196
    %v5198 = vpop.f32.mrb[0].mxu0
    %v5199 = vpop.f32.mrb[0].mxu0
    %5200 = vdwg.mxu0
    %5201 = vmatprep.subr.bf16.mxu0 %v4907
    %5202 = vmatpush1.bf16.msra.mxu0 %v4906
    %5203 = vmatprep.subr.bf16.mxu0 %v4915
    %5204 = vmatpush1.bf16.msra.mxu0 %v4914
    %5205 = vmatprep.subr.bf16.mxu0 %v4923
    %5206 = vmatpush1.bf16.msra.mxu0 %v4922
    %5207 = vmatprep.subr.bf16.mxu0 %v4931
    %5208 = vmatpush1.bf16.msra.mxu0 %v4930
    %5209 = vmatprep.subr.bf16.mxu0 %v4939
    %5210 = vmatpush1.bf16.msra.mxu0 %v4938
    %5211 = vmatprep.subr.bf16.mxu0 %v4947
    %5212 = vmatpush1.bf16.msra.mxu0 %v4946
    %5213 = vmatprep.subr.bf16.mxu0 %v4955
    %5214 = vmatpush1.bf16.msra.mxu0 %v4954
    %5215 = vmatprep.subr.bf16.mxu0 %v4963
    %5216 = vmatpush1.bf16.msra.mxu0 %v4962
    %5217 = vmatprep.subr.bf16.mxu0 %v4971
    %5218 = vmatpush1.bf16.msra.mxu0 %v4970
    %5219 = vmatprep.subr.bf16.mxu0 %v4979
    %5220 = vmatpush1.bf16.msra.mxu0 %v4978
    %5221 = vmatprep.subr.bf16.mxu0 %v4987
    %5222 = vmatpush1.bf16.msra.mxu0 %v4986
    %5223 = vmatprep.subr.bf16.mxu0 %v4995
    %5224 = vmatpush1.bf16.msra.mxu0 %v4994
    %5225 = vmatprep.subr.bf16.mxu0 %v5003
    %5226 = vmatpush1.bf16.msra.mxu0 %v5002
    %5227 = vmatprep.subr.bf16.mxu0 %v5011
    %5228 = vmatpush1.bf16.msra.mxu0 %v5010
    %5229 = vmatprep.subr.bf16.mxu0 %v5019
    %5230 = vmatpush1.bf16.msra.mxu0 %v5018
    %5231 = vmatprep.subr.bf16.mxu0 %v5027
    %5232 = vmatpush1.bf16.msra.mxu0 %v5026
    %5233 = vmatprep.mubr.bf16.mxu0 %v4349
    %5234 = vmatmul.mubr.bf16.gmra.mrb[0].mxu0 %v4348
    %v5235 = vpop.f32.mrb[0].mxu0
    %v5236 = vadd.f32 %v4491, %v5235
    %v5237 = vpop.f32.mrb[0].mxu0
    %v5238 = vadd.f32 %v4495, %v5237
    %v5239 = vpop.f32.mrb[0].mxu0
    %v5240 = vpop.f32.mrb[0].mxu0
    %5241 = vdwg.mxu0
    %5242 = vmatprep.subr.bf16.mxu0 %v4909
    %5243 = vmatpush1.bf16.msra.mxu0 %v4908
    %5244 = vmatprep.subr.bf16.mxu0 %v4917
    %5245 = vmatpush1.bf16.msra.mxu0 %v4916
    %5246 = vmatprep.subr.bf16.mxu0 %v4925
    %5247 = vmatpush1.bf16.msra.mxu0 %v4924
    %5248 = vmatprep.subr.bf16.mxu0 %v4933
    %5249 = vmatpush1.bf16.msra.mxu0 %v4932
    %5250 = vmatprep.subr.bf16.mxu0 %v4941
    %5251 = vmatpush1.bf16.msra.mxu0 %v4940
    %5252 = vmatprep.subr.bf16.mxu0 %v4949
    %5253 = vmatpush1.bf16.msra.mxu0 %v4948
    %5254 = vmatprep.subr.bf16.mxu0 %v4957
    %5255 = vmatpush1.bf16.msra.mxu0 %v4956
    %5256 = vmatprep.subr.bf16.mxu0 %v4965
    %5257 = vmatpush1.bf16.msra.mxu0 %v4964
    %5258 = vmatprep.subr.bf16.mxu0 %v4973
    %5259 = vmatpush1.bf16.msra.mxu0 %v4972
    %5260 = vmatprep.subr.bf16.mxu0 %v4981
    %5261 = vmatpush1.bf16.msra.mxu0 %v4980
    %5262 = vmatprep.subr.bf16.mxu0 %v4989
    %5263 = vmatpush1.bf16.msra.mxu0 %v4988
    %5264 = vmatprep.subr.bf16.mxu0 %v4997
    %5265 = vmatpush1.bf16.msra.mxu0 %v4996
    %5266 = vmatprep.subr.bf16.mxu0 %v5005
    %5267 = vmatpush1.bf16.msra.mxu0 %v5004
    %5268 = vmatprep.subr.bf16.mxu0 %v5013
    %5269 = vmatpush1.bf16.msra.mxu0 %v5012
    %5270 = vmatprep.subr.bf16.mxu0 %v5021
    %5271 = vmatpush1.bf16.msra.mxu0 %v5020
    %5272 = vmatprep.subr.bf16.mxu0 %v5029
    %5273 = vmatpush1.bf16.msra.mxu0 %v5028
    %5274 = vmatprep.mubr.bf16.mxu0 %v4349
    %5275 = vmatmul.mubr.bf16.gmra.mrb[0].mxu0 %v4348
    %v5276 = vpop.f32.mrb[0].mxu0
    %v5277 = vadd.f32 %v4499, %v5276
    %v5278 = vpop.f32.mrb[0].mxu0
    %v5279 = vadd.f32 %v4503, %v5278
    %v5280 = vpop.f32.mrb[0].mxu0
    %v5281 = vpop.f32.mrb[0].mxu0
    %5282 = vdwg.mxu0
    %5283 = vmatprep.subr.bf16.mxu0 %v4911
    %5284 = vmatpush1.bf16.msra.mxu0 %v4910
    %5285 = vmatprep.subr.bf16.mxu0 %v4919
    %5286 = vmatpush1.bf16.msra.mxu0 %v4918
    %5287 = vmatprep.subr.bf16.mxu0 %v4927
    %5288 = vmatpush1.bf16.msra.mxu0 %v4926
    %5289 = vmatprep.subr.bf16.mxu0 %v4935
    %5290 = vmatpush1.bf16.msra.mxu0 %v4934
    %5291 = vmatprep.subr.bf16.mxu0 %v4943
    %5292 = vmatpush1.bf16.msra.mxu0 %v4942
    %5293 = vmatprep.subr.bf16.mxu0 %v4951
    %5294 = vmatpush1.bf16.msra.mxu0 %v4950
    %5295 = vmatprep.subr.bf16.mxu0 %v4959
    %5296 = vmatpush1.bf16.msra.mxu0 %v4958
    %5297 = vmatprep.subr.bf16.mxu0 %v4967
    %5298 = vmatpush1.bf16.msra.mxu0 %v4966
    %5299 = vmatprep.subr.bf16.mxu0 %v4975
    %5300 = vmatpush1.bf16.msra.mxu0 %v4974
    %5301 = vmatprep.subr.bf16.mxu0 %v4983
    %5302 = vmatpush1.bf16.msra.mxu0 %v4982
    %5303 = vmatprep.subr.bf16.mxu0 %v4991
    %5304 = vmatpush1.bf16.msra.mxu0 %v4990
    %5305 = vmatprep.subr.bf16.mxu0 %v4999
    %5306 = vmatpush1.bf16.msra.mxu0 %v4998
    %5307 = vmatprep.subr.bf16.mxu0 %v5007
    %5308 = vmatpush1.bf16.msra.mxu0 %v5006
    %5309 = vmatprep.subr.bf16.mxu0 %v5015
    %5310 = vmatpush1.bf16.msra.mxu0 %v5014
    %5311 = vmatprep.subr.bf16.mxu0 %v5023
    %5312 = vmatpush1.bf16.msra.mxu0 %v5022
    %5313 = vmatprep.subr.bf16.mxu0 %v5031
    %5314 = vmatpush1.bf16.msra.mxu0 %v5030
    %5315 = vmatprep.mubr.bf16.mxu0 %v4349
    %5316 = vmatmul.mubr.bf16.gmra.mrb[0].mxu0 %v4348
    %v5317 = vpop.f32.mrb[0].mxu0
    %v5318 = vadd.f32 %v4507, %v5317
    %v5319 = vpop.f32.mrb[0].mxu0
    %v5320 = vadd.f32 %v4511, %v5319
    %v5321 = vpop.f32.mrb[0].mxu0
    %v5322 = vpop.f32.mrb[0].mxu0
    %5323 = vdwg.mxu0
    %v5324 = vand.u32 2147483647, %v5195
    %v5325 = vand.u32 2147483647, %v5197
    %v5326 = vand.u32 2147483647, %v5236
    %v5327 = vand.u32 2147483647, %v5238
    %v5328 = vand.u32 2147483647, %v5277
    %v5329 = vand.u32 2147483647, %v5279
    %v5330 = vand.u32 2147483647, %v5318
    %v5331 = vand.u32 2147483647, %v5320
    %v5332 = vsub.f32 0.0, %v5324
    %v5333 = vsub.f32 0.0, %v5325
    %v5334 = vsub.f32 0.0, %v5326
    %v5335 = vsub.f32 0.0, %v5327
    %v5336 = vsub.f32 0.0, %v5328
    %v5337 = vsub.f32 0.0, %v5329
    %v5338 = vsub.f32 0.0, %v5330
    %v5339 = vsub.f32 0.0, %v5331
    %v5340 = vmul.f32 %v5332, 1.442695
    %v5341 = vpow.pop %v5340
    %v5342 = vmul.f32 %v5333, 1.442695
    %v5343 = vpow.pop %v5342
    %v5344 = vmul.f32 %v5334, 1.442695
    %v5345 = vpow.pop %v5344
    %v5346 = vmul.f32 %v5335, 1.442695
    %v5347 = vpow.pop %v5346
    %v5348 = vmul.f32 %v5336, 1.442695
    %v5349 = vpow.pop %v5348
    %v5350 = vmul.f32 %v5337, 1.442695
    %v5351 = vpow.pop %v5350
    %v5352 = vmul.f32 %v5338, 1.442695
    %v5353 = vpow.pop %v5352
    %v5354 = vmul.f32 %v5339, 1.442695
    %v5355 = vpow.pop %v5354
    %v5356 = vadd.f32 %v5341, 1.0
    %v5357 = vadd.f32 %v5343, 1.0
    %v5358 = vadd.f32 %v5345, 1.0
    %v5359 = vadd.f32 %v5347, 1.0
    %v5360 = vadd.f32 %v5349, 1.0
    %v5361 = vadd.f32 %v5351, 1.0
    %v5362 = vadd.f32 %v5353, 1.0
    %v5363 = vadd.f32 %v5355, 1.0
    %v5364 = vrcp.pop %v5356
    %v5365 = vrcp.pop %v5357
    %v5366 = vrcp.pop %v5358
    %v5367 = vrcp.pop %v5359
    %v5368 = vrcp.pop %v5360
    %v5369 = vrcp.pop %v5361
    %v5370 = vrcp.pop %v5362
    %v5371 = vrcp.pop %v5363
    %vm5372 = vcmp.ge.f32.partialorder %v5195, 0.0
    %vm5373 = vcmp.ge.f32.partialorder %v5197, 0.0
    %vm5374 = vcmp.ge.f32.partialorder %v5236, 0.0
    %vm5375 = vcmp.ge.f32.partialorder %v5238, 0.0
    %vm5376 = vcmp.ge.f32.partialorder %v5277, 0.0
    %vm5377 = vcmp.ge.f32.partialorder %v5279, 0.0
    %vm5378 = vcmp.ge.f32.partialorder %v5318, 0.0
    %vm5379 = vcmp.ge.f32.partialorder %v5320, 0.0
    %v5380 = vmul.f32 %v5341, %v5364
    %v5381 = vmul.f32 %v5343, %v5365
    %v5382 = vmul.f32 %v5345, %v5366
    %v5383 = vmul.f32 %v5347, %v5367
    %v5384 = vmul.f32 %v5349, %v5368
    %v5385 = vmul.f32 %v5351, %v5369
    %v5386 = vmul.f32 %v5353, %v5370
    %v5387 = vmul.f32 %v5355, %v5371
    %v5388 = vsel %vm5372, %v5364, %v5380
    %v5389 = vsel %vm5373, %v5365, %v5381
    %v5390 = vsel %vm5374, %v5366, %v5382
    %v5391 = vsel %vm5375, %v5367, %v5383
    %v5392 = vsel %vm5376, %v5368, %v5384
    %v5393 = vsel %vm5377, %v5369, %v5385
    %v5394 = vsel %vm5378, %v5370, %v5386
    %v5395 = vsel %vm5379, %v5371, %v5387
    %5396 = vst [vmem:[%s61] sm:$0xff] %v5388
    %5397 = vst [vmem:[%s61 + $0x8] sm:$0xff] %v5389
    %5398 = vst [vmem:[%s61 + $0x10] sm:$0xff] %v5390
    %5399 = vst [vmem:[%s61 + $0x18] sm:$0xff] %v5391
    %5400 = vst [vmem:[%s61 + $0x20] sm:$0xff] %v5392
    %5401 = vst [vmem:[%s61 + $0x28] sm:$0xff] %v5393
    %5402 = vst [vmem:[%s61 + $0x30] sm:$0xff] %v5394
    %5403 = vst [vmem:[%s61 + $0x38] sm:$0xff] %v5395
    // Predicated region
    $region186: #{control_vae_forward.1} parent=1 // pred_check
      _
    $region187: #{control_vae_forward.1} parent=1 // pred_check_branch
      %5405 = sbr.rel (0) target = $region189
    $region188: #{control_vae_forward.1} parent=1 // pred_region
      _
    $region189: #{control_vae_forward.1} parent=1 // pred_fallthru
      _
    // Predicated region
    $region190: #{control_vae_forward.1} parent=1 // pred_check
      _
    $region191: #{control_vae_forward.1} parent=1 // pred_check_branch
      %5407 = sbr.rel (0) target = $region193
    $region192: #{control_vae_forward.1} parent=1 // pred_region
      _
    $region193: #{control_vae_forward.1} parent=1 // pred_fallthru
      _
    // Predicated region
    $region194: #{control_vae_forward.1} parent=1 // pred_check
      _
    $region195: #{control_vae_forward.1} parent=1 // pred_check_branch
      %5409 = sbr.rel (0) target = $region197
    $region196: #{control_vae_forward.1} parent=1 // pred_region
      _
    $region197: #{control_vae_forward.1} parent=1 // pred_fallthru
      _
    // Predicated region
    $region198: #{control_vae_forward.1} parent=1 // pred_check
      _
    $region199: #{control_vae_forward.1} parent=1 // pred_check_branch
      %5411 = sbr.rel (0) target = $region201
    $region200: #{control_vae_forward.1} parent=1 // pred_region
      _
    $region201: #{control_vae_forward.1} parent=1 // pred_fallthru
      _
    // Predicated region
    $region202: #{control_vae_forward.1} parent=1 // pred_check
      _
    $region203: #{control_vae_forward.1} parent=1 // pred_check_branch
      %5413 = sbr.rel (0) target = $region205
    $region204: #{control_vae_forward.1} parent=1 // pred_region
      _
    $region205: #{control_vae_forward.1} parent=1 // pred_fallthru
      _
    // Predicated region
    $region206: #{control_vae_forward.1} parent=1 // pred_check
      _
    $region207: #{control_vae_forward.1} parent=1 // pred_check_branch
      %5415 = sbr.rel (0) target = $region209
    $region208: #{control_vae_forward.1} parent=1 // pred_region
      _
    $region209: #{control_vae_forward.1} parent=1 // pred_fallthru
      _
    // Predicated region
    $region210: #{control_vae_forward.1} parent=1 // pred_check
      _
    $region211: #{control_vae_forward.1} parent=1 // pred_check_branch
      %5417 = sbr.rel (0) target = $region213
    $region212: #{control_vae_forward.1} parent=1 // pred_region
      _
    $region213: #{control_vae_forward.1} parent=1 // pred_fallthru
      _
    // Predicated region
    $region214: #{control_vae_forward.1} parent=1 // pred_check
      _
    $region215: #{control_vae_forward.1} parent=1 // pred_check_branch
      %5419 = sbr.rel (0) target = $region217
    $region216: #{control_vae_forward.1} parent=1 // pred_region
      _
    $region217: #{control_vae_forward.1} parent=1 // pred_fallthru
      _
    // Predicated region
    $region218: #{control_vae_forward.1} parent=1 // pred_check
      _
    $region219: #{control_vae_forward.1} parent=1 // pred_check_branch
      %5421 = sbr.rel (0) target = $region221
    $region220: #{control_vae_forward.1} parent=1 // pred_region
      _
    $region221: #{control_vae_forward.1} parent=1 // pred_fallthru
      _
    // Predicated region
    $region222: #{control_vae_forward.1} parent=1 // pred_check
      _
    $region223: #{control_vae_forward.1} parent=1 // pred_check_branch
      %5423 = sbr.rel (0) target = $region225
    $region224: #{control_vae_forward.1} parent=1 // pred_region
      _
    $region225: #{control_vae_forward.1} parent=1 // pred_fallthru
      _
    // Predicated region
    $region226: #{control_vae_forward.1} parent=1 // pred_check
      _
    $region227: #{control_vae_forward.1} parent=1 // pred_check_branch
      %5425 = sbr.rel (0) target = $region229
    $region228: #{control_vae_forward.1} parent=1 // pred_region
      _
    $region229: #{control_vae_forward.1} parent=1 // pred_fallthru
      _
    // Predicated region
    $region230: #{control_vae_forward.1} parent=1 // pred_check
      _
    $region231: #{control_vae_forward.1} parent=1 // pred_check_branch
      %5427 = sbr.rel (0) target = $region233
    $region232: #{control_vae_forward.1} parent=1 // pred_region
      _
    $region233: #{control_vae_forward.1} parent=1 // pred_fallthru
      _
    // Predicated region
    $region234: #{control_vae_forward.1} parent=1 // pred_check
      _
    $region235: #{control_vae_forward.1} parent=1 // pred_check_branch
      %5429 = sbr.rel (0) target = $region237
    $region236: #{control_vae_forward.1} parent=1 // pred_region
      _
    $region237: #{control_vae_forward.1} parent=1 // pred_fallthru
      _
    // Predicated region
    $region238: #{control_vae_forward.1} parent=1 // pred_check
      _
    $region239: #{control_vae_forward.1} parent=1 // pred_check_branch
      %5431 = sbr.rel (0) target = $region241
    $region240: #{control_vae_forward.1} parent=1 // pred_region
      _
    $region241: #{control_vae_forward.1} parent=1 // pred_fallthru
      _
    // Predicated region
    $region242: #{control_vae_forward.1} parent=1 // pred_check
      _
    $region243: #{control_vae_forward.1} parent=1 // pred_check_branch
      %5433 = sbr.rel (0) target = $region245
    $region244: #{control_vae_forward.1} parent=1 // pred_region
      _
    $region245: #{control_vae_forward.1} parent=1 // pred_fallthru
      _
    // Predicated region
    $region246: #{control_vae_forward.1} parent=1 // pred_check
      _
    $region247: #{control_vae_forward.1} parent=1 // pred_check_branch
      %5435 = sbr.rel (0) target = $region249
    $region248: #{control_vae_forward.1} parent=1 // pred_region
      _
    $region249: #{control_vae_forward.1} parent=1 // pred_fallthru
      _
    %5436 = vsyncpa [#allocation3], 1
    %5437 = vsyncpa [#allocation5], 1
    %5438 = vsyncpa [#allocation8], 1
    %5439 = vsyncpa [#allocation11], 1
    %5440 = vsyncpa [#allocation14], 1
    %5441 = vsyncpa [#allocation17], 1
    %5442 = vsyncpa [#allocation20], 1
    %5443 = vsyncpa [#allocation23], 1
    %5444 = vsyncpa [#allocation26], 1

</llo_original>
